<compile_context>
chip_gen: v7x
topology: tpu7x:2x2x1
jax: 0.10.0
libtpu: 0.0.40
codegen_flags: <defaults>
</compile_context>

<pallas_src>
import functools
import math

import jax
import jax.numpy as jnp
from jax.experimental import pallas as pl
from jax.experimental.pallas import tpu as pltpu

D_MODEL = 32
N_HEADS = 4
D_HEAD = D_MODEL // N_HEADS
D_FF = 64
N_LAYER = 2
LN_EPS = 1e-5
NEG_INF = -1e9

# Row offsets of each weight inside the packed [_W_ROWS, 128] weight slab (lane offset 0,
# sublane offsets all multiples of 8 -> clean aligned VMEM slices).
_W_QKV_S = 0                      # [D, 3D] fused Wq|Wk|Wv (self-attn)
_W_O_S = _W_QKV_S + D_MODEL       # [D, D]
_W_Q_C = _W_O_S + D_MODEL         # [D, D]
_W_KV_C = _W_Q_C + D_MODEL        # [D, 2D] fused Wk|Wv (cross-attn)
_W_O_C = _W_KV_C + D_MODEL        # [D, D]
_W_1 = _W_O_C + D_MODEL           # [D, F]
_W_2 = _W_1 + D_MODEL             # [F, D]
_W_ROWS = _W_2 + D_FF

# Row indices inside the packed [15, 128] bias / LayerNorm-parameter slab.
(_P_BQKV_S, _P_BO_S, _P_BQ_C, _P_BKV_C, _P_BO_C, _P_B1, _P_B2,
 _P_LN1G, _P_LN1B, _P_LN2G, _P_LN2B, _P_LN3G, _P_LN3B, _P_LNFG, _P_LNFB) = range(15)
_P_ROWS = 15


# ----------------------------------------------------------------------------
# In-kernel helpers (operate on jnp values living in VMEM/vregs)
# ----------------------------------------------------------------------------

def _layer_norm(x, g, b):
    mu = jnp.mean(x, axis=-1, keepdims=True)
    xc = x - mu
    var = jnp.mean(xc * xc, axis=-1, keepdims=True)
    return xc * jax.lax.rsqrt(var + LN_EPS) * g + b


# ----------------------------------------------------------------------------
# Fused decoder kernel (single invocation, everything VMEM-resident)
# ----------------------------------------------------------------------------

def _decoder_kernel(n_layer, x_ref, enc_ref, sbias_ref, cbias_ref, w_ref, p_ref, out_ref):
    D, H, Dh, F = D_MODEL, N_HEADS, D_HEAD, D_FF
    nq = x_ref.shape[0]       # B*T target tokens
    nk = enc_ref.shape[0]     # B*S encoder tokens

    x = x_ref[...]            # [nq, D]
    enc = enc_ref[...]        # [nk, D]
    self_bias = sbias_ref[...]    # [nq, nq] additive (0 attend / -1e9 masked, block-diag)
    cross_bias = cbias_ref[...]   # [nq, nk] additive

    # ---- layer-invariant values, hoisted out of the layer loop ----------------------
    prm = p_ref[...]                                  # [15, 128], ~2 vregs

    def prow(r, width):
        return prm[r:r + 1, 0:width]

    bqkv_s = prow(_P_BQKV_S, 3 * D)
    bo_s = prow(_P_BO_S, D)
    bq_c = prow(_P_BQ_C, D)
    bkv_c = prow(_P_BKV_C, 2 * D)
    bo_c = prow(_P_BO_C, D)
    b1 = prow(_P_B1, F)
    b2 = prow(_P_B2, D)
    ln1_g, ln1_b = prow(_P_LN1G, D), prow(_P_LN1B, D)
    ln2_g, ln2_b = prow(_P_LN2G, D), prow(_P_LN2B, D)
    ln3_g, ln3_b = prow(_P_LN3G, D), prow(_P_LN3B, D)
    lnf_g, lnf_b = prow(_P_LNFG, D), prow(_P_LNFB, D)

    # head-selection mask: head_sel[h, 0, d] = 1.0 iff feature column d belongs to head h.
    col = jax.lax.broadcasted_iota(jnp.int32, (H, 1, D), 2)
    hid = jax.lax.broadcasted_iota(jnp.int32, (H, 1, D), 0)
    lo = hid * Dh
    head_sel = jnp.logical_and(col >= lo, col < lo + Dh).astype(jnp.float32)   # [H, 1, D]
    head_sel_q = head_sel * (1.0 / math.sqrt(Dh))      # fold 1/sqrt(dh) into the q mask

    def _mha(q, kb, vb, bias, wo, bo):
        """Multi-head attention over the whole [nq] token axis (batch handled by `bias`).

        q   : [nq, D]  projected queries (head-major columns)
        kb/vb: [H, n_kv, D]  keys / values broadcast over the head axis
        bias: [nq, n_kv] additive mask
        wo  : [D, D], bo : [1, D]
        """
        qm = q[None] * head_sel_q                                  # zero outside head h cols
        s = jax.lax.dot_general(qm, kb, (((2,), (2,)), ((0,), (0,))),
                                preferred_element_type=jnp.float32)     # [H, nq, n_kv]
        s = s + bias[None]
        s = s - jnp.max(s, axis=-1, keepdims=True)
        e = jnp.exp(s)
        p = e * pl.reciprocal(jnp.sum(e, axis=-1, keepdims=True), approx=True)
        ctx = jax.lax.dot_general(p, vb, (((2,), (1,)), ((0,), (0,))),
                                  preferred_element_type=jnp.float32)   # [H, nq, D]
        # place head h's context into its own column block == concat over heads
        ctx_cat = jnp.sum(ctx * head_sel, axis=0)                        # [nq, D]
        return jnp.dot(ctx_cat, wo, preferred_element_type=jnp.float32) + bo

    # cross-attn K/V: encoder output and the shared weights are layer-invariant -> once.
    kv_c = jnp.dot(enc, w_ref[_W_KV_C:_W_KV_C + D, 0:2 * D],
                   preferred_element_type=jnp.float32) + bkv_c          # [nk, 2D]
    kb_c = jnp.broadcast_to(kv_c[:, 0:D][None], (H, nk, D))
    vb_c = jnp.broadcast_to(kv_c[:, D:2 * D][None], (H, nk, D))

    out = x
    # Deep-copied layers share parameters; weights stay VMEM-resident and are sliced from
    # the slab at point of use.  NOTE: switch to lax.fori_loop if N_LAYER is scaled up.
    for _ in range(n_layer):
        # -- masked self-attention (pre-LN) --
        normed = _layer_norm(out, ln1_g, ln1_b)
        qkv = jnp.dot(normed, w_ref[_W_QKV_S:_W_QKV_S + D, 0:3 * D],
                      preferred_element_type=jnp.float32) + bqkv_s      # ONE fused matmul
        kb = jnp.broadcast_to(qkv[:, D:2 * D][None], (H, nq, D))
        vb = jnp.broadcast_to(qkv[:, 2 * D:3 * D][None], (H, nq, D))
        out = out + _mha(qkv[:, 0:D], kb, vb, self_bias,
                         w_ref[_W_O_S:_W_O_S + D, 0:D], bo_s)

        # -- cross-attention --
        normed = _layer_norm(out, ln2_g, ln2_b)
        q = jnp.dot(normed, w_ref[_W_Q_C:_W_Q_C + D, 0:D],
                    preferred_element_type=jnp.float32) + bq_c
        out = out + _mha(q, kb_c, vb_c, cross_bias,
                         w_ref[_W_O_C:_W_O_C + D, 0:D], bo_c)

        # -- position-wise FFN --
        normed = _layer_norm(out, ln3_g, ln3_b)
        h = jnp.maximum(jnp.dot(normed, w_ref[_W_1:_W_1 + D, 0:F],
                                preferred_element_type=jnp.float32) + b1, 0.0)
        out = out + jnp.dot(h, w_ref[_W_2:_W_2 + F, 0:D],
                            preferred_element_type=jnp.float32) + b2

    out_ref[...] = _layer_norm(out, lnf_g, lnf_b).astype(out_ref.dtype)


# ----------------------------------------------------------------------------
# Host-side packing & wrapper
# ----------------------------------------------------------------------------

def _pad128(a):
    return jnp.pad(a, ((0, 0), (0, 128 - a.shape[1])))


def _pack_weights(params):
    """One lane-dense [_W_ROWS, 128] slab; every sub-weight left-aligned at lane 0."""
    sa, ca, ff = params["self_attn"], params["cross_attn"], params["ffn"]
    blocks = [
        jnp.concatenate([sa["wq"], sa["wk"], sa["wv"]], axis=1),   # [D, 3D] fused QKV
        sa["wo"],                                                  # [D, D]
        ca["wq"],                                                  # [D, D]
        jnp.concatenate([ca["wk"], ca["wv"]], axis=1),             # [D, 2D] fused KV
        ca["wo"],                                                  # [D, D]
        ff["w1"],                                                  # [D, F]
        ff["w2"],                                                  # [F, D]
    ]
    return jnp.concatenate([_pad128(b) for b in blocks], axis=0)   # [256, 128]


def _pack_biases(params):
    """One [_P_ROWS, 128] slab of biases + LayerNorm params, one logical row each."""
    sa, ca, ff = params["self_attn"], params["cross_attn"], params["ffn"]
    rows = [
        jnp.concatenate([sa["bq"], sa["bk"], sa["bv"]], axis=1),   # [1, 3D]
        sa["bo"], ca["bq"],
        jnp.concatenate([ca["bk"], ca["bv"]], axis=1),             # [1, 2D]
        ca["bo"], ff["b1"], ff["b2"],
        params["ln1_g"], params["ln1_b"], params["ln2_g"], params["ln2_b"],
        params["ln3_g"], params["ln3_b"], params["lnf_g"], params["lnf_b"],
    ]
    return jnp.concatenate([_pad128(r) for r in rows], axis=0)     # [15, 128]


def _block_diag_bias(mask):
    """[B, Tq, Tk] 1/0 mask -> [B*Tq, B*Tk] additive bias with cross-batch blocks masked."""
    B, Tq, Tk = mask.shape
    same_batch = jnp.eye(B, dtype=bool)[:, None, :, None]               # [B, 1, B, 1]
    allow = jnp.logical_and(same_batch, (mask > 0)[:, :, None, :])      # [B, Tq, B, Tk]
    return jnp.where(allow, 0.0, NEG_INF).astype(jnp.float32).reshape(B * Tq, B * Tk)


@functools.partial(jax.jit, static_argnames=("n_layer",))
def decoder_forward(tgt, encoder_out, tgt_mask, src_tgt_mask, params, n_layer=N_LAYER):
    B, T, D = tgt.shape
    S = encoder_out.shape[1]
    BT, BS = B * T, B * S

    tgt2d = tgt.reshape(BT, D)
    enc2d = encoder_out.reshape(BS, D)

    # additive (0 / -1e9) biases; batch isolation folded into the bias so the kernel never
    # loops or slices over batch.
    self_bias = _block_diag_bias(tgt_mask.reshape(B, T, T).astype(jnp.float32))
    cross_bias = _block_diag_bias(src_tgt_mask.reshape(B, T, S).astype(jnp.float32))

    w_slab = _pack_weights(params)    # [256, 128]
    p_slab = _pack_biases(params)     # [15, 128]

    kernel = functools.partial(_decoder_kernel, n_layer)
    vmem = lambda: pl.BlockSpec(memory_space=pltpu.MemorySpace.VMEM)
    out2d = pl.pallas_call(
        kernel,
        out_shape=jax.ShapeDtypeStruct((BT, D), tgt.dtype),
        in_specs=[vmem() for _ in range(6)],
        out_specs=vmem(),
    )(tgt2d, enc2d, self_bias, cross_bias, w_slab, p_slab)
    return out2d.reshape(B, T, D)


# ----------------------------------------------------------------------------
# Parameter init (one block's params, shared by every deep-copied layer)
# ----------------------------------------------------------------------------

def _init_linear(key, din, dout):
    k1, k2 = jax.random.split(key)
    bound = 1.0 / math.sqrt(din)
    w = jax.random.uniform(k1, (din, dout), jnp.float32, -bound, bound)
    b = jax.random.uniform(k2, (1, dout), jnp.float32, -bound, bound)
    return w, b


def init_params(key):
    ks = jax.random.split(key, 12)
    p = {}
    sa = {}
    sa["wq"], sa["bq"] = _init_linear(ks[0], D_MODEL, D_MODEL)
    sa["wk"], sa["bk"] = _init_linear(ks[1], D_MODEL, D_MODEL)
    sa["wv"], sa["bv"] = _init_linear(ks[2], D_MODEL, D_MODEL)
    sa["wo"], sa["bo"] = _init_linear(ks[3], D_MODEL, D_MODEL)
    p["self_attn"] = sa
    ca = {}
    ca["wq"], ca["bq"] = _init_linear(ks[4], D_MODEL, D_MODEL)
    ca["wk"], ca["bk"] = _init_linear(ks[5], D_MODEL, D_MODEL)
    ca["wv"], ca["bv"] = _init_linear(ks[6], D_MODEL, D_MODEL)
    ca["wo"], ca["bo"] = _init_linear(ks[7], D_MODEL, D_MODEL)
    p["cross_attn"] = ca
    ff = {}
    ff["w1"], ff["b1"] = _init_linear(ks[8], D_MODEL, D_FF)
    ff["w2"], ff["b2"] = _init_linear(ks[9], D_FF, D_MODEL)
    p["ffn"] = ff
    for name in ("ln1", "ln2", "ln3", "lnf"):
        p[name + "_g"] = jnp.ones((1, D_MODEL), jnp.float32)
        p[name + "_b"] = jnp.zeros((1, D_MODEL), jnp.float32)
    return p


if __name__ == "__main__":
    B, T, S = 2, 8, 12  # batch, target seq len, source seq len

    key = jax.random.PRNGKey(0)
    k_p, k_tgt, k_enc = jax.random.split(key, 3)

    params = init_params(k_p)
    tgt = jax.random.normal(k_tgt, (B, T, D_MODEL), jnp.float32)
    encoder_out = jax.random.normal(k_enc, (B, S, D_MODEL), jnp.float32)

    # causal target mask [B,1,T,T]; full source-target mask [B,1,T,S]
    tgt_mask = jnp.tile(jnp.tril(jnp.ones((T, T), jnp.float32))[None, None], (B, 1, 1, 1))
    src_tgt_mask = jnp.ones((B, 1, T, S), jnp.float32)

    out = decoder_forward(tgt, encoder_out, tgt_mask, src_tgt_mask, params)
    out = jax.block_until_ready(out)
    assert out.shape == (B, T, D_MODEL)
    print("KERNEL_OK")
</pallas_src>

<mosaic_0001>
module attributes {stable_mosaic.version = 11 : i64} {
  func.func @_decoder_kernel(%arg0: memref<16x32xf32, #tpu.memory_space<vmem>>, %arg1: memref<24x32xf32, #tpu.memory_space<vmem>>, %arg2: memref<16x16xf32, #tpu.memory_space<vmem>>, %arg3: memref<16x24xf32, #tpu.memory_space<vmem>>, %arg4: memref<256x128xf32, #tpu.memory_space<vmem>>, %arg5: memref<15x128xf32, #tpu.memory_space<vmem>>, %arg6: memref<16x32xf32, #tpu.memory_space<vmem>>) attributes {dimension_semantics = [], scalar_prefetch = 0 : i64, scratch_operands = 0 : i64, tpu.core_type = #tpu.core_type<tc>} {
    %c0 = arith.constant 0 : index
    %c0_0 = arith.constant 0 : index
    %0 = vector.load %arg0[%c0, %c0_0] : memref<16x32xf32, #tpu.memory_space<vmem>>, vector<16x32xf32>
    %c0_1 = arith.constant 0 : index
    %c0_2 = arith.constant 0 : index
    %1 = vector.load %arg1[%c0_1, %c0_2] : memref<24x32xf32, #tpu.memory_space<vmem>>, vector<24x32xf32>
    %c0_3 = arith.constant 0 : index
    %c0_4 = arith.constant 0 : index
    %2 = vector.load %arg2[%c0_3, %c0_4] : memref<16x16xf32, #tpu.memory_space<vmem>>, vector<16x16xf32>
    %c0_5 = arith.constant 0 : index
    %c0_6 = arith.constant 0 : index
    %3 = vector.load %arg3[%c0_5, %c0_6] : memref<16x24xf32, #tpu.memory_space<vmem>>, vector<16x24xf32>
    %c0_7 = arith.constant 0 : index
    %c0_8 = arith.constant 0 : index
    %4 = vector.load %arg5[%c0_7, %c0_8] : memref<15x128xf32, #tpu.memory_space<vmem>>, vector<15x128xf32>
    %5 = vector.extract_strided_slice %4 {offsets = [0, 0], sizes = [1, 96], strides = [1, 1]} : vector<15x128xf32> to vector<1x96xf32>
    %6 = vector.extract_strided_slice %4 {offsets = [1, 0], sizes = [1, 32], strides = [1, 1]} : vector<15x128xf32> to vector<1x32xf32>
    %7 = vector.extract_strided_slice %4 {offsets = [2, 0], sizes = [1, 32], strides = [1, 1]} : vector<15x128xf32> to vector<1x32xf32>
    %8 = vector.extract_strided_slice %4 {offsets = [3, 0], sizes = [1, 64], strides = [1, 1]} : vector<15x128xf32> to vector<1x64xf32>
    %9 = vector.extract_strided_slice %4 {offsets = [4, 0], sizes = [1, 32], strides = [1, 1]} : vector<15x128xf32> to vector<1x32xf32>
    %10 = vector.extract_strided_slice %4 {offsets = [5, 0], sizes = [1, 64], strides = [1, 1]} : vector<15x128xf32> to vector<1x64xf32>
    %11 = vector.extract_strided_slice %4 {offsets = [6, 0], sizes = [1, 32], strides = [1, 1]} : vector<15x128xf32> to vector<1x32xf32>
    %12 = vector.extract_strided_slice %4 {offsets = [7, 0], sizes = [1, 32], strides = [1, 1]} : vector<15x128xf32> to vector<1x32xf32>
    %13 = vector.extract_strided_slice %4 {offsets = [8, 0], sizes = [1, 32], strides = [1, 1]} : vector<15x128xf32> to vector<1x32xf32>
    %14 = vector.extract_strided_slice %4 {offsets = [9, 0], sizes = [1, 32], strides = [1, 1]} : vector<15x128xf32> to vector<1x32xf32>
    %15 = vector.extract_strided_slice %4 {offsets = [10, 0], sizes = [1, 32], strides = [1, 1]} : vector<15x128xf32> to vector<1x32xf32>
    %16 = vector.extract_strided_slice %4 {offsets = [11, 0], sizes = [1, 32], strides = [1, 1]} : vector<15x128xf32> to vector<1x32xf32>
    %17 = vector.extract_strided_slice %4 {offsets = [12, 0], sizes = [1, 32], strides = [1, 1]} : vector<15x128xf32> to vector<1x32xf32>
    %18 = vector.extract_strided_slice %4 {offsets = [13, 0], sizes = [1, 32], strides = [1, 1]} : vector<15x128xf32> to vector<1x32xf32>
    %19 = vector.extract_strided_slice %4 {offsets = [14, 0], sizes = [1, 32], strides = [1, 1]} : vector<15x128xf32> to vector<1x32xf32>
    %20 = tpu.iota {dimensions = array<i32: 2>} : vector<4x1x32xi32>
    %21 = tpu.iota {dimensions = array<i32: 0>} : vector<4x1x32xi32>
    %c8_i32 = arith.constant 8 : i32
    %22 = vector.broadcast %c8_i32 : i32 to vector<4x1x32xi32>
    %23 = arith.muli %21, %22 : vector<4x1x32xi32>
    %24 = arith.cmpi sge, %20, %23 : vector<4x1x32xi32>
    %c8_i32_9 = arith.constant 8 : i32
    %25 = vector.broadcast %c8_i32_9 : i32 to vector<4x1x32xi32>
    %26 = arith.addi %23, %25 : vector<4x1x32xi32>
    %27 = arith.cmpi slt, %20, %26 : vector<4x1x32xi32>
    %28 = arith.andi %24, %27 : vector<4x1x32xi1>
    %29 = arith.extui %28 : vector<4x1x32xi1> to vector<4x1x32xi32>
    %30 = arith.sitofp %29 : vector<4x1x32xi32> to vector<4x1x32xf32>
    %cst = arith.constant 0.353553385 : f32
    %31 = vector.broadcast %cst : f32 to vector<4x1x32xf32>
    %32 = arith.mulf %30, %31 : vector<4x1x32xf32>
    %c96 = arith.constant 96 : index
    %c0_10 = arith.constant 0 : index
    %33 = vector.load %arg4[%c96, %c0_10] : memref<256x128xf32, #tpu.memory_space<vmem>>, vector<32x64xf32>
    %cst_11 = arith.constant dense<0.000000e+00> : vector<24x64xf32>
    %34 = tpu.matmul %1, %33, %cst_11 {dimension_numbers = #tpu.dot_dimension_numbers<[1], [0], [0], [1], [0, 0, 1, 1], [], []>} : vector<24x32xf32>, vector<32x64xf32>, vector<24x64xf32> -> vector<24x64xf32>
    %35 = vector.broadcast %8 : vector<1x64xf32> to vector<24x64xf32>
    %36 = arith.addf %34, %35 : vector<24x64xf32>
    %37 = vector.extract_strided_slice %36 {offsets = [0, 0], sizes = [24, 32], strides = [1, 1]} : vector<24x64xf32> to vector<24x32xf32>
    %38 = vector.shape_cast %37 : vector<24x32xf32> to vector<1x24x32xf32>
    %39 = vector.shape_cast %38 : vector<1x24x32xf32> to vector<1x24x32xf32>
    %40 = vector.broadcast %39 : vector<1x24x32xf32> to vector<4x24x32xf32>
    %41 = vector.extract_strided_slice %36 {offsets = [0, 32], sizes = [24, 32], strides = [1, 1]} : vector<24x64xf32> to vector<24x32xf32>
    %42 = vector.shape_cast %41 : vector<24x32xf32> to vector<1x24x32xf32>
    %43 = vector.shape_cast %42 : vector<1x24x32xf32> to vector<1x24x32xf32>
    %44 = vector.broadcast %43 : vector<1x24x32xf32> to vector<4x24x32xf32>
    %cst_12 = arith.constant dense<0.000000e+00> : vector<16xf32>
    %45 = vector.multi_reduction <add>, %0, %cst_12 [1] : vector<16x32xf32> to vector<16xf32>
    %46 = vector.shape_cast %45 : vector<16xf32> to vector<16x1xf32>
    %cst_13 = arith.constant 3.200000e+01 : f32
    %47 = vector.broadcast %cst_13 : f32 to vector<16x1xf32>
    %48 = arith.divf %46, %47 : vector<16x1xf32>
    %49 = vector.broadcast %48 : vector<16x1xf32> to vector<16x32xf32>
    %50 = arith.subf %0, %49 : vector<16x32xf32>
    %51 = arith.mulf %50, %50 : vector<16x32xf32>
    %cst_14 = arith.constant dense<0.000000e+00> : vector<16xf32>
    %52 = vector.multi_reduction <add>, %51, %cst_14 [1] : vector<16x32xf32> to vector<16xf32>
    %53 = vector.shape_cast %52 : vector<16xf32> to vector<16x1xf32>
    %cst_15 = arith.constant 3.200000e+01 : f32
    %54 = vector.broadcast %cst_15 : f32 to vector<16x1xf32>
    %55 = arith.divf %53, %54 : vector<16x1xf32>
    %cst_16 = arith.constant 9.99999974E-6 : f32
    %56 = vector.broadcast %cst_16 : f32 to vector<16x1xf32>
    %57 = arith.addf %55, %56 : vector<16x1xf32>
    %58 = math.rsqrt %57 : vector<16x1xf32>
    %59 = vector.broadcast %58 : vector<16x1xf32> to vector<16x32xf32>
    %60 = arith.mulf %50, %59 : vector<16x32xf32>
    %61 = vector.broadcast %12 : vector<1x32xf32> to vector<16x32xf32>
    %62 = arith.mulf %60, %61 : vector<16x32xf32>
    %63 = vector.broadcast %13 : vector<1x32xf32> to vector<16x32xf32>
    %64 = arith.addf %62, %63 : vector<16x32xf32>
    %c0_17 = arith.constant 0 : index
    %c0_18 = arith.constant 0 : index
    %65 = vector.load %arg4[%c0_17, %c0_18] : memref<256x128xf32, #tpu.memory_space<vmem>>, vector<32x96xf32>
    %cst_19 = arith.constant dense<0.000000e+00> : vector<16x96xf32>
    %66 = tpu.matmul %64, %65, %cst_19 {dimension_numbers = #tpu.dot_dimension_numbers<[1], [0], [0], [1], [0, 0, 1, 1], [], []>} : vector<16x32xf32>, vector<32x96xf32>, vector<16x96xf32> -> vector<16x96xf32>
    %67 = vector.broadcast %5 : vector<1x96xf32> to vector<16x96xf32>
    %68 = arith.addf %66, %67 : vector<16x96xf32>
    %69 = vector.extract_strided_slice %68 {offsets = [0, 32], sizes = [16, 32], strides = [1, 1]} : vector<16x96xf32> to vector<16x32xf32>
    %70 = vector.shape_cast %69 : vector<16x32xf32> to vector<1x16x32xf32>
    %71 = vector.shape_cast %70 : vector<1x16x32xf32> to vector<1x16x32xf32>
    %72 = vector.broadcast %71 : vector<1x16x32xf32> to vector<4x16x32xf32>
    %73 = vector.extract_strided_slice %68 {offsets = [0, 64], sizes = [16, 32], strides = [1, 1]} : vector<16x96xf32> to vector<16x32xf32>
    %74 = vector.shape_cast %73 : vector<16x32xf32> to vector<1x16x32xf32>
    %75 = vector.shape_cast %74 : vector<1x16x32xf32> to vector<1x16x32xf32>
    %76 = vector.broadcast %75 : vector<1x16x32xf32> to vector<4x16x32xf32>
    %77 = vector.extract_strided_slice %68 {offsets = [0, 0], sizes = [16, 32], strides = [1, 1]} : vector<16x96xf32> to vector<16x32xf32>
    %c32 = arith.constant 32 : index
    %c0_20 = arith.constant 0 : index
    %78 = vector.load %arg4[%c32, %c0_20] : memref<256x128xf32, #tpu.memory_space<vmem>>, vector<32x32xf32>
    %79 = vector.shape_cast %77 : vector<16x32xf32> to vector<1x16x32xf32>
    %80 = vector.broadcast %79 : vector<1x16x32xf32> to vector<4x16x32xf32>
    %81 = vector.broadcast %32 : vector<4x1x32xf32> to vector<4x16x32xf32>
    %82 = arith.mulf %80, %81 : vector<4x16x32xf32>
    %cst_21 = arith.constant dense<0.000000e+00> : vector<4x16x16xf32>
    %83 = tpu.matmul %82, %72, %cst_21 {dimension_numbers = #tpu.dot_dimension_numbers<[2], [2], [1], [1], [0, 0, 0, 1, 1, 1], [0], [0]>} : vector<4x16x32xf32>, vector<4x16x32xf32>, vector<4x16x16xf32> -> vector<4x16x16xf32>
    %84 = vector.shape_cast %2 : vector<16x16xf32> to vector<1x16x16xf32>
    %85 = vector.broadcast %84 : vector<1x16x16xf32> to vector<4x16x16xf32>
    %86 = arith.addf %83, %85 : vector<4x16x16xf32>
    %cst_22 = arith.constant dense<0xFF800000> : vector<4x16xf32>
    %87 = vector.multi_reduction <maximumf>, %86, %cst_22 [2] : vector<4x16x16xf32> to vector<4x16xf32>
    %88 = vector.shape_cast %87 : vector<4x16xf32> to vector<4x16x1xf32>
    %89 = vector.broadcast %88 : vector<4x16x1xf32> to vector<4x16x16xf32>
    %90 = arith.subf %86, %89 : vector<4x16x16xf32>
    %91 = math.exp %90 : vector<4x16x16xf32>
    %cst_23 = arith.constant dense<0.000000e+00> : vector<4x16xf32>
    %92 = vector.multi_reduction <add>, %91, %cst_23 [2] : vector<4x16x16xf32> to vector<4x16xf32>
    %93 = vector.shape_cast %92 : vector<4x16xf32> to vector<4x16x1xf32>
    %94 = tpu.reciprocal %93 {approx = true} : vector<4x16x1xf32> -> vector<4x16x1xf32>
    %95 = vector.broadcast %94 : vector<4x16x1xf32> to vector<4x16x16xf32>
    %96 = arith.mulf %91, %95 : vector<4x16x16xf32>
    %cst_24 = arith.constant dense<0.000000e+00> : vector<4x16x32xf32>
    %97 = tpu.matmul %96, %76, %cst_24 {dimension_numbers = #tpu.dot_dimension_numbers<[2], [1], [1], [2], [0, 0, 0, 1, 1, 2], [0], [0]>} : vector<4x16x16xf32>, vector<4x16x32xf32>, vector<4x16x32xf32> -> vector<4x16x32xf32>
    %98 = vector.broadcast %30 : vector<4x1x32xf32> to vector<4x16x32xf32>
    %99 = arith.mulf %97, %98 : vector<4x16x32xf32>
    %cst_25 = arith.constant dense<0.000000e+00> : vector<16x32xf32>
    %100 = vector.multi_reduction <add>, %99, %cst_25 [0] : vector<4x16x32xf32> to vector<16x32xf32>
    %cst_26 = arith.constant dense<0.000000e+00> : vector<16x32xf32>
    %101 = tpu.matmul %100, %78, %cst_26 {dimension_numbers = #tpu.dot_dimension_numbers<[1], [0], [0], [1], [0, 0, 1, 1], [], []>} : vector<16x32xf32>, vector<32x32xf32>, vector<16x32xf32> -> vector<16x32xf32>
    %102 = vector.broadcast %6 : vector<1x32xf32> to vector<16x32xf32>
    %103 = arith.addf %101, %102 : vector<16x32xf32>
    %104 = arith.addf %0, %103 : vector<16x32xf32>
    %cst_27 = arith.constant dense<0.000000e+00> : vector<16xf32>
    %105 = vector.multi_reduction <add>, %104, %cst_27 [1] : vector<16x32xf32> to vector<16xf32>
    %106 = vector.shape_cast %105 : vector<16xf32> to vector<16x1xf32>
    %cst_28 = arith.constant 3.200000e+01 : f32
    %107 = vector.broadcast %cst_28 : f32 to vector<16x1xf32>
    %108 = arith.divf %106, %107 : vector<16x1xf32>
    %109 = vector.broadcast %108 : vector<16x1xf32> to vector<16x32xf32>
    %110 = arith.subf %104, %109 : vector<16x32xf32>
    %111 = arith.mulf %110, %110 : vector<16x32xf32>
    %cst_29 = arith.constant dense<0.000000e+00> : vector<16xf32>
    %112 = vector.multi_reduction <add>, %111, %cst_29 [1] : vector<16x32xf32> to vector<16xf32>
    %113 = vector.shape_cast %112 : vector<16xf32> to vector<16x1xf32>
    %cst_30 = arith.constant 3.200000e+01 : f32
    %114 = vector.broadcast %cst_30 : f32 to vector<16x1xf32>
    %115 = arith.divf %113, %114 : vector<16x1xf32>
    %cst_31 = arith.constant 9.99999974E-6 : f32
    %116 = vector.broadcast %cst_31 : f32 to vector<16x1xf32>
    %117 = arith.addf %115, %116 : vector<16x1xf32>
    %118 = math.rsqrt %117 : vector<16x1xf32>
    %119 = vector.broadcast %118 : vector<16x1xf32> to vector<16x32xf32>
    %120 = arith.mulf %110, %119 : vector<16x32xf32>
    %121 = vector.broadcast %14 : vector<1x32xf32> to vector<16x32xf32>
    %122 = arith.mulf %120, %121 : vector<16x32xf32>
    %123 = vector.broadcast %15 : vector<1x32xf32> to vector<16x32xf32>
    %124 = arith.addf %122, %123 : vector<16x32xf32>
    %c64 = arith.constant 64 : index
    %c0_32 = arith.constant 0 : index
    %125 = vector.load %arg4[%c64, %c0_32] : memref<256x128xf32, #tpu.memory_space<vmem>>, vector<32x32xf32>
    %cst_33 = arith.constant dense<0.000000e+00> : vector<16x32xf32>
    %126 = tpu.matmul %124, %125, %cst_33 {dimension_numbers = #tpu.dot_dimension_numbers<[1], [0], [0], [1], [0, 0, 1, 1], [], []>} : vector<16x32xf32>, vector<32x32xf32>, vector<16x32xf32> -> vector<16x32xf32>
    %127 = vector.broadcast %7 : vector<1x32xf32> to vector<16x32xf32>
    %128 = arith.addf %126, %127 : vector<16x32xf32>
    %c128 = arith.constant 128 : index
    %c0_34 = arith.constant 0 : index
    %129 = vector.load %arg4[%c128, %c0_34] : memref<256x128xf32, #tpu.memory_space<vmem>>, vector<32x32xf32>
    %130 = vector.shape_cast %128 : vector<16x32xf32> to vector<1x16x32xf32>
    %131 = vector.broadcast %130 : vector<1x16x32xf32> to vector<4x16x32xf32>
    %132 = vector.broadcast %32 : vector<4x1x32xf32> to vector<4x16x32xf32>
    %133 = arith.mulf %131, %132 : vector<4x16x32xf32>
    %cst_35 = arith.constant dense<0.000000e+00> : vector<4x16x24xf32>
    %134 = tpu.matmul %133, %40, %cst_35 {dimension_numbers = #tpu.dot_dimension_numbers<[2], [2], [1], [1], [0, 0, 0, 1, 1, 1], [0], [0]>} : vector<4x16x32xf32>, vector<4x24x32xf32>, vector<4x16x24xf32> -> vector<4x16x24xf32>
    %135 = vector.shape_cast %3 : vector<16x24xf32> to vector<1x16x24xf32>
    %136 = vector.broadcast %135 : vector<1x16x24xf32> to vector<4x16x24xf32>
    %137 = arith.addf %134, %136 : vector<4x16x24xf32>
    %cst_36 = arith.constant dense<0xFF800000> : vector<4x16xf32>
    %138 = vector.multi_reduction <maximumf>, %137, %cst_36 [2] : vector<4x16x24xf32> to vector<4x16xf32>
    %139 = vector.shape_cast %138 : vector<4x16xf32> to vector<4x16x1xf32>
    %140 = vector.broadcast %139 : vector<4x16x1xf32> to vector<4x16x24xf32>
    %141 = arith.subf %137, %140 : vector<4x16x24xf32>
    %142 = math.exp %141 : vector<4x16x24xf32>
    %cst_37 = arith.constant dense<0.000000e+00> : vector<4x16xf32>
    %143 = vector.multi_reduction <add>, %142, %cst_37 [2] : vector<4x16x24xf32> to vector<4x16xf32>
    %144 = vector.shape_cast %143 : vector<4x16xf32> to vector<4x16x1xf32>
    %145 = tpu.reciprocal %144 {approx = true} : vector<4x16x1xf32> -> vector<4x16x1xf32>
    %146 = vector.broadcast %145 : vector<4x16x1xf32> to vector<4x16x24xf32>
    %147 = arith.mulf %142, %146 : vector<4x16x24xf32>
    %cst_38 = arith.constant dense<0.000000e+00> : vector<4x16x32xf32>
    %148 = tpu.matmul %147, %44, %cst_38 {dimension_numbers = #tpu.dot_dimension_numbers<[2], [1], [1], [2], [0, 0, 0, 1, 1, 2], [0], [0]>} : vector<4x16x24xf32>, vector<4x24x32xf32>, vector<4x16x32xf32> -> vector<4x16x32xf32>
    %149 = vector.broadcast %30 : vector<4x1x32xf32> to vector<4x16x32xf32>
    %150 = arith.mulf %148, %149 : vector<4x16x32xf32>
    %cst_39 = arith.constant dense<0.000000e+00> : vector<16x32xf32>
    %151 = vector.multi_reduction <add>, %150, %cst_39 [0] : vector<4x16x32xf32> to vector<16x32xf32>
    %cst_40 = arith.constant dense<0.000000e+00> : vector<16x32xf32>
    %152 = tpu.matmul %151, %129, %cst_40 {dimension_numbers = #tpu.dot_dimension_numbers<[1], [0], [0], [1], [0, 0, 1, 1], [], []>} : vector<16x32xf32>, vector<32x32xf32>, vector<16x32xf32> -> vector<16x32xf32>
    %153 = vector.broadcast %9 : vector<1x32xf32> to vector<16x32xf32>
    %154 = arith.addf %152, %153 : vector<16x32xf32>
    %155 = arith.addf %104, %154 : vector<16x32xf32>
    %cst_41 = arith.constant dense<0.000000e+00> : vector<16xf32>
    %156 = vector.multi_reduction <add>, %155, %cst_41 [1] : vector<16x32xf32> to vector<16xf32>
    %157 = vector.shape_cast %156 : vector<16xf32> to vector<16x1xf32>
    %cst_42 = arith.constant 3.200000e+01 : f32
    %158 = vector.broadcast %cst_42 : f32 to vector<16x1xf32>
    %159 = arith.divf %157, %158 : vector<16x1xf32>
    %160 = vector.broadcast %159 : vector<16x1xf32> to vector<16x32xf32>
    %161 = arith.subf %155, %160 : vector<16x32xf32>
    %162 = arith.mulf %161, %161 : vector<16x32xf32>
    %cst_43 = arith.constant dense<0.000000e+00> : vector<16xf32>
    %163 = vector.multi_reduction <add>, %162, %cst_43 [1] : vector<16x32xf32> to vector<16xf32>
    %164 = vector.shape_cast %163 : vector<16xf32> to vector<16x1xf32>
    %cst_44 = arith.constant 3.200000e+01 : f32
    %165 = vector.broadcast %cst_44 : f32 to vector<16x1xf32>
    %166 = arith.divf %164, %165 : vector<16x1xf32>
    %cst_45 = arith.constant 9.99999974E-6 : f32
    %167 = vector.broadcast %cst_45 : f32 to vector<16x1xf32>
    %168 = arith.addf %166, %167 : vector<16x1xf32>
    %169 = math.rsqrt %168 : vector<16x1xf32>
    %170 = vector.broadcast %169 : vector<16x1xf32> to vector<16x32xf32>
    %171 = arith.mulf %161, %170 : vector<16x32xf32>
    %172 = vector.broadcast %16 : vector<1x32xf32> to vector<16x32xf32>
    %173 = arith.mulf %171, %172 : vector<16x32xf32>
    %174 = vector.broadcast %17 : vector<1x32xf32> to vector<16x32xf32>
    %175 = arith.addf %173, %174 : vector<16x32xf32>
    %c160 = arith.constant 160 : index
    %c0_46 = arith.constant 0 : index
    %176 = vector.load %arg4[%c160, %c0_46] : memref<256x128xf32, #tpu.memory_space<vmem>>, vector<32x64xf32>
    %cst_47 = arith.constant dense<0.000000e+00> : vector<16x64xf32>
    %177 = tpu.matmul %175, %176, %cst_47 {dimension_numbers = #tpu.dot_dimension_numbers<[1], [0], [0], [1], [0, 0, 1, 1], [], []>} : vector<16x32xf32>, vector<32x64xf32>, vector<16x64xf32> -> vector<16x64xf32>
    %178 = vector.broadcast %10 : vector<1x64xf32> to vector<16x64xf32>
    %179 = arith.addf %177, %178 : vector<16x64xf32>
    %cst_48 = arith.constant 0.000000e+00 : f32
    %180 = vector.broadcast %cst_48 : f32 to vector<16x64xf32>
    %181 = arith.maximumf %179, %180 : vector<16x64xf32>
    %c192 = arith.constant 192 : index
    %c0_49 = arith.constant 0 : index
    %182 = vector.load %arg4[%c192, %c0_49] : memref<256x128xf32, #tpu.memory_space<vmem>>, vector<64x32xf32>
    %cst_50 = arith.constant dense<0.000000e+00> : vector<16x32xf32>
    %183 = tpu.matmul %181, %182, %cst_50 {dimension_numbers = #tpu.dot_dimension_numbers<[1], [0], [0], [1], [0, 0, 1, 1], [], []>} : vector<16x64xf32>, vector<64x32xf32>, vector<16x32xf32> -> vector<16x32xf32>
    %184 = arith.addf %155, %183 : vector<16x32xf32>
    %185 = vector.broadcast %11 : vector<1x32xf32> to vector<16x32xf32>
    %186 = arith.addf %184, %185 : vector<16x32xf32>
    %cst_51 = arith.constant dense<0.000000e+00> : vector<16xf32>
    %187 = vector.multi_reduction <add>, %186, %cst_51 [1] : vector<16x32xf32> to vector<16xf32>
    %188 = vector.shape_cast %187 : vector<16xf32> to vector<16x1xf32>
    %cst_52 = arith.constant 3.200000e+01 : f32
    %189 = vector.broadcast %cst_52 : f32 to vector<16x1xf32>
    %190 = arith.divf %188, %189 : vector<16x1xf32>
    %191 = vector.broadcast %190 : vector<16x1xf32> to vector<16x32xf32>
    %192 = arith.subf %186, %191 : vector<16x32xf32>
    %193 = arith.mulf %192, %192 : vector<16x32xf32>
    %cst_53 = arith.constant dense<0.000000e+00> : vector<16xf32>
    %194 = vector.multi_reduction <add>, %193, %cst_53 [1] : vector<16x32xf32> to vector<16xf32>
    %195 = vector.shape_cast %194 : vector<16xf32> to vector<16x1xf32>
    %cst_54 = arith.constant 3.200000e+01 : f32
    %196 = vector.broadcast %cst_54 : f32 to vector<16x1xf32>
    %197 = arith.divf %195, %196 : vector<16x1xf32>
    %cst_55 = arith.constant 9.99999974E-6 : f32
    %198 = vector.broadcast %cst_55 : f32 to vector<16x1xf32>
    %199 = arith.addf %197, %198 : vector<16x1xf32>
    %200 = math.rsqrt %199 : vector<16x1xf32>
    %201 = vector.broadcast %200 : vector<16x1xf32> to vector<16x32xf32>
    %202 = arith.mulf %192, %201 : vector<16x32xf32>
    %203 = vector.broadcast %12 : vector<1x32xf32> to vector<16x32xf32>
    %204 = arith.mulf %202, %203 : vector<16x32xf32>
    %205 = vector.broadcast %13 : vector<1x32xf32> to vector<16x32xf32>
    %206 = arith.addf %204, %205 : vector<16x32xf32>
    %c0_56 = arith.constant 0 : index
    %c0_57 = arith.constant 0 : index
    %207 = vector.load %arg4[%c0_56, %c0_57] : memref<256x128xf32, #tpu.memory_space<vmem>>, vector<32x96xf32>
    %cst_58 = arith.constant dense<0.000000e+00> : vector<16x96xf32>
    %208 = tpu.matmul %206, %207, %cst_58 {dimension_numbers = #tpu.dot_dimension_numbers<[1], [0], [0], [1], [0, 0, 1, 1], [], []>} : vector<16x32xf32>, vector<32x96xf32>, vector<16x96xf32> -> vector<16x96xf32>
    %209 = vector.broadcast %5 : vector<1x96xf32> to vector<16x96xf32>
    %210 = arith.addf %208, %209 : vector<16x96xf32>
    %211 = vector.extract_strided_slice %210 {offsets = [0, 32], sizes = [16, 32], strides = [1, 1]} : vector<16x96xf32> to vector<16x32xf32>
    %212 = vector.shape_cast %211 : vector<16x32xf32> to vector<1x16x32xf32>
    %213 = vector.shape_cast %212 : vector<1x16x32xf32> to vector<1x16x32xf32>
    %214 = vector.broadcast %213 : vector<1x16x32xf32> to vector<4x16x32xf32>
    %215 = vector.extract_strided_slice %210 {offsets = [0, 64], sizes = [16, 32], strides = [1, 1]} : vector<16x96xf32> to vector<16x32xf32>
    %216 = vector.shape_cast %215 : vector<16x32xf32> to vector<1x16x32xf32>
    %217 = vector.shape_cast %216 : vector<1x16x32xf32> to vector<1x16x32xf32>
    %218 = vector.broadcast %217 : vector<1x16x32xf32> to vector<4x16x32xf32>
    %219 = vector.extract_strided_slice %210 {offsets = [0, 0], sizes = [16, 32], strides = [1, 1]} : vector<16x96xf32> to vector<16x32xf32>
    %c32_59 = arith.constant 32 : index
    %c0_60 = arith.constant 0 : index
    %220 = vector.load %arg4[%c32_59, %c0_60] : memref<256x128xf32, #tpu.memory_space<vmem>>, vector<32x32xf32>
    %221 = vector.shape_cast %219 : vector<16x32xf32> to vector<1x16x32xf32>
    %222 = vector.broadcast %221 : vector<1x16x32xf32> to vector<4x16x32xf32>
    %223 = vector.broadcast %32 : vector<4x1x32xf32> to vector<4x16x32xf32>
    %224 = arith.mulf %222, %223 : vector<4x16x32xf32>
    %cst_61 = arith.constant dense<0.000000e+00> : vector<4x16x16xf32>
    %225 = tpu.matmul %224, %214, %cst_61 {dimension_numbers = #tpu.dot_dimension_numbers<[2], [2], [1], [1], [0, 0, 0, 1, 1, 1], [0], [0]>} : vector<4x16x32xf32>, vector<4x16x32xf32>, vector<4x16x16xf32> -> vector<4x16x16xf32>
    %226 = vector.shape_cast %2 : vector<16x16xf32> to vector<1x16x16xf32>
    %227 = vector.broadcast %226 : vector<1x16x16xf32> to vector<4x16x16xf32>
    %228 = arith.addf %225, %227 : vector<4x16x16xf32>
    %cst_62 = arith.constant dense<0xFF800000> : vector<4x16xf32>
    %229 = vector.multi_reduction <maximumf>, %228, %cst_62 [2] : vector<4x16x16xf32> to vector<4x16xf32>
    %230 = vector.shape_cast %229 : vector<4x16xf32> to vector<4x16x1xf32>
    %231 = vector.broadcast %230 : vector<4x16x1xf32> to vector<4x16x16xf32>
    %232 = arith.subf %228, %231 : vector<4x16x16xf32>
    %233 = math.exp %232 : vector<4x16x16xf32>
    %cst_63 = arith.constant dense<0.000000e+00> : vector<4x16xf32>
    %234 = vector.multi_reduction <add>, %233, %cst_63 [2] : vector<4x16x16xf32> to vector<4x16xf32>
    %235 = vector.shape_cast %234 : vector<4x16xf32> to vector<4x16x1xf32>
    %236 = tpu.reciprocal %235 {approx = true} : vector<4x16x1xf32> -> vector<4x16x1xf32>
    %237 = vector.broadcast %236 : vector<4x16x1xf32> to vector<4x16x16xf32>
    %238 = arith.mulf %233, %237 : vector<4x16x16xf32>
    %cst_64 = arith.constant dense<0.000000e+00> : vector<4x16x32xf32>
    %239 = tpu.matmul %238, %218, %cst_64 {dimension_numbers = #tpu.dot_dimension_numbers<[2], [1], [1], [2], [0, 0, 0, 1, 1, 2], [0], [0]>} : vector<4x16x16xf32>, vector<4x16x32xf32>, vector<4x16x32xf32> -> vector<4x16x32xf32>
    %240 = vector.broadcast %30 : vector<4x1x32xf32> to vector<4x16x32xf32>
    %241 = arith.mulf %239, %240 : vector<4x16x32xf32>
    %cst_65 = arith.constant dense<0.000000e+00> : vector<16x32xf32>
    %242 = vector.multi_reduction <add>, %241, %cst_65 [0] : vector<4x16x32xf32> to vector<16x32xf32>
    %cst_66 = arith.constant dense<0.000000e+00> : vector<16x32xf32>
    %243 = tpu.matmul %242, %220, %cst_66 {dimension_numbers = #tpu.dot_dimension_numbers<[1], [0], [0], [1], [0, 0, 1, 1], [], []>} : vector<16x32xf32>, vector<32x32xf32>, vector<16x32xf32> -> vector<16x32xf32>
    %244 = vector.broadcast %6 : vector<1x32xf32> to vector<16x32xf32>
    %245 = arith.addf %243, %244 : vector<16x32xf32>
    %246 = arith.addf %186, %245 : vector<16x32xf32>
    %cst_67 = arith.constant dense<0.000000e+00> : vector<16xf32>
    %247 = vector.multi_reduction <add>, %246, %cst_67 [1] : vector<16x32xf32> to vector<16xf32>
    %248 = vector.shape_cast %247 : vector<16xf32> to vector<16x1xf32>
    %cst_68 = arith.constant 3.200000e+01 : f32
    %249 = vector.broadcast %cst_68 : f32 to vector<16x1xf32>
    %250 = arith.divf %248, %249 : vector<16x1xf32>
    %251 = vector.broadcast %250 : vector<16x1xf32> to vector<16x32xf32>
    %252 = arith.subf %246, %251 : vector<16x32xf32>
    %253 = arith.mulf %252, %252 : vector<16x32xf32>
    %cst_69 = arith.constant dense<0.000000e+00> : vector<16xf32>
    %254 = vector.multi_reduction <add>, %253, %cst_69 [1] : vector<16x32xf32> to vector<16xf32>
    %255 = vector.shape_cast %254 : vector<16xf32> to vector<16x1xf32>
    %cst_70 = arith.constant 3.200000e+01 : f32
    %256 = vector.broadcast %cst_70 : f32 to vector<16x1xf32>
    %257 = arith.divf %255, %256 : vector<16x1xf32>
    %cst_71 = arith.constant 9.99999974E-6 : f32
    %258 = vector.broadcast %cst_71 : f32 to vector<16x1xf32>
    %259 = arith.addf %257, %258 : vector<16x1xf32>
    %260 = math.rsqrt %259 : vector<16x1xf32>
    %261 = vector.broadcast %260 : vector<16x1xf32> to vector<16x32xf32>
    %262 = arith.mulf %252, %261 : vector<16x32xf32>
    %263 = vector.broadcast %14 : vector<1x32xf32> to vector<16x32xf32>
    %264 = arith.mulf %262, %263 : vector<16x32xf32>
    %265 = vector.broadcast %15 : vector<1x32xf32> to vector<16x32xf32>
    %266 = arith.addf %264, %265 : vector<16x32xf32>
    %c64_72 = arith.constant 64 : index
    %c0_73 = arith.constant 0 : index
    %267 = vector.load %arg4[%c64_72, %c0_73] : memref<256x128xf32, #tpu.memory_space<vmem>>, vector<32x32xf32>
    %cst_74 = arith.constant dense<0.000000e+00> : vector<16x32xf32>
    %268 = tpu.matmul %266, %267, %cst_74 {dimension_numbers = #tpu.dot_dimension_numbers<[1], [0], [0], [1], [0, 0, 1, 1], [], []>} : vector<16x32xf32>, vector<32x32xf32>, vector<16x32xf32> -> vector<16x32xf32>
    %269 = vector.broadcast %7 : vector<1x32xf32> to vector<16x32xf32>
    %270 = arith.addf %268, %269 : vector<16x32xf32>
    %c128_75 = arith.constant 128 : index
    %c0_76 = arith.constant 0 : index
    %271 = vector.load %arg4[%c128_75, %c0_76] : memref<256x128xf32, #tpu.memory_space<vmem>>, vector<32x32xf32>
    %272 = vector.shape_cast %270 : vector<16x32xf32> to vector<1x16x32xf32>
    %273 = vector.broadcast %272 : vector<1x16x32xf32> to vector<4x16x32xf32>
    %274 = vector.broadcast %32 : vector<4x1x32xf32> to vector<4x16x32xf32>
    %275 = arith.mulf %273, %274 : vector<4x16x32xf32>
    %cst_77 = arith.constant dense<0.000000e+00> : vector<4x16x24xf32>
    %276 = tpu.matmul %275, %40, %cst_77 {dimension_numbers = #tpu.dot_dimension_numbers<[2], [2], [1], [1], [0, 0, 0, 1, 1, 1], [0], [0]>} : vector<4x16x32xf32>, vector<4x24x32xf32>, vector<4x16x24xf32> -> vector<4x16x24xf32>
    %277 = vector.shape_cast %3 : vector<16x24xf32> to vector<1x16x24xf32>
    %278 = vector.broadcast %277 : vector<1x16x24xf32> to vector<4x16x24xf32>
    %279 = arith.addf %276, %278 : vector<4x16x24xf32>
    %cst_78 = arith.constant dense<0xFF800000> : vector<4x16xf32>
    %280 = vector.multi_reduction <maximumf>, %279, %cst_78 [2] : vector<4x16x24xf32> to vector<4x16xf32>
    %281 = vector.shape_cast %280 : vector<4x16xf32> to vector<4x16x1xf32>
    %282 = vector.broadcast %281 : vector<4x16x1xf32> to vector<4x16x24xf32>
    %283 = arith.subf %279, %282 : vector<4x16x24xf32>
    %284 = math.exp %283 : vector<4x16x24xf32>
    %cst_79 = arith.constant dense<0.000000e+00> : vector<4x16xf32>
    %285 = vector.multi_reduction <add>, %284, %cst_79 [2] : vector<4x16x24xf32> to vector<4x16xf32>
    %286 = vector.shape_cast %285 : vector<4x16xf32> to vector<4x16x1xf32>
    %287 = tpu.reciprocal %286 {approx = true} : vector<4x16x1xf32> -> vector<4x16x1xf32>
    %288 = vector.broadcast %287 : vector<4x16x1xf32> to vector<4x16x24xf32>
    %289 = arith.mulf %284, %288 : vector<4x16x24xf32>
    %cst_80 = arith.constant dense<0.000000e+00> : vector<4x16x32xf32>
    %290 = tpu.matmul %289, %44, %cst_80 {dimension_numbers = #tpu.dot_dimension_numbers<[2], [1], [1], [2], [0, 0, 0, 1, 1, 2], [0], [0]>} : vector<4x16x24xf32>, vector<4x24x32xf32>, vector<4x16x32xf32> -> vector<4x16x32xf32>
    %291 = vector.broadcast %30 : vector<4x1x32xf32> to vector<4x16x32xf32>
    %292 = arith.mulf %290, %291 : vector<4x16x32xf32>
    %cst_81 = arith.constant dense<0.000000e+00> : vector<16x32xf32>
    %293 = vector.multi_reduction <add>, %292, %cst_81 [0] : vector<4x16x32xf32> to vector<16x32xf32>
    %cst_82 = arith.constant dense<0.000000e+00> : vector<16x32xf32>
    %294 = tpu.matmul %293, %271, %cst_82 {dimension_numbers = #tpu.dot_dimension_numbers<[1], [0], [0], [1], [0, 0, 1, 1], [], []>} : vector<16x32xf32>, vector<32x32xf32>, vector<16x32xf32> -> vector<16x32xf32>
    %295 = vector.broadcast %9 : vector<1x32xf32> to vector<16x32xf32>
    %296 = arith.addf %294, %295 : vector<16x32xf32>
    %297 = arith.addf %246, %296 : vector<16x32xf32>
    %cst_83 = arith.constant dense<0.000000e+00> : vector<16xf32>
    %298 = vector.multi_reduction <add>, %297, %cst_83 [1] : vector<16x32xf32> to vector<16xf32>
    %299 = vector.shape_cast %298 : vector<16xf32> to vector<16x1xf32>
    %cst_84 = arith.constant 3.200000e+01 : f32
    %300 = vector.broadcast %cst_84 : f32 to vector<16x1xf32>
    %301 = arith.divf %299, %300 : vector<16x1xf32>
    %302 = vector.broadcast %301 : vector<16x1xf32> to vector<16x32xf32>
    %303 = arith.subf %297, %302 : vector<16x32xf32>
    %304 = arith.mulf %303, %303 : vector<16x32xf32>
    %cst_85 = arith.constant dense<0.000000e+00> : vector<16xf32>
    %305 = vector.multi_reduction <add>, %304, %cst_85 [1] : vector<16x32xf32> to vector<16xf32>
    %306 = vector.shape_cast %305 : vector<16xf32> to vector<16x1xf32>
    %cst_86 = arith.constant 3.200000e+01 : f32
    %307 = vector.broadcast %cst_86 : f32 to vector<16x1xf32>
    %308 = arith.divf %306, %307 : vector<16x1xf32>
    %cst_87 = arith.constant 9.99999974E-6 : f32
    %309 = vector.broadcast %cst_87 : f32 to vector<16x1xf32>
    %310 = arith.addf %308, %309 : vector<16x1xf32>
    %311 = math.rsqrt %310 : vector<16x1xf32>
    %312 = vector.broadcast %311 : vector<16x1xf32> to vector<16x32xf32>
    %313 = arith.mulf %303, %312 : vector<16x32xf32>
    %314 = vector.broadcast %16 : vector<1x32xf32> to vector<16x32xf32>
    %315 = arith.mulf %313, %314 : vector<16x32xf32>
    %316 = vector.broadcast %17 : vector<1x32xf32> to vector<16x32xf32>
    %317 = arith.addf %315, %316 : vector<16x32xf32>
    %c160_88 = arith.constant 160 : index
    %c0_89 = arith.constant 0 : index
    %318 = vector.load %arg4[%c160_88, %c0_89] : memref<256x128xf32, #tpu.memory_space<vmem>>, vector<32x64xf32>
    %cst_90 = arith.constant dense<0.000000e+00> : vector<16x64xf32>
    %319 = tpu.matmul %317, %318, %cst_90 {dimension_numbers = #tpu.dot_dimension_numbers<[1], [0], [0], [1], [0, 0, 1, 1], [], []>} : vector<16x32xf32>, vector<32x64xf32>, vector<16x64xf32> -> vector<16x64xf32>
    %320 = vector.broadcast %10 : vector<1x64xf32> to vector<16x64xf32>
    %321 = arith.addf %319, %320 : vector<16x64xf32>
    %cst_91 = arith.constant 0.000000e+00 : f32
    %322 = vector.broadcast %cst_91 : f32 to vector<16x64xf32>
    %323 = arith.maximumf %321, %322 : vector<16x64xf32>
    %c192_92 = arith.constant 192 : index
    %c0_93 = arith.constant 0 : index
    %324 = vector.load %arg4[%c192_92, %c0_93] : memref<256x128xf32, #tpu.memory_space<vmem>>, vector<64x32xf32>
    %cst_94 = arith.constant dense<0.000000e+00> : vector<16x32xf32>
    %325 = tpu.matmul %323, %324, %cst_94 {dimension_numbers = #tpu.dot_dimension_numbers<[1], [0], [0], [1], [0, 0, 1, 1], [], []>} : vector<16x64xf32>, vector<64x32xf32>, vector<16x32xf32> -> vector<16x32xf32>
    %326 = arith.addf %297, %325 : vector<16x32xf32>
    %327 = vector.broadcast %11 : vector<1x32xf32> to vector<16x32xf32>
    %328 = arith.addf %326, %327 : vector<16x32xf32>
    %cst_95 = arith.constant dense<0.000000e+00> : vector<16xf32>
    %329 = vector.multi_reduction <add>, %328, %cst_95 [1] : vector<16x32xf32> to vector<16xf32>
    %330 = vector.shape_cast %329 : vector<16xf32> to vector<16x1xf32>
    %cst_96 = arith.constant 3.200000e+01 : f32
    %331 = vector.broadcast %cst_96 : f32 to vector<16x1xf32>
    %332 = arith.divf %330, %331 : vector<16x1xf32>
    %333 = vector.broadcast %332 : vector<16x1xf32> to vector<16x32xf32>
    %334 = arith.subf %328, %333 : vector<16x32xf32>
    %335 = arith.mulf %334, %334 : vector<16x32xf32>
    %cst_97 = arith.constant dense<0.000000e+00> : vector<16xf32>
    %336 = vector.multi_reduction <add>, %335, %cst_97 [1] : vector<16x32xf32> to vector<16xf32>
    %337 = vector.shape_cast %336 : vector<16xf32> to vector<16x1xf32>
    %cst_98 = arith.constant 3.200000e+01 : f32
    %338 = vector.broadcast %cst_98 : f32 to vector<16x1xf32>
    %339 = arith.divf %337, %338 : vector<16x1xf32>
    %cst_99 = arith.constant 9.99999974E-6 : f32
    %340 = vector.broadcast %cst_99 : f32 to vector<16x1xf32>
    %341 = arith.addf %339, %340 : vector<16x1xf32>
    %342 = math.rsqrt %341 : vector<16x1xf32>
    %343 = vector.broadcast %342 : vector<16x1xf32> to vector<16x32xf32>
    %344 = arith.mulf %334, %343 : vector<16x32xf32>
    %345 = vector.broadcast %18 : vector<1x32xf32> to vector<16x32xf32>
    %346 = arith.mulf %344, %345 : vector<16x32xf32>
    %347 = vector.broadcast %19 : vector<1x32xf32> to vector<16x32xf32>
    %348 = arith.addf %346, %347 : vector<16x32xf32>
    %c0_100 = arith.constant 0 : index
    %c0_101 = arith.constant 0 : index
    %349 = vector.load %arg6[%c0_100, %c0_101] : memref<16x32xf32, #tpu.memory_space<vmem>>, vector<16x32xf32>
    tpu.vector_store %arg6[%c0_100, %c0_101], %348 {strides = array<i32>} : memref<16x32xf32, #tpu.memory_space<vmem>>, vector<16x32xf32>,
    return
  }
}

</mosaic_0001>

<llo_original>
// kernel: decoder_forward.1
$region0: #{decoder_forward.1}
  #allocation0 [shape = 'u32[]', space=smem, size = 0x4, offset = 0x4, fixed_abs, tag = 'smem constant byte address 0x4 - core index']
  #allocation1 [shape = 'u32[144,128]{1,0:T(1,128)}', space=vmem, size = 0x12000, scoped, tag = 'internal scratch']
  %s0 = inlined_call_operand.vmem [shape: f32[16,32], index: 0, kind: input, shape index: {}]
  %s1 = inlined_call_operand.vmem [shape: f32[24,32], index: 1, kind: input, shape index: {}]
  %s2 = inlined_call_operand.vmem [shape: f32[16,16], index: 2, kind: input, shape index: {}]
  %s3 = inlined_call_operand.vmem [shape: f32[16,24], index: 3, kind: input, shape index: {}]
  %s4 = inlined_call_operand.vmem [shape: f32[256,128], index: 4, kind: input, shape index: {}]
  %s5 = inlined_call_operand.vmem [shape: f32[15,128], index: 5, kind: input, shape index: {}]
  %s6 = inlined_call_operand.hbm [shape: f32[16,32], index: 6, kind: output, shape index: {}]
  %s7 = sld [smem:[#allocation0]]
  $region34: #{decoder_forward.1} parent=0
    _
  %s9 = ssub.s32 1, %s7
  %s10 = scalar_select 0, %s9, %s7
  $region1: #{decoder_forward.1} parent=0
    #allocation2 [shape = 'u8[8192]{0}', space=vmem, size = 0x2000, scoped, tag = 'output window, operand 0, single buffered']
    #allocation3 [shape = 's32[1]{0}', space=sflag, size = 0x4, scoped, tag = 'scoped memory for decoder_forward.1']
    %11 = vsyncpa [#allocation3], 0
    // Predicated region
    $region2: #{decoder_forward.1} parent=1 // pred_check
      _
    $region3: #{decoder_forward.1} parent=1 // pred_check_branch
      %13 = sbr.rel (0) target = $region5
    $region4: #{decoder_forward.1} parent=1 // pred_region
      _
    $region5: #{decoder_forward.1} parent=1 // pred_fallthru
      _
    // Predicated region
    $region6: #{decoder_forward.1} parent=1 // pred_check
      _
    $region7: #{decoder_forward.1} parent=1 // pred_check_branch
      %15 = sbr.rel (0) target = $region9
    $region8: #{decoder_forward.1} parent=1 // pred_region
      _
    $region9: #{decoder_forward.1} parent=1 // pred_fallthru
      _
    // Predicated region
    $region10: #{decoder_forward.1} parent=1 // pred_check
      _
    $region11: #{decoder_forward.1} parent=1 // pred_check_branch
      %17 = sbr.rel (0) target = $region13
    $region12: #{decoder_forward.1} parent=1 // pred_region
      _
    $region13: #{decoder_forward.1} parent=1 // pred_fallthru
      _
    // Predicated region
    $region14: #{decoder_forward.1} parent=1 // pred_check
      _
    $region15: #{decoder_forward.1} parent=1 // pred_check_branch
      %19 = sbr.rel (0) target = $region17
    $region16: #{decoder_forward.1} parent=1 // pred_region
      _
    $region17: #{decoder_forward.1} parent=1 // pred_fallthru
      _
    // Predicated region
    $region18: #{decoder_forward.1} parent=1 // pred_check
      _
    $region19: #{decoder_forward.1} parent=1 // pred_check_branch
      %21 = sbr.rel (0) target = $region21
    $region20: #{decoder_forward.1} parent=1 // pred_region
      _
    $region21: #{decoder_forward.1} parent=1 // pred_fallthru
      _
    // Predicated region
    $region22: #{decoder_forward.1} parent=1 // pred_check
      _
    $region23: #{decoder_forward.1} parent=1 // pred_check_branch
      %23 = sbr.rel (0) target = $region25
    $region24: #{decoder_forward.1} parent=1 // pred_region
      _
    $region25: #{decoder_forward.1} parent=1 // pred_fallthru
      _
    %v24 = vld [vmem:[%s0] sm:$0xff]
    %v25 = vld [vmem:[%s0 + $0x8] sm:$0xff]
    %v26 = vld [vmem:[%s1] sm:$0xff]
    %v27 = vld [vmem:[%s1 + $0x8] sm:$0xff]
    %v28 = vld [vmem:[%s1 + $0x10] sm:$0xff]
    %v29 = vld [vmem:[%s2] sm:$0xff]
    %v30 = vld [vmem:[%s2 + $0x8] sm:$0xff]
    %v31 = vld [vmem:[%s3] sm:$0xff]
    %v32 = vld [vmem:[%s3 + $0x8] sm:$0xff]
    %v33 = vld [vmem:[%s5] sm:$0xff]
    %v34 = vld [vmem:[%s5 + $0x8] sm:$0x7f]
    %v35 = vlaneseq
    %v36 = vand.u32 %v35, 127
    %vm37 = vcmp.ge.s32.totalorder %v36, 0
    %vm38 = vcmp.ge.s32.totalorder %v36, 8
    %vm39 = vcmp.ge.s32.totalorder %v36, 16
    %vm40 = vcmp.ge.s32.totalorder %v36, 24
    %vm41 = vcmp.lt.s32.totalorder %v36, 8
    %vm42 = vcmp.lt.s32.totalorder %v36, 16
    %vm43 = vcmp.lt.s32.totalorder %v36, 24
    %vm44 = vcmp.lt.s32.totalorder %v36, 32
    %vm45 = vmand %vm37, %vm41
    %vm46 = vmand %vm38, %vm42
    %vm47 = vmand %vm39, %vm43
    %vm48 = vmand %vm40, %vm44
    %v49 = vsel %vm45, 1, 0
    %v50 = vsel %vm46, 1, 0
    %v51 = vsel %vm47, 1, 0
    %v52 = vsel %vm48, 1, 0
    %v53 = vcvt.s32.f32 %v49
    %v54 = vcvt.s32.f32 %v50
    %v55 = vcvt.s32.f32 %v51
    %v56 = vcvt.s32.f32 %v52
    %v57 = vmul.f32 %v53, 0.35355338
    %v58 = vmul.f32 %v54, 0.35355338
    %v59 = vmul.f32 %v55, 0.35355338
    %v60 = vmul.f32 %v56, 0.35355338
    %v61 = vld [vmem:[%s4 + $0x60] sm:$0xff]
    %v62 = vld [vmem:[%s4 + $0x68] sm:$0xff]
    %v63 = vld [vmem:[%s4 + $0x70] sm:$0xff]
    %v64 = vld [vmem:[%s4 + $0x78] sm:$0xff]
    %v65 = vlaneseq
    %v66 = vshrl.u32 %v65, 7
    %v67 = vsub.s32 3, %v66
    %v68 = vrot.slane %v33, %v67
    %vm69 = vcmask 261120
    %v71 = vsel %vm69, %v26, 0
    %v74 = vsel %vm69, %v27, 0
    %v77 = vsel %vm69, %v28, 0
    %79 = vmatprep.subr.mxu0 0.0
    %80 = vmatpush1.msra.mxu0 %v61
    %81 = vmatprep.subr.mxu0 0.0
    %82 = vmatpush1.msra.mxu0 %v62
    %83 = vmatprep.subr.mxu0 0.0
    %84 = vmatpush1.msra.mxu0 %v63
    %85 = vmatprep.subr.mxu0 0.0
    %86 = vmatpush1.msra.mxu0 %v64
    %87 = vmatprep.subr.mxu0 0.0
    %88 = vmatpush1.msra.mxu0 0.0
    %89 = vmatprep.subr.mxu0 0.0
    %90 = vmatpush1.msra.mxu0 0.0
    %91 = vmatprep.subr.mxu0 0.0
    %92 = vmatpush1.msra.mxu0 0.0
    %93 = vmatprep.subr.mxu0 0.0
    %94 = vmatpush1.msra.mxu0 0.0
    %95 = vmatprep.subr.mxu0 0.0
    %96 = vmatpush1.msra.mxu0 0.0
    %97 = vmatprep.subr.mxu0 0.0
    %98 = vmatpush1.msra.mxu0 0.0
    %99 = vmatprep.subr.mxu0 0.0
    %100 = vmatpush1.msra.mxu0 0.0
    %101 = vmatprep.subr.mxu0 0.0
    %102 = vmatpush1.msra.mxu0 0.0
    %103 = vmatprep.subr.mxu0 0.0
    %104 = vmatpush1.msra.mxu0 0.0
    %105 = vmatprep.subr.mxu0 0.0
    %106 = vmatpush1.msra.mxu0 0.0
    %107 = vmatprep.subr.mxu0 0.0
    %108 = vmatpush1.msra.mxu0 0.0
    %109 = vmatprep.subr.mxu0 0.0
    %110 = vmatpush1.msra.mxu0 0.0
    %111 = vmatprep.subr.mxu0 0.0
    %112 = vmatpush1.msra.mxu0 0.0
    %113 = vmatprep.subr.mxu0 0.0
    %114 = vmatpush1.msra.mxu0 0.0
    %115 = vmatprep.subr.mxu0 0.0
    %116 = vmatpush1.msra.mxu0 0.0
    %117 = vmatprep.subr.mxu0 0.0
    %118 = vmatpush1.msra.mxu0 0.0
    %119 = vmatprep.subr.mxu0 0.0
    %120 = vmatpush1.msra.mxu0 0.0
    %121 = vmatprep.subr.mxu0 0.0
    %122 = vmatpush1.msra.mxu0 0.0
    %123 = vmatprep.subr.mxu0 0.0
    %124 = vmatpush1.msra.mxu0 0.0
    %125 = vmatprep.subr.mxu0 0.0
    %126 = vmatpush1.msra.mxu0 0.0
    %127 = vmatprep.subr.mxu0 0.0
    %128 = vmatpush1.msra.mxu0 0.0
    %129 = vmatprep.subr.mxu0 0.0
    %130 = vmatpush1.msra.mxu0 0.0
    %131 = vmatprep.subr.mxu0 0.0
    %132 = vmatpush1.msra.mxu0 0.0
    %133 = vmatprep.subr.mxu0 0.0
    %134 = vmatpush1.msra.mxu0 0.0
    %135 = vmatprep.subr.mxu0 0.0
    %136 = vmatpush1.msra.mxu0 0.0
    %137 = vmatprep.subr.mxu0 0.0
    %138 = vmatpush1.msra.mxu0 0.0
    %139 = vmatprep.subr.mxu0 0.0
    %140 = vmatpush1.msra.mxu0 0.0
    %141 = vmatprep.subr.mxu0 0.0
    %142 = vmatpush1.msra.mxu0 0.0
    %143 = vmatprep.mubr.f32.mxu0 0.0
    %144 = vmatmul.mubr.f32.gmra.mrb[0].mxu0 %v71
    %v145 = vpop.f32.mrb[0].mxu0
    %v146 = vadd.f32 %v68, %v145
    %v147 = vpop.f32.mrb[0].mxu0
    %148 = vmatprep.mubr.f32.mxu0 0.0
    %149 = vmatmul.mubr.f32.gmra.mrb[0].mxu0 %v74
    %v150 = vpop.f32.mrb[0].mxu0
    %v151 = vadd.f32 %v68, %v150
    %v152 = vpop.f32.mrb[0].mxu0
    %153 = vmatprep.mubr.f32.mxu0 0.0
    %154 = vmatmul.mubr.f32.gmra.mrb[0].mxu0 %v77
    %v155 = vpop.f32.mrb[0].mxu0
    %v156 = vadd.f32 %v68, %v155
    %v157 = vpop.f32.mrb[0].mxu0
    %158 = vdwg.mxu0
    %v159 = vsel %vm69, %v24, 0.0
    %160 = vadd.xlane.f32.xlu0 %v159
    %v161 = vpop.xlane.xlu0 %160
    %v162 = vsel %vm69, %v25, 0.0
    %163 = vadd.xlane.f32.xlu0 %v162
    %v164 = vpop.xlane.xlu0 %163
    %v165 = vrcp.pop 32.0
    %v166 = vmul.f32 %v161, %v165
    %v167 = vmul.f32 %v164, %v165
    %v168 = vsub.f32 %v24, %v166
    %v169 = vsub.f32 %v25, %v167
    %v170 = vmul.f32 %v168, %v168
    %v171 = vmul.f32 %v169, %v169
    %v172 = vsel %vm69, %v170, 0.0
    %173 = vadd.xlane.f32.xlu0 %v172
    %v174 = vpop.xlane.xlu0 %173
    %v175 = vsel %vm69, %v171, 0.0
    %176 = vadd.xlane.f32.xlu0 %v175
    %v177 = vpop.xlane.xlu0 %176
    %v178 = vmul.f32 %v174, %v165
    %v179 = vmul.f32 %v177, %v165
    %v180 = vadd.f32 %v178, 1e-05
    %v181 = vadd.f32 %v179, 1e-05
    %v182 = vrsqrt.pop %v180
    %v183 = vrsqrt.pop %v181
    %v184 = vmul.f32 %v168, %v182
    %v185 = vmul.f32 %v169, %v183
    %v186 = vlaneseq
    %v187 = vshrl.u32 %v186, 7
    %v188 = vsub.s32 7, %v187
    %v189 = vrot.slane %v33, %v188
    %v190 = vmul.f32 %v184, %v189
    %v191 = vmul.f32 %v185, %v189
    %v192 = vlaneseq
    %v193 = vshrl.u32 %v192, 7
    %v194 = vsub.s32 0, %v193
    %v195 = vrot.slane %v34, %v194
    %v196 = vadd.f32 %v190, %v195
    %v197 = vadd.f32 %v191, %v195
    %v198 = vld [vmem:[%s4] sm:$0xff]
    %v199 = vld [vmem:[%s4 + $0x8] sm:$0xff]
    %v200 = vld [vmem:[%s4 + $0x10] sm:$0xff]
    %v201 = vld [vmem:[%s4 + $0x18] sm:$0xff]
    %v202 = vlaneseq
    %v203 = vshrl.u32 %v202, 7
    %v204 = vsub.s32 0, %v203
    %v205 = vrot.slane %v33, %v204
    %v207 = vsel %vm69, %v196, 0
    %v210 = vsel %vm69, %v197, 0
    %212 = vmatprep.subr.mxu0 0.0
    %213 = vmatpush1.msra.mxu0 %v198
    %214 = vmatprep.subr.mxu0 0.0
    %215 = vmatpush1.msra.mxu0 %v199
    %216 = vmatprep.subr.mxu0 0.0
    %217 = vmatpush1.msra.mxu0 %v200
    %218 = vmatprep.subr.mxu0 0.0
    %219 = vmatpush1.msra.mxu0 %v201
    %220 = vmatprep.subr.mxu0 0.0
    %221 = vmatpush1.msra.mxu0 0.0
    %222 = vmatprep.subr.mxu0 0.0
    %223 = vmatpush1.msra.mxu0 0.0
    %224 = vmatprep.subr.mxu0 0.0
    %225 = vmatpush1.msra.mxu0 0.0
    %226 = vmatprep.subr.mxu0 0.0
    %227 = vmatpush1.msra.mxu0 0.0
    %228 = vmatprep.subr.mxu0 0.0
    %229 = vmatpush1.msra.mxu0 0.0
    %230 = vmatprep.subr.mxu0 0.0
    %231 = vmatpush1.msra.mxu0 0.0
    %232 = vmatprep.subr.mxu0 0.0
    %233 = vmatpush1.msra.mxu0 0.0
    %234 = vmatprep.subr.mxu0 0.0
    %235 = vmatpush1.msra.mxu0 0.0
    %236 = vmatprep.subr.mxu0 0.0
    %237 = vmatpush1.msra.mxu0 0.0
    %238 = vmatprep.subr.mxu0 0.0
    %239 = vmatpush1.msra.mxu0 0.0
    %240 = vmatprep.subr.mxu0 0.0
    %241 = vmatpush1.msra.mxu0 0.0
    %242 = vmatprep.subr.mxu0 0.0
    %243 = vmatpush1.msra.mxu0 0.0
    %244 = vmatprep.subr.mxu0 0.0
    %245 = vmatpush1.msra.mxu0 0.0
    %246 = vmatprep.subr.mxu0 0.0
    %247 = vmatpush1.msra.mxu0 0.0
    %248 = vmatprep.subr.mxu0 0.0
    %249 = vmatpush1.msra.mxu0 0.0
    %250 = vmatprep.subr.mxu0 0.0
    %251 = vmatpush1.msra.mxu0 0.0
    %252 = vmatprep.subr.mxu0 0.0
    %253 = vmatpush1.msra.mxu0 0.0
    %254 = vmatprep.subr.mxu0 0.0
    %255 = vmatpush1.msra.mxu0 0.0
    %256 = vmatprep.subr.mxu0 0.0
    %257 = vmatpush1.msra.mxu0 0.0
    %258 = vmatprep.subr.mxu0 0.0
    %259 = vmatpush1.msra.mxu0 0.0
    %260 = vmatprep.subr.mxu0 0.0
    %261 = vmatpush1.msra.mxu0 0.0
    %262 = vmatprep.subr.mxu0 0.0
    %263 = vmatpush1.msra.mxu0 0.0
    %264 = vmatprep.subr.mxu0 0.0
    %265 = vmatpush1.msra.mxu0 0.0
    %266 = vmatprep.subr.mxu0 0.0
    %267 = vmatpush1.msra.mxu0 0.0
    %268 = vmatprep.subr.mxu0 0.0
    %269 = vmatpush1.msra.mxu0 0.0
    %270 = vmatprep.subr.mxu0 0.0
    %271 = vmatpush1.msra.mxu0 0.0
    %272 = vmatprep.subr.mxu0 0.0
    %273 = vmatpush1.msra.mxu0 0.0
    %274 = vmatprep.subr.mxu0 0.0
    %275 = vmatpush1.msra.mxu0 0.0
    %276 = vmatprep.mubr.f32.mxu0 0.0
    %277 = vmatmul.mubr.f32.gmra.mrb[0].mxu0 %v207
    %v278 = vpop.f32.mrb[0].mxu0
    %v279 = vadd.f32 %v205, %v278
    %v280 = vpop.f32.mrb[0].mxu0
    %281 = vmatprep.mubr.f32.mxu0 0.0
    %282 = vmatmul.mubr.f32.gmra.mrb[0].mxu0 %v210
    %v283 = vpop.f32.mrb[0].mxu0
    %v284 = vadd.f32 %v205, %v283
    %v285 = vpop.f32.mrb[0].mxu0
    %286 = vdwg.mxu0
    %v287 = vld [vmem:[%s4 + $0x20] sm:$0xff]
    %v288 = vld [vmem:[%s4 + $0x28] sm:$0xff]
    %v289 = vld [vmem:[%s4 + $0x30] sm:$0xff]
    %v290 = vld [vmem:[%s4 + $0x38] sm:$0xff]
    %v291 = vmul.f32 %v279, %v57
    %v292 = vmul.f32 %v284, %v57
    %v293 = vmul.f32 %v279, %v58
    %v294 = vmul.f32 %v284, %v58
    %v295 = vmul.f32 %v279, %v59
    %v296 = vmul.f32 %v284, %v59
    %v297 = vmul.f32 %v279, %v60
    %v298 = vmul.f32 %v284, %v60
    %301 = vrot.lane.b32.xlu0 %v279, 96
    %v302 = vpop.permute.xlu0 %301
    %303 = vrot.lane.b32.xlu0 %v284, 96
    %v304 = vpop.permute.xlu0 %303
    %v306 = vsel %vm69, %v291, 0
    %v309 = vsel %vm69, %v292, 0
    %v311 = vsel %vm69, %v302, 0
    %v313 = vsel %vm69, %v304, 0
    %315 = vmatprep.subr.mxu0 0.0
    %316 = vmatpush1.xpose.msra.mxu0 %v311
    %317 = vmatprep.subr.mxu0 0.0
    %318 = vmatpush1.xpose.msra.mxu0 %v313
    %319 = vmatprep.subr.mxu0 0.0
    %320 = vmatpush1.xpose.msra.mxu0 0.0
    %321 = vmatprep.subr.mxu0 0.0
    %322 = vmatpush1.xpose.msra.mxu0 0.0
    %323 = vmatprep.subr.mxu0 0.0
    %324 = vmatpush1.xpose.msra.mxu0 0.0
    %325 = vmatprep.subr.mxu0 0.0
    %326 = vmatpush1.xpose.msra.mxu0 0.0
    %327 = vmatprep.subr.mxu0 0.0
    %328 = vmatpush1.xpose.msra.mxu0 0.0
    %329 = vmatprep.subr.mxu0 0.0
    %330 = vmatpush1.xpose.msra.mxu0 0.0
    %331 = vmatprep.subr.mxu0 0.0
    %332 = vmatpush1.xpose.msra.mxu0 0.0
    %333 = vmatprep.subr.mxu0 0.0
    %334 = vmatpush1.xpose.msra.mxu0 0.0
    %335 = vmatprep.subr.mxu0 0.0
    %336 = vmatpush1.xpose.msra.mxu0 0.0
    %337 = vmatprep.subr.mxu0 0.0
    %338 = vmatpush1.xpose.msra.mxu0 0.0
    %339 = vmatprep.subr.mxu0 0.0
    %340 = vmatpush1.xpose.msra.mxu0 0.0
    %341 = vmatprep.subr.mxu0 0.0
    %342 = vmatpush1.xpose.msra.mxu0 0.0
    %343 = vmatprep.subr.mxu0 0.0
    %344 = vmatpush1.xpose.msra.mxu0 0.0
    %345 = vmatprep.subr.mxu0 0.0
    %346 = vmatpush1.xpose.msra.mxu0 0.0
    %347 = vmatprep.subr.mxu0 0.0
    %348 = vmatpush1.xpose.msra.mxu0 0.0
    %349 = vmatprep.subr.mxu0 0.0
    %350 = vmatpush1.xpose.msra.mxu0 0.0
    %351 = vmatprep.subr.mxu0 0.0
    %352 = vmatpush1.xpose.msra.mxu0 0.0
    %353 = vmatprep.subr.mxu0 0.0
    %354 = vmatpush1.xpose.msra.mxu0 0.0
    %355 = vmatprep.subr.mxu0 0.0
    %356 = vmatpush1.xpose.msra.mxu0 0.0
    %357 = vmatprep.subr.mxu0 0.0
    %358 = vmatpush1.xpose.msra.mxu0 0.0
    %359 = vmatprep.subr.mxu0 0.0
    %360 = vmatpush1.xpose.msra.mxu0 0.0
    %361 = vmatprep.subr.mxu0 0.0
    %362 = vmatpush1.xpose.msra.mxu0 0.0
    %363 = vmatprep.subr.mxu0 0.0
    %364 = vmatpush1.xpose.msra.mxu0 0.0
    %365 = vmatprep.subr.mxu0 0.0
    %366 = vmatpush1.xpose.msra.mxu0 0.0
    %367 = vmatprep.subr.mxu0 0.0
    %368 = vmatpush1.xpose.msra.mxu0 0.0
    %369 = vmatprep.subr.mxu0 0.0
    %370 = vmatpush1.xpose.msra.mxu0 0.0
    %371 = vmatprep.subr.mxu0 0.0
    %372 = vmatpush1.xpose.msra.mxu0 0.0
    %373 = vmatprep.subr.mxu0 0.0
    %374 = vmatpush1.xpose.msra.mxu0 0.0
    %375 = vmatprep.subr.mxu0 0.0
    %376 = vmatpush1.xpose.msra.mxu0 0.0
    %377 = vmatprep.subr.mxu0 0.0
    %378 = vmatpush1.xpose.msra.mxu0 0.0
    %379 = vmatprep.mubr.f32.mxu0 0.0
    %380 = vmatmul.mubr.f32.gmra.mrb[0].mxu0 %v306
    %v381 = vpop.f32.mrb[0].mxu0
    %v382 = vadd.f32 %v29, %v381
    %v383 = vpop.f32.mrb[0].mxu0
    %384 = vmatprep.mubr.f32.mxu0 0.0
    %385 = vmatmul.mubr.f32.gmra.mrb[0].mxu0 %v309
    %v386 = vpop.f32.mrb[0].mxu0
    %v387 = vadd.f32 %v30, %v386
    %v388 = vpop.f32.mrb[0].mxu0
    %389 = vdwg.mxu0
    %v391 = vsel %vm69, %v293, 0
    %v394 = vsel %vm69, %v294, 0
    %396 = vmatprep.subr.mxu0 0.0
    %397 = vmatpush1.xpose.msra.mxu0 %v311
    %398 = vmatprep.subr.mxu0 0.0
    %399 = vmatpush1.xpose.msra.mxu0 %v313
    %400 = vmatprep.subr.mxu0 0.0
    %401 = vmatpush1.xpose.msra.mxu0 0.0
    %402 = vmatprep.subr.mxu0 0.0
    %403 = vmatpush1.xpose.msra.mxu0 0.0
    %404 = vmatprep.subr.mxu0 0.0
    %405 = vmatpush1.xpose.msra.mxu0 0.0
    %406 = vmatprep.subr.mxu0 0.0
    %407 = vmatpush1.xpose.msra.mxu0 0.0
    %408 = vmatprep.subr.mxu0 0.0
    %409 = vmatpush1.xpose.msra.mxu0 0.0
    %410 = vmatprep.subr.mxu0 0.0
    %411 = vmatpush1.xpose.msra.mxu0 0.0
    %412 = vmatprep.subr.mxu0 0.0
    %413 = vmatpush1.xpose.msra.mxu0 0.0
    %414 = vmatprep.subr.mxu0 0.0
    %415 = vmatpush1.xpose.msra.mxu0 0.0
    %416 = vmatprep.subr.mxu0 0.0
    %417 = vmatpush1.xpose.msra.mxu0 0.0
    %418 = vmatprep.subr.mxu0 0.0
    %419 = vmatpush1.xpose.msra.mxu0 0.0
    %420 = vmatprep.subr.mxu0 0.0
    %421 = vmatpush1.xpose.msra.mxu0 0.0
    %422 = vmatprep.subr.mxu0 0.0
    %423 = vmatpush1.xpose.msra.mxu0 0.0
    %424 = vmatprep.subr.mxu0 0.0
    %425 = vmatpush1.xpose.msra.mxu0 0.0
    %426 = vmatprep.subr.mxu0 0.0
    %427 = vmatpush1.xpose.msra.mxu0 0.0
    %428 = vmatprep.subr.mxu0 0.0
    %429 = vmatpush1.xpose.msra.mxu0 0.0
    %430 = vmatprep.subr.mxu0 0.0
    %431 = vmatpush1.xpose.msra.mxu0 0.0
    %432 = vmatprep.subr.mxu0 0.0
    %433 = vmatpush1.xpose.msra.mxu0 0.0
    %434 = vmatprep.subr.mxu0 0.0
    %435 = vmatpush1.xpose.msra.mxu0 0.0
    %436 = vmatprep.subr.mxu0 0.0
    %437 = vmatpush1.xpose.msra.mxu0 0.0
    %438 = vmatprep.subr.mxu0 0.0
    %439 = vmatpush1.xpose.msra.mxu0 0.0
    %440 = vmatprep.subr.mxu0 0.0
    %441 = vmatpush1.xpose.msra.mxu0 0.0
    %442 = vmatprep.subr.mxu0 0.0
    %443 = vmatpush1.xpose.msra.mxu0 0.0
    %444 = vmatprep.subr.mxu0 0.0
    %445 = vmatpush1.xpose.msra.mxu0 0.0
    %446 = vmatprep.subr.mxu0 0.0
    %447 = vmatpush1.xpose.msra.mxu0 0.0
    %448 = vmatprep.subr.mxu0 0.0
    %449 = vmatpush1.xpose.msra.mxu0 0.0
    %450 = vmatprep.subr.mxu0 0.0
    %451 = vmatpush1.xpose.msra.mxu0 0.0
    %452 = vmatprep.subr.mxu0 0.0
    %453 = vmatpush1.xpose.msra.mxu0 0.0
    %454 = vmatprep.subr.mxu0 0.0
    %455 = vmatpush1.xpose.msra.mxu0 0.0
    %456 = vmatprep.subr.mxu0 0.0
    %457 = vmatpush1.xpose.msra.mxu0 0.0
    %458 = vmatprep.subr.mxu0 0.0
    %459 = vmatpush1.xpose.msra.mxu0 0.0
    %460 = vmatprep.mubr.f32.mxu0 0.0
    %461 = vmatmul.mubr.f32.gmra.mrb[0].mxu0 %v391
    %v462 = vpop.f32.mrb[0].mxu0
    %v463 = vadd.f32 %v29, %v462
    %v464 = vpop.f32.mrb[0].mxu0
    %465 = vmatprep.mubr.f32.mxu0 0.0
    %466 = vmatmul.mubr.f32.gmra.mrb[0].mxu0 %v394
    %v467 = vpop.f32.mrb[0].mxu0
    %v468 = vadd.f32 %v30, %v467
    %v469 = vpop.f32.mrb[0].mxu0
    %470 = vdwg.mxu0
    %v472 = vsel %vm69, %v295, 0
    %v475 = vsel %vm69, %v296, 0
    %477 = vmatprep.subr.mxu0 0.0
    %478 = vmatpush1.xpose.msra.mxu0 %v311
    %479 = vmatprep.subr.mxu0 0.0
    %480 = vmatpush1.xpose.msra.mxu0 %v313
    %481 = vmatprep.subr.mxu0 0.0
    %482 = vmatpush1.xpose.msra.mxu0 0.0
    %483 = vmatprep.subr.mxu0 0.0
    %484 = vmatpush1.xpose.msra.mxu0 0.0
    %485 = vmatprep.subr.mxu0 0.0
    %486 = vmatpush1.xpose.msra.mxu0 0.0
    %487 = vmatprep.subr.mxu0 0.0
    %488 = vmatpush1.xpose.msra.mxu0 0.0
    %489 = vmatprep.subr.mxu0 0.0
    %490 = vmatpush1.xpose.msra.mxu0 0.0
    %491 = vmatprep.subr.mxu0 0.0
    %492 = vmatpush1.xpose.msra.mxu0 0.0
    %493 = vmatprep.subr.mxu0 0.0
    %494 = vmatpush1.xpose.msra.mxu0 0.0
    %495 = vmatprep.subr.mxu0 0.0
    %496 = vmatpush1.xpose.msra.mxu0 0.0
    %497 = vmatprep.subr.mxu0 0.0
    %498 = vmatpush1.xpose.msra.mxu0 0.0
    %499 = vmatprep.subr.mxu0 0.0
    %500 = vmatpush1.xpose.msra.mxu0 0.0
    %501 = vmatprep.subr.mxu0 0.0
    %502 = vmatpush1.xpose.msra.mxu0 0.0
    %503 = vmatprep.subr.mxu0 0.0
    %504 = vmatpush1.xpose.msra.mxu0 0.0
    %505 = vmatprep.subr.mxu0 0.0
    %506 = vmatpush1.xpose.msra.mxu0 0.0
    %507 = vmatprep.subr.mxu0 0.0
    %508 = vmatpush1.xpose.msra.mxu0 0.0
    %509 = vmatprep.subr.mxu0 0.0
    %510 = vmatpush1.xpose.msra.mxu0 0.0
    %511 = vmatprep.subr.mxu0 0.0
    %512 = vmatpush1.xpose.msra.mxu0 0.0
    %513 = vmatprep.subr.mxu0 0.0
    %514 = vmatpush1.xpose.msra.mxu0 0.0
    %515 = vmatprep.subr.mxu0 0.0
    %516 = vmatpush1.xpose.msra.mxu0 0.0
    %517 = vmatprep.subr.mxu0 0.0
    %518 = vmatpush1.xpose.msra.mxu0 0.0
    %519 = vmatprep.subr.mxu0 0.0
    %520 = vmatpush1.xpose.msra.mxu0 0.0
    %521 = vmatprep.subr.mxu0 0.0
    %522 = vmatpush1.xpose.msra.mxu0 0.0
    %523 = vmatprep.subr.mxu0 0.0
    %524 = vmatpush1.xpose.msra.mxu0 0.0
    %525 = vmatprep.subr.mxu0 0.0
    %526 = vmatpush1.xpose.msra.mxu0 0.0
    %527 = vmatprep.subr.mxu0 0.0
    %528 = vmatpush1.xpose.msra.mxu0 0.0
    %529 = vmatprep.subr.mxu0 0.0
    %530 = vmatpush1.xpose.msra.mxu0 0.0
    %531 = vmatprep.subr.mxu0 0.0
    %532 = vmatpush1.xpose.msra.mxu0 0.0
    %533 = vmatprep.subr.mxu0 0.0
    %534 = vmatpush1.xpose.msra.mxu0 0.0
    %535 = vmatprep.subr.mxu0 0.0
    %536 = vmatpush1.xpose.msra.mxu0 0.0
    %537 = vmatprep.subr.mxu0 0.0
    %538 = vmatpush1.xpose.msra.mxu0 0.0
    %539 = vmatprep.subr.mxu0 0.0
    %540 = vmatpush1.xpose.msra.mxu0 0.0
    %541 = vmatprep.mubr.f32.mxu0 0.0
    %542 = vmatmul.mubr.f32.gmra.mrb[0].mxu0 %v472
    %v543 = vpop.f32.mrb[0].mxu0
    %v544 = vadd.f32 %v29, %v543
    %v545 = vpop.f32.mrb[0].mxu0
    %546 = vmatprep.mubr.f32.mxu0 0.0
    %547 = vmatmul.mubr.f32.gmra.mrb[0].mxu0 %v475
    %v548 = vpop.f32.mrb[0].mxu0
    %v549 = vadd.f32 %v30, %v548
    %v550 = vpop.f32.mrb[0].mxu0
    %551 = vdwg.mxu0
    %v553 = vsel %vm69, %v297, 0
    %v556 = vsel %vm69, %v298, 0
    %558 = vmatprep.subr.mxu0 0.0
    %559 = vmatpush1.xpose.msra.mxu0 %v311
    %560 = vmatprep.subr.mxu0 0.0
    %561 = vmatpush1.xpose.msra.mxu0 %v313
    %562 = vmatprep.subr.mxu0 0.0
    %563 = vmatpush1.xpose.msra.mxu0 0.0
    %564 = vmatprep.subr.mxu0 0.0
    %565 = vmatpush1.xpose.msra.mxu0 0.0
    %566 = vmatprep.subr.mxu0 0.0
    %567 = vmatpush1.xpose.msra.mxu0 0.0
    %568 = vmatprep.subr.mxu0 0.0
    %569 = vmatpush1.xpose.msra.mxu0 0.0
    %570 = vmatprep.subr.mxu0 0.0
    %571 = vmatpush1.xpose.msra.mxu0 0.0
    %572 = vmatprep.subr.mxu0 0.0
    %573 = vmatpush1.xpose.msra.mxu0 0.0
    %574 = vmatprep.subr.mxu0 0.0
    %575 = vmatpush1.xpose.msra.mxu0 0.0
    %576 = vmatprep.subr.mxu0 0.0
    %577 = vmatpush1.xpose.msra.mxu0 0.0
    %578 = vmatprep.subr.mxu0 0.0
    %579 = vmatpush1.xpose.msra.mxu0 0.0
    %580 = vmatprep.subr.mxu0 0.0
    %581 = vmatpush1.xpose.msra.mxu0 0.0
    %582 = vmatprep.subr.mxu0 0.0
    %583 = vmatpush1.xpose.msra.mxu0 0.0
    %584 = vmatprep.subr.mxu0 0.0
    %585 = vmatpush1.xpose.msra.mxu0 0.0
    %586 = vmatprep.subr.mxu0 0.0
    %587 = vmatpush1.xpose.msra.mxu0 0.0
    %588 = vmatprep.subr.mxu0 0.0
    %589 = vmatpush1.xpose.msra.mxu0 0.0
    %590 = vmatprep.subr.mxu0 0.0
    %591 = vmatpush1.xpose.msra.mxu0 0.0
    %592 = vmatprep.subr.mxu0 0.0
    %593 = vmatpush1.xpose.msra.mxu0 0.0
    %594 = vmatprep.subr.mxu0 0.0
    %595 = vmatpush1.xpose.msra.mxu0 0.0
    %596 = vmatprep.subr.mxu0 0.0
    %597 = vmatpush1.xpose.msra.mxu0 0.0
    %598 = vmatprep.subr.mxu0 0.0
    %599 = vmatpush1.xpose.msra.mxu0 0.0
    %600 = vmatprep.subr.mxu0 0.0
    %601 = vmatpush1.xpose.msra.mxu0 0.0
    %602 = vmatprep.subr.mxu0 0.0
    %603 = vmatpush1.xpose.msra.mxu0 0.0
    %604 = vmatprep.subr.mxu0 0.0
    %605 = vmatpush1.xpose.msra.mxu0 0.0
    %606 = vmatprep.subr.mxu0 0.0
    %607 = vmatpush1.xpose.msra.mxu0 0.0
    %608 = vmatprep.subr.mxu0 0.0
    %609 = vmatpush1.xpose.msra.mxu0 0.0
    %610 = vmatprep.subr.mxu0 0.0
    %611 = vmatpush1.xpose.msra.mxu0 0.0
    %612 = vmatprep.subr.mxu0 0.0
    %613 = vmatpush1.xpose.msra.mxu0 0.0
    %614 = vmatprep.subr.mxu0 0.0
    %615 = vmatpush1.xpose.msra.mxu0 0.0
    %616 = vmatprep.subr.mxu0 0.0
    %617 = vmatpush1.xpose.msra.mxu0 0.0
    %618 = vmatprep.subr.mxu0 0.0
    %619 = vmatpush1.xpose.msra.mxu0 0.0
    %620 = vmatprep.subr.mxu0 0.0
    %621 = vmatpush1.xpose.msra.mxu0 0.0
    %622 = vmatprep.mubr.f32.mxu0 0.0
    %623 = vmatmul.mubr.f32.gmra.mrb[0].mxu0 %v553
    %v624 = vpop.f32.mrb[0].mxu0
    %v625 = vadd.f32 %v29, %v624
    %v626 = vpop.f32.mrb[0].mxu0
    %627 = vmatprep.mubr.f32.mxu0 0.0
    %628 = vmatmul.mubr.f32.gmra.mrb[0].mxu0 %v556
    %v629 = vpop.f32.mrb[0].mxu0
    %v630 = vadd.f32 %v30, %v629
    %v631 = vpop.f32.mrb[0].mxu0
    %632 = vdwg.mxu0
    %vm633 = vcmask 130048
    %v634 = vsel %vm633, %v382, -inf
    %635 = vmax.xlane.f32.xlu0 %v634
    %v636 = vpop.xlane.xlu0 %635
    %v637 = vsel %vm633, %v387, -inf
    %638 = vmax.xlane.f32.xlu0 %v637
    %v639 = vpop.xlane.xlu0 %638
    %v640 = vsel %vm633, %v463, -inf
    %641 = vmax.xlane.f32.xlu0 %v640
    %v642 = vpop.xlane.xlu0 %641
    %v643 = vsel %vm633, %v468, -inf
    %644 = vmax.xlane.f32.xlu0 %v643
    %v645 = vpop.xlane.xlu0 %644
    %v646 = vsel %vm633, %v544, -inf
    %647 = vmax.xlane.f32.xlu0 %v646
    %v648 = vpop.xlane.xlu0 %647
    %v649 = vsel %vm633, %v549, -inf
    %650 = vmax.xlane.f32.xlu0 %v649
    %v651 = vpop.xlane.xlu0 %650
    %v652 = vsel %vm633, %v625, -inf
    %653 = vmax.xlane.f32.xlu0 %v652
    %v654 = vpop.xlane.xlu0 %653
    %v655 = vsel %vm633, %v630, -inf
    %656 = vmax.xlane.f32.xlu0 %v655
    %v657 = vpop.xlane.xlu0 %656
    %v658 = vsub.f32 %v382, %v636
    %v659 = vsub.f32 %v387, %v639
    %v660 = vsub.f32 %v463, %v642
    %v661 = vsub.f32 %v468, %v645
    %v662 = vsub.f32 %v544, %v648
    %v663 = vsub.f32 %v549, %v651
    %v664 = vsub.f32 %v625, %v654
    %v665 = vsub.f32 %v630, %v657
    %v666 = vmul.f32 %v658, 1.442695
    %v667 = vpow.pop %v666
    %v668 = vmul.f32 %v659, 1.442695
    %v669 = vpow.pop %v668
    %v670 = vmul.f32 %v660, 1.442695
    %v671 = vpow.pop %v670
    %v672 = vmul.f32 %v661, 1.442695
    %v673 = vpow.pop %v672
    %v674 = vmul.f32 %v662, 1.442695
    %v675 = vpow.pop %v674
    %v676 = vmul.f32 %v663, 1.442695
    %v677 = vpow.pop %v676
    %v678 = vmul.f32 %v664, 1.442695
    %v679 = vpow.pop %v678
    %v680 = vmul.f32 %v665, 1.442695
    %v681 = vpow.pop %v680
    %v682 = vsel %vm633, %v667, 0.0
    %683 = vadd.xlane.f32.xlu0 %v682
    %v684 = vpop.xlane.xlu0 %683
    %v685 = vsel %vm633, %v669, 0.0
    %686 = vadd.xlane.f32.xlu0 %v685
    %v687 = vpop.xlane.xlu0 %686
    %v688 = vsel %vm633, %v671, 0.0
    %689 = vadd.xlane.f32.xlu0 %v688
    %v690 = vpop.xlane.xlu0 %689
    %v691 = vsel %vm633, %v673, 0.0
    %692 = vadd.xlane.f32.xlu0 %v691
    %v693 = vpop.xlane.xlu0 %692
    %v694 = vsel %vm633, %v675, 0.0
    %695 = vadd.xlane.f32.xlu0 %v694
    %v696 = vpop.xlane.xlu0 %695
    %v697 = vsel %vm633, %v677, 0.0
    %698 = vadd.xlane.f32.xlu0 %v697
    %v699 = vpop.xlane.xlu0 %698
    %v700 = vsel %vm633, %v679, 0.0
    %701 = vadd.xlane.f32.xlu0 %v700
    %v702 = vpop.xlane.xlu0 %701
    %v703 = vsel %vm633, %v681, 0.0
    %704 = vadd.xlane.f32.xlu0 %v703
    %v705 = vpop.xlane.xlu0 %704
    %v706 = vrcp.pop %v684
    %v707 = vrcp.pop %v687
    %v708 = vrcp.pop %v690
    %v709 = vrcp.pop %v693
    %v710 = vrcp.pop %v696
    %v711 = vrcp.pop %v699
    %v712 = vrcp.pop %v702
    %v713 = vrcp.pop %v705
    %v714 = vmul.f32 %v667, %v706
    %v715 = vmul.f32 %v669, %v707
    %v716 = vmul.f32 %v671, %v708
    %v717 = vmul.f32 %v673, %v709
    %v718 = vmul.f32 %v675, %v710
    %v719 = vmul.f32 %v677, %v711
    %v720 = vmul.f32 %v679, %v712
    %v721 = vmul.f32 %v681, %v713
    %722 = vrot.lane.b32.xlu0 %v279, 64
    %v723 = vpop.permute.xlu0 %722
    %724 = vrot.lane.b32.xlu0 %v284, 64
    %v725 = vpop.permute.xlu0 %724
    %v729 = vsel %vm633, %v714, 0
    %v732 = vsel %vm633, %v715, 0
    %734 = vmatprep.subr.mxu0 0.0
    %735 = vmatpush1.msra.mxu0 %v723
    %736 = vmatprep.subr.mxu0 0.0
    %737 = vmatpush1.msra.mxu0 %v725
    %738 = vmatprep.subr.mxu0 0.0
    %739 = vmatpush1.msra.mxu0 0.0
    %740 = vmatprep.subr.mxu0 0.0
    %741 = vmatpush1.msra.mxu0 0.0
    %742 = vmatprep.subr.mxu0 0.0
    %743 = vmatpush1.msra.mxu0 0.0
    %744 = vmatprep.subr.mxu0 0.0
    %745 = vmatpush1.msra.mxu0 0.0
    %746 = vmatprep.subr.mxu0 0.0
    %747 = vmatpush1.msra.mxu0 0.0
    %748 = vmatprep.subr.mxu0 0.0
    %749 = vmatpush1.msra.mxu0 0.0
    %750 = vmatprep.subr.mxu0 0.0
    %751 = vmatpush1.msra.mxu0 0.0
    %752 = vmatprep.subr.mxu0 0.0
    %753 = vmatpush1.msra.mxu0 0.0
    %754 = vmatprep.subr.mxu0 0.0
    %755 = vmatpush1.msra.mxu0 0.0
    %756 = vmatprep.subr.mxu0 0.0
    %757 = vmatpush1.msra.mxu0 0.0
    %758 = vmatprep.subr.mxu0 0.0
    %759 = vmatpush1.msra.mxu0 0.0
    %760 = vmatprep.subr.mxu0 0.0
    %761 = vmatpush1.msra.mxu0 0.0
    %762 = vmatprep.subr.mxu0 0.0
    %763 = vmatpush1.msra.mxu0 0.0
    %764 = vmatprep.subr.mxu0 0.0
    %765 = vmatpush1.msra.mxu0 0.0
    %766 = vmatprep.subr.mxu0 0.0
    %767 = vmatpush1.msra.mxu0 0.0
    %768 = vmatprep.subr.mxu0 0.0
    %769 = vmatpush1.msra.mxu0 0.0
    %770 = vmatprep.subr.mxu0 0.0
    %771 = vmatpush1.msra.mxu0 0.0
    %772 = vmatprep.subr.mxu0 0.0
    %773 = vmatpush1.msra.mxu0 0.0
    %774 = vmatprep.subr.mxu0 0.0
    %775 = vmatpush1.msra.mxu0 0.0
    %776 = vmatprep.subr.mxu0 0.0
    %777 = vmatpush1.msra.mxu0 0.0
    %778 = vmatprep.subr.mxu0 0.0
    %779 = vmatpush1.msra.mxu0 0.0
    %780 = vmatprep.subr.mxu0 0.0
    %781 = vmatpush1.msra.mxu0 0.0
    %782 = vmatprep.subr.mxu0 0.0
    %783 = vmatpush1.msra.mxu0 0.0
    %784 = vmatprep.subr.mxu0 0.0
    %785 = vmatpush1.msra.mxu0 0.0
    %786 = vmatprep.subr.mxu0 0.0
    %787 = vmatpush1.msra.mxu0 0.0
    %788 = vmatprep.subr.mxu0 0.0
    %789 = vmatpush1.msra.mxu0 0.0
    %790 = vmatprep.subr.mxu0 0.0
    %791 = vmatpush1.msra.mxu0 0.0
    %792 = vmatprep.subr.mxu0 0.0
    %793 = vmatpush1.msra.mxu0 0.0
    %794 = vmatprep.subr.mxu0 0.0
    %795 = vmatpush1.msra.mxu0 0.0
    %796 = vmatprep.subr.mxu0 0.0
    %797 = vmatpush1.msra.mxu0 0.0
    %798 = vmatprep.mubr.f32.mxu0 0.0
    %799 = vmatmul.mubr.f32.gmra.mrb[0].mxu0 %v729
    %v800 = vpop.f32.mrb[0].mxu0
    %v801 = vadd.f32 0.0, %v800
    %v802 = vpop.f32.mrb[0].mxu0
    %803 = vmatprep.mubr.f32.mxu0 0.0
    %804 = vmatmul.mubr.f32.gmra.mrb[0].mxu0 %v732
    %v805 = vpop.f32.mrb[0].mxu0
    %v806 = vadd.f32 0.0, %v805
    %v807 = vpop.f32.mrb[0].mxu0
    %808 = vdwg.mxu0
    %v810 = vsel %vm633, %v716, 0
    %v813 = vsel %vm633, %v717, 0
    %815 = vmatprep.subr.mxu0 0.0
    %816 = vmatpush1.msra.mxu0 %v723
    %817 = vmatprep.subr.mxu0 0.0
    %818 = vmatpush1.msra.mxu0 %v725
    %819 = vmatprep.subr.mxu0 0.0
    %820 = vmatpush1.msra.mxu0 0.0
    %821 = vmatprep.subr.mxu0 0.0
    %822 = vmatpush1.msra.mxu0 0.0
    %823 = vmatprep.subr.mxu0 0.0
    %824 = vmatpush1.msra.mxu0 0.0
    %825 = vmatprep.subr.mxu0 0.0
    %826 = vmatpush1.msra.mxu0 0.0
    %827 = vmatprep.subr.mxu0 0.0
    %828 = vmatpush1.msra.mxu0 0.0
    %829 = vmatprep.subr.mxu0 0.0
    %830 = vmatpush1.msra.mxu0 0.0
    %831 = vmatprep.subr.mxu0 0.0
    %832 = vmatpush1.msra.mxu0 0.0
    %833 = vmatprep.subr.mxu0 0.0
    %834 = vmatpush1.msra.mxu0 0.0
    %835 = vmatprep.subr.mxu0 0.0
    %836 = vmatpush1.msra.mxu0 0.0
    %837 = vmatprep.subr.mxu0 0.0
    %838 = vmatpush1.msra.mxu0 0.0
    %839 = vmatprep.subr.mxu0 0.0
    %840 = vmatpush1.msra.mxu0 0.0
    %841 = vmatprep.subr.mxu0 0.0
    %842 = vmatpush1.msra.mxu0 0.0
    %843 = vmatprep.subr.mxu0 0.0
    %844 = vmatpush1.msra.mxu0 0.0
    %845 = vmatprep.subr.mxu0 0.0
    %846 = vmatpush1.msra.mxu0 0.0
    %847 = vmatprep.subr.mxu0 0.0
    %848 = vmatpush1.msra.mxu0 0.0
    %849 = vmatprep.subr.mxu0 0.0
    %850 = vmatpush1.msra.mxu0 0.0
    %851 = vmatprep.subr.mxu0 0.0
    %852 = vmatpush1.msra.mxu0 0.0
    %853 = vmatprep.subr.mxu0 0.0
    %854 = vmatpush1.msra.mxu0 0.0
    %855 = vmatprep.subr.mxu0 0.0
    %856 = vmatpush1.msra.mxu0 0.0
    %857 = vmatprep.subr.mxu0 0.0
    %858 = vmatpush1.msra.mxu0 0.0
    %859 = vmatprep.subr.mxu0 0.0
    %860 = vmatpush1.msra.mxu0 0.0
    %861 = vmatprep.subr.mxu0 0.0
    %862 = vmatpush1.msra.mxu0 0.0
    %863 = vmatprep.subr.mxu0 0.0
    %864 = vmatpush1.msra.mxu0 0.0
    %865 = vmatprep.subr.mxu0 0.0
    %866 = vmatpush1.msra.mxu0 0.0
    %867 = vmatprep.subr.mxu0 0.0
    %868 = vmatpush1.msra.mxu0 0.0
    %869 = vmatprep.subr.mxu0 0.0
    %870 = vmatpush1.msra.mxu0 0.0
    %871 = vmatprep.subr.mxu0 0.0
    %872 = vmatpush1.msra.mxu0 0.0
    %873 = vmatprep.subr.mxu0 0.0
    %874 = vmatpush1.msra.mxu0 0.0
    %875 = vmatprep.subr.mxu0 0.0
    %876 = vmatpush1.msra.mxu0 0.0
    %877 = vmatprep.subr.mxu0 0.0
    %878 = vmatpush1.msra.mxu0 0.0
    %879 = vmatprep.mubr.f32.mxu0 0.0
    %880 = vmatmul.mubr.f32.gmra.mrb[0].mxu0 %v810
    %v881 = vpop.f32.mrb[0].mxu0
    %v882 = vadd.f32 0.0, %v881
    %v883 = vpop.f32.mrb[0].mxu0
    %884 = vmatprep.mubr.f32.mxu0 0.0
    %885 = vmatmul.mubr.f32.gmra.mrb[0].mxu0 %v813
    %v886 = vpop.f32.mrb[0].mxu0
    %v887 = vadd.f32 0.0, %v886
    %v888 = vpop.f32.mrb[0].mxu0
    %889 = vdwg.mxu0
    %v891 = vsel %vm633, %v718, 0
    %v894 = vsel %vm633, %v719, 0
    %896 = vmatprep.subr.mxu0 0.0
    %897 = vmatpush1.msra.mxu0 %v723
    %898 = vmatprep.subr.mxu0 0.0
    %899 = vmatpush1.msra.mxu0 %v725
    %900 = vmatprep.subr.mxu0 0.0
    %901 = vmatpush1.msra.mxu0 0.0
    %902 = vmatprep.subr.mxu0 0.0
    %903 = vmatpush1.msra.mxu0 0.0
    %904 = vmatprep.subr.mxu0 0.0
    %905 = vmatpush1.msra.mxu0 0.0
    %906 = vmatprep.subr.mxu0 0.0
    %907 = vmatpush1.msra.mxu0 0.0
    %908 = vmatprep.subr.mxu0 0.0
    %909 = vmatpush1.msra.mxu0 0.0
    %910 = vmatprep.subr.mxu0 0.0
    %911 = vmatpush1.msra.mxu0 0.0
    %912 = vmatprep.subr.mxu0 0.0
    %913 = vmatpush1.msra.mxu0 0.0
    %914 = vmatprep.subr.mxu0 0.0
    %915 = vmatpush1.msra.mxu0 0.0
    %916 = vmatprep.subr.mxu0 0.0
    %917 = vmatpush1.msra.mxu0 0.0
    %918 = vmatprep.subr.mxu0 0.0
    %919 = vmatpush1.msra.mxu0 0.0
    %920 = vmatprep.subr.mxu0 0.0
    %921 = vmatpush1.msra.mxu0 0.0
    %922 = vmatprep.subr.mxu0 0.0
    %923 = vmatpush1.msra.mxu0 0.0
    %924 = vmatprep.subr.mxu0 0.0
    %925 = vmatpush1.msra.mxu0 0.0
    %926 = vmatprep.subr.mxu0 0.0
    %927 = vmatpush1.msra.mxu0 0.0
    %928 = vmatprep.subr.mxu0 0.0
    %929 = vmatpush1.msra.mxu0 0.0
    %930 = vmatprep.subr.mxu0 0.0
    %931 = vmatpush1.msra.mxu0 0.0
    %932 = vmatprep.subr.mxu0 0.0
    %933 = vmatpush1.msra.mxu0 0.0
    %934 = vmatprep.subr.mxu0 0.0
    %935 = vmatpush1.msra.mxu0 0.0
    %936 = vmatprep.subr.mxu0 0.0
    %937 = vmatpush1.msra.mxu0 0.0
    %938 = vmatprep.subr.mxu0 0.0
    %939 = vmatpush1.msra.mxu0 0.0
    %940 = vmatprep.subr.mxu0 0.0
    %941 = vmatpush1.msra.mxu0 0.0
    %942 = vmatprep.subr.mxu0 0.0
    %943 = vmatpush1.msra.mxu0 0.0
    %944 = vmatprep.subr.mxu0 0.0
    %945 = vmatpush1.msra.mxu0 0.0
    %946 = vmatprep.subr.mxu0 0.0
    %947 = vmatpush1.msra.mxu0 0.0
    %948 = vmatprep.subr.mxu0 0.0
    %949 = vmatpush1.msra.mxu0 0.0
    %950 = vmatprep.subr.mxu0 0.0
    %951 = vmatpush1.msra.mxu0 0.0
    %952 = vmatprep.subr.mxu0 0.0
    %953 = vmatpush1.msra.mxu0 0.0
    %954 = vmatprep.subr.mxu0 0.0
    %955 = vmatpush1.msra.mxu0 0.0
    %956 = vmatprep.subr.mxu0 0.0
    %957 = vmatpush1.msra.mxu0 0.0
    %958 = vmatprep.subr.mxu0 0.0
    %959 = vmatpush1.msra.mxu0 0.0
    %960 = vmatprep.mubr.f32.mxu0 0.0
    %961 = vmatmul.mubr.f32.gmra.mrb[0].mxu0 %v891
    %v962 = vpop.f32.mrb[0].mxu0
    %v963 = vadd.f32 0.0, %v962
    %v964 = vpop.f32.mrb[0].mxu0
    %965 = vmatprep.mubr.f32.mxu0 0.0
    %966 = vmatmul.mubr.f32.gmra.mrb[0].mxu0 %v894
    %v967 = vpop.f32.mrb[0].mxu0
    %v968 = vadd.f32 0.0, %v967
    %v969 = vpop.f32.mrb[0].mxu0
    %970 = vdwg.mxu0
    %v972 = vsel %vm633, %v720, 0
    %v975 = vsel %vm633, %v721, 0
    %977 = vmatprep.subr.mxu0 0.0
    %978 = vmatpush1.msra.mxu0 %v723
    %979 = vmatprep.subr.mxu0 0.0
    %980 = vmatpush1.msra.mxu0 %v725
    %981 = vmatprep.subr.mxu0 0.0
    %982 = vmatpush1.msra.mxu0 0.0
    %983 = vmatprep.subr.mxu0 0.0
    %984 = vmatpush1.msra.mxu0 0.0
    %985 = vmatprep.subr.mxu0 0.0
    %986 = vmatpush1.msra.mxu0 0.0
    %987 = vmatprep.subr.mxu0 0.0
    %988 = vmatpush1.msra.mxu0 0.0
    %989 = vmatprep.subr.mxu0 0.0
    %990 = vmatpush1.msra.mxu0 0.0
    %991 = vmatprep.subr.mxu0 0.0
    %992 = vmatpush1.msra.mxu0 0.0
    %993 = vmatprep.subr.mxu0 0.0
    %994 = vmatpush1.msra.mxu0 0.0
    %995 = vmatprep.subr.mxu0 0.0
    %996 = vmatpush1.msra.mxu0 0.0
    %997 = vmatprep.subr.mxu0 0.0
    %998 = vmatpush1.msra.mxu0 0.0
    %999 = vmatprep.subr.mxu0 0.0
    %1000 = vmatpush1.msra.mxu0 0.0
    %1001 = vmatprep.subr.mxu0 0.0
    %1002 = vmatpush1.msra.mxu0 0.0
    %1003 = vmatprep.subr.mxu0 0.0
    %1004 = vmatpush1.msra.mxu0 0.0
    %1005 = vmatprep.subr.mxu0 0.0
    %1006 = vmatpush1.msra.mxu0 0.0
    %1007 = vmatprep.subr.mxu0 0.0
    %1008 = vmatpush1.msra.mxu0 0.0
    %1009 = vmatprep.subr.mxu0 0.0
    %1010 = vmatpush1.msra.mxu0 0.0
    %1011 = vmatprep.subr.mxu0 0.0
    %1012 = vmatpush1.msra.mxu0 0.0
    %1013 = vmatprep.subr.mxu0 0.0
    %1014 = vmatpush1.msra.mxu0 0.0
    %1015 = vmatprep.subr.mxu0 0.0
    %1016 = vmatpush1.msra.mxu0 0.0
    %1017 = vmatprep.subr.mxu0 0.0
    %1018 = vmatpush1.msra.mxu0 0.0
    %1019 = vmatprep.subr.mxu0 0.0
    %1020 = vmatpush1.msra.mxu0 0.0
    %1021 = vmatprep.subr.mxu0 0.0
    %1022 = vmatpush1.msra.mxu0 0.0
    %1023 = vmatprep.subr.mxu0 0.0
    %1024 = vmatpush1.msra.mxu0 0.0
    %1025 = vmatprep.subr.mxu0 0.0
    %1026 = vmatpush1.msra.mxu0 0.0
    %1027 = vmatprep.subr.mxu0 0.0
    %1028 = vmatpush1.msra.mxu0 0.0
    %1029 = vmatprep.subr.mxu0 0.0
    %1030 = vmatpush1.msra.mxu0 0.0
    %1031 = vmatprep.subr.mxu0 0.0
    %1032 = vmatpush1.msra.mxu0 0.0
    %1033 = vmatprep.subr.mxu0 0.0
    %1034 = vmatpush1.msra.mxu0 0.0
    %1035 = vmatprep.subr.mxu0 0.0
    %1036 = vmatpush1.msra.mxu0 0.0
    %1037 = vmatprep.subr.mxu0 0.0
    %1038 = vmatpush1.msra.mxu0 0.0
    %1039 = vmatprep.subr.mxu0 0.0
    %1040 = vmatpush1.msra.mxu0 0.0
    %1041 = vmatprep.mubr.f32.mxu0 0.0
    %1042 = vmatmul.mubr.f32.gmra.mrb[0].mxu0 %v972
    %v1043 = vpop.f32.mrb[0].mxu0
    %v1044 = vadd.f32 0.0, %v1043
    %v1045 = vpop.f32.mrb[0].mxu0
    %1046 = vmatprep.mubr.f32.mxu0 0.0
    %1047 = vmatmul.mubr.f32.gmra.mrb[0].mxu0 %v975
    %v1048 = vpop.f32.mrb[0].mxu0
    %v1049 = vadd.f32 0.0, %v1048
    %v1050 = vpop.f32.mrb[0].mxu0
    %1051 = vdwg.mxu0
    %v1052 = vmul.f32 %v801, %v53
    %v1053 = vmul.f32 %v806, %v53
    %v1054 = vmul.f32 %v882, %v54
    %v1055 = vmul.f32 %v887, %v54
    %v1056 = vmul.f32 %v963, %v55
    %v1057 = vmul.f32 %v968, %v55
    %v1058 = vmul.f32 %v1044, %v56
    %v1059 = vmul.f32 %v1049, %v56
    %v1060 = vsel %vm69, %v1052, 0.0
    %v1061 = vsel %vm69, %v1054, 0.0
    %v1062 = vadd.f32 %v1060, %v1061
    %v1063 = vsel %vm69, %v1056, 0.0
    %v1064 = vadd.f32 %v1062, %v1063
    %v1065 = vsel %vm69, %v1058, 0.0
    %v1066 = vadd.f32 %v1064, %v1065
    %v1067 = vsel %vm69, %v1053, 0.0
    %v1068 = vsel %vm69, %v1055, 0.0
    %v1069 = vadd.f32 %v1067, %v1068
    %v1070 = vsel %vm69, %v1057, 0.0
    %v1071 = vadd.f32 %v1069, %v1070
    %v1072 = vsel %vm69, %v1059, 0.0
    %v1073 = vadd.f32 %v1071, %v1072
    %v1074 = vlaneseq
    %v1075 = vshrl.u32 %v1074, 7
    %v1076 = vsub.s32 1, %v1075
    %v1077 = vrot.slane %v33, %v1076
    %v1079 = vsel %vm69, %v1066, 0
    %v1082 = vsel %vm69, %v1073, 0
    %1084 = vmatprep.subr.mxu0 0.0
    %1085 = vmatpush1.msra.mxu0 %v287
    %1086 = vmatprep.subr.mxu0 0.0
    %1087 = vmatpush1.msra.mxu0 %v288
    %1088 = vmatprep.subr.mxu0 0.0
    %1089 = vmatpush1.msra.mxu0 %v289
    %1090 = vmatprep.subr.mxu0 0.0
    %1091 = vmatpush1.msra.mxu0 %v290
    %1092 = vmatprep.subr.mxu0 0.0
    %1093 = vmatpush1.msra.mxu0 0.0
    %1094 = vmatprep.subr.mxu0 0.0
    %1095 = vmatpush1.msra.mxu0 0.0
    %1096 = vmatprep.subr.mxu0 0.0
    %1097 = vmatpush1.msra.mxu0 0.0
    %1098 = vmatprep.subr.mxu0 0.0
    %1099 = vmatpush1.msra.mxu0 0.0
    %1100 = vmatprep.subr.mxu0 0.0
    %1101 = vmatpush1.msra.mxu0 0.0
    %1102 = vmatprep.subr.mxu0 0.0
    %1103 = vmatpush1.msra.mxu0 0.0
    %1104 = vmatprep.subr.mxu0 0.0
    %1105 = vmatpush1.msra.mxu0 0.0
    %1106 = vmatprep.subr.mxu0 0.0
    %1107 = vmatpush1.msra.mxu0 0.0
    %1108 = vmatprep.subr.mxu0 0.0
    %1109 = vmatpush1.msra.mxu0 0.0
    %1110 = vmatprep.subr.mxu0 0.0
    %1111 = vmatpush1.msra.mxu0 0.0
    %1112 = vmatprep.subr.mxu0 0.0
    %1113 = vmatpush1.msra.mxu0 0.0
    %1114 = vmatprep.subr.mxu0 0.0
    %1115 = vmatpush1.msra.mxu0 0.0
    %1116 = vmatprep.subr.mxu0 0.0
    %1117 = vmatpush1.msra.mxu0 0.0
    %1118 = vmatprep.subr.mxu0 0.0
    %1119 = vmatpush1.msra.mxu0 0.0
    %1120 = vmatprep.subr.mxu0 0.0
    %1121 = vmatpush1.msra.mxu0 0.0
    %1122 = vmatprep.subr.mxu0 0.0
    %1123 = vmatpush1.msra.mxu0 0.0
    %1124 = vmatprep.subr.mxu0 0.0
    %1125 = vmatpush1.msra.mxu0 0.0
    %1126 = vmatprep.subr.mxu0 0.0
    %1127 = vmatpush1.msra.mxu0 0.0
    %1128 = vmatprep.subr.mxu0 0.0
    %1129 = vmatpush1.msra.mxu0 0.0
    %1130 = vmatprep.subr.mxu0 0.0
    %1131 = vmatpush1.msra.mxu0 0.0
    %1132 = vmatprep.subr.mxu0 0.0
    %1133 = vmatpush1.msra.mxu0 0.0
    %1134 = vmatprep.subr.mxu0 0.0
    %1135 = vmatpush1.msra.mxu0 0.0
    %1136 = vmatprep.subr.mxu0 0.0
    %1137 = vmatpush1.msra.mxu0 0.0
    %1138 = vmatprep.subr.mxu0 0.0
    %1139 = vmatpush1.msra.mxu0 0.0
    %1140 = vmatprep.subr.mxu0 0.0
    %1141 = vmatpush1.msra.mxu0 0.0
    %1142 = vmatprep.subr.mxu0 0.0
    %1143 = vmatpush1.msra.mxu0 0.0
    %1144 = vmatprep.subr.mxu0 0.0
    %1145 = vmatpush1.msra.mxu0 0.0
    %1146 = vmatprep.subr.mxu0 0.0
    %1147 = vmatpush1.msra.mxu0 0.0
    %1148 = vmatprep.mubr.f32.mxu0 0.0
    %1149 = vmatmul.mubr.f32.gmra.mrb[0].mxu0 %v1079
    %v1150 = vpop.f32.mrb[0].mxu0
    %v1151 = vadd.f32 %v1077, %v1150
    %v1152 = vpop.f32.mrb[0].mxu0
    %1153 = vmatprep.mubr.f32.mxu0 0.0
    %1154 = vmatmul.mubr.f32.gmra.mrb[0].mxu0 %v1082
    %v1155 = vpop.f32.mrb[0].mxu0
    %v1156 = vadd.f32 %v1077, %v1155
    %v1157 = vpop.f32.mrb[0].mxu0
    %1158 = vdwg.mxu0
    %v1159 = vadd.f32 %v24, %v1151
    %v1160 = vadd.f32 %v25, %v1156
    %v1161 = vsel %vm69, %v1159, 0.0
    %1162 = vadd.xlane.f32.xlu0 %v1161
    %v1163 = vpop.xlane.xlu0 %1162
    %v1164 = vsel %vm69, %v1160, 0.0
    %1165 = vadd.xlane.f32.xlu0 %v1164
    %v1166 = vpop.xlane.xlu0 %1165
    %v1167 = vmul.f32 %v1163, %v165
    %v1168 = vmul.f32 %v1166, %v165
    %v1169 = vsub.f32 %v1159, %v1167
    %v1170 = vsub.f32 %v1160, %v1168
    %v1171 = vmul.f32 %v1169, %v1169
    %v1172 = vmul.f32 %v1170, %v1170
    %v1173 = vsel %vm69, %v1171, 0.0
    %1174 = vadd.xlane.f32.xlu0 %v1173
    %v1175 = vpop.xlane.xlu0 %1174
    %v1176 = vsel %vm69, %v1172, 0.0
    %1177 = vadd.xlane.f32.xlu0 %v1176
    %v1178 = vpop.xlane.xlu0 %1177
    %v1179 = vmul.f32 %v1175, %v165
    %v1180 = vmul.f32 %v1178, %v165
    %v1181 = vadd.f32 %v1179, 1e-05
    %v1182 = vadd.f32 %v1180, 1e-05
    %v1183 = vrsqrt.pop %v1181
    %v1184 = vrsqrt.pop %v1182
    %v1185 = vmul.f32 %v1169, %v1183
    %v1186 = vmul.f32 %v1170, %v1184
    %v1187 = vlaneseq
    %v1188 = vshrl.u32 %v1187, 7
    %v1189 = vsub.s32 1, %v1188
    %v1190 = vrot.slane %v34, %v1189
    %v1191 = vmul.f32 %v1185, %v1190
    %v1192 = vmul.f32 %v1186, %v1190
    %v1193 = vlaneseq
    %v1194 = vshrl.u32 %v1193, 7
    %v1195 = vsub.s32 2, %v1194
    %v1196 = vrot.slane %v34, %v1195
    %v1197 = vadd.f32 %v1191, %v1196
    %v1198 = vadd.f32 %v1192, %v1196
    %v1199 = vld [vmem:[%s4 + $0x40] sm:$0xff]
    %v1200 = vld [vmem:[%s4 + $0x48] sm:$0xff]
    %v1201 = vld [vmem:[%s4 + $0x50] sm:$0xff]
    %v1202 = vld [vmem:[%s4 + $0x58] sm:$0xff]
    %v1203 = vlaneseq
    %v1204 = vshrl.u32 %v1203, 7
    %v1205 = vsub.s32 2, %v1204
    %v1206 = vrot.slane %v33, %v1205
    %v1208 = vsel %vm69, %v1197, 0
    %v1211 = vsel %vm69, %v1198, 0
    %1213 = vmatprep.subr.mxu0 0.0
    %1214 = vmatpush1.msra.mxu0 %v1199
    %1215 = vmatprep.subr.mxu0 0.0
    %1216 = vmatpush1.msra.mxu0 %v1200
    %1217 = vmatprep.subr.mxu0 0.0
    %1218 = vmatpush1.msra.mxu0 %v1201
    %1219 = vmatprep.subr.mxu0 0.0
    %1220 = vmatpush1.msra.mxu0 %v1202
    %1221 = vmatprep.subr.mxu0 0.0
    %1222 = vmatpush1.msra.mxu0 0.0
    %1223 = vmatprep.subr.mxu0 0.0
    %1224 = vmatpush1.msra.mxu0 0.0
    %1225 = vmatprep.subr.mxu0 0.0
    %1226 = vmatpush1.msra.mxu0 0.0
    %1227 = vmatprep.subr.mxu0 0.0
    %1228 = vmatpush1.msra.mxu0 0.0
    %1229 = vmatprep.subr.mxu0 0.0
    %1230 = vmatpush1.msra.mxu0 0.0
    %1231 = vmatprep.subr.mxu0 0.0
    %1232 = vmatpush1.msra.mxu0 0.0
    %1233 = vmatprep.subr.mxu0 0.0
    %1234 = vmatpush1.msra.mxu0 0.0
    %1235 = vmatprep.subr.mxu0 0.0
    %1236 = vmatpush1.msra.mxu0 0.0
    %1237 = vmatprep.subr.mxu0 0.0
    %1238 = vmatpush1.msra.mxu0 0.0
    %1239 = vmatprep.subr.mxu0 0.0
    %1240 = vmatpush1.msra.mxu0 0.0
    %1241 = vmatprep.subr.mxu0 0.0
    %1242 = vmatpush1.msra.mxu0 0.0
    %1243 = vmatprep.subr.mxu0 0.0
    %1244 = vmatpush1.msra.mxu0 0.0
    %1245 = vmatprep.subr.mxu0 0.0
    %1246 = vmatpush1.msra.mxu0 0.0
    %1247 = vmatprep.subr.mxu0 0.0
    %1248 = vmatpush1.msra.mxu0 0.0
    %1249 = vmatprep.subr.mxu0 0.0
    %1250 = vmatpush1.msra.mxu0 0.0
    %1251 = vmatprep.subr.mxu0 0.0
    %1252 = vmatpush1.msra.mxu0 0.0
    %1253 = vmatprep.subr.mxu0 0.0
    %1254 = vmatpush1.msra.mxu0 0.0
    %1255 = vmatprep.subr.mxu0 0.0
    %1256 = vmatpush1.msra.mxu0 0.0
    %1257 = vmatprep.subr.mxu0 0.0
    %1258 = vmatpush1.msra.mxu0 0.0
    %1259 = vmatprep.subr.mxu0 0.0
    %1260 = vmatpush1.msra.mxu0 0.0
    %1261 = vmatprep.subr.mxu0 0.0
    %1262 = vmatpush1.msra.mxu0 0.0
    %1263 = vmatprep.subr.mxu0 0.0
    %1264 = vmatpush1.msra.mxu0 0.0
    %1265 = vmatprep.subr.mxu0 0.0
    %1266 = vmatpush1.msra.mxu0 0.0
    %1267 = vmatprep.subr.mxu0 0.0
    %1268 = vmatpush1.msra.mxu0 0.0
    %1269 = vmatprep.subr.mxu0 0.0
    %1270 = vmatpush1.msra.mxu0 0.0
    %1271 = vmatprep.subr.mxu0 0.0
    %1272 = vmatpush1.msra.mxu0 0.0
    %1273 = vmatprep.subr.mxu0 0.0
    %1274 = vmatpush1.msra.mxu0 0.0
    %1275 = vmatprep.subr.mxu0 0.0
    %1276 = vmatpush1.msra.mxu0 0.0
    %1277 = vmatprep.mubr.f32.mxu0 0.0
    %1278 = vmatmul.mubr.f32.gmra.mrb[0].mxu0 %v1208
    %v1279 = vpop.f32.mrb[0].mxu0
    %v1280 = vadd.f32 %v1206, %v1279
    %v1281 = vpop.f32.mrb[0].mxu0
    %1282 = vmatprep.mubr.f32.mxu0 0.0
    %1283 = vmatmul.mubr.f32.gmra.mrb[0].mxu0 %v1211
    %v1284 = vpop.f32.mrb[0].mxu0
    %v1285 = vadd.f32 %v1206, %v1284
    %v1286 = vpop.f32.mrb[0].mxu0
    %1287 = vdwg.mxu0
    %v1288 = vld [vmem:[%s4 + $0x80] sm:$0xff]
    %v1289 = vld [vmem:[%s4 + $0x88] sm:$0xff]
    %v1290 = vld [vmem:[%s4 + $0x90] sm:$0xff]
    %v1291 = vld [vmem:[%s4 + $0x98] sm:$0xff]
    %v1292 = vmul.f32 %v1280, %v57
    %v1293 = vmul.f32 %v1285, %v57
    %v1294 = vmul.f32 %v1280, %v58
    %v1295 = vmul.f32 %v1285, %v58
    %v1296 = vmul.f32 %v1280, %v59
    %v1297 = vmul.f32 %v1285, %v59
    %v1298 = vmul.f32 %v1280, %v60
    %v1299 = vmul.f32 %v1285, %v60
    %v1301 = vsel %vm69, %v1292, 0
    %v1304 = vsel %vm69, %v1293, 0
    %v1307 = vsel %vm69, %v146, 0
    %v1310 = vsel %vm69, %v151, 0
    %v1313 = vsel %vm69, %v156, 0
    %1315 = vmatprep.subr.mxu0 0.0
    %1316 = vmatpush1.xpose.msra.mxu0 %v1307
    %1317 = vmatprep.subr.mxu0 0.0
    %1318 = vmatpush1.xpose.msra.mxu0 %v1310
    %1319 = vmatprep.subr.mxu0 0.0
    %1320 = vmatpush1.xpose.msra.mxu0 %v1313
    %1321 = vmatprep.subr.mxu0 0.0
    %1322 = vmatpush1.xpose.msra.mxu0 0.0
    %1323 = vmatprep.subr.mxu0 0.0
    %1324 = vmatpush1.xpose.msra.mxu0 0.0
    %1325 = vmatprep.subr.mxu0 0.0
    %1326 = vmatpush1.xpose.msra.mxu0 0.0
    %1327 = vmatprep.subr.mxu0 0.0
    %1328 = vmatpush1.xpose.msra.mxu0 0.0
    %1329 = vmatprep.subr.mxu0 0.0
    %1330 = vmatpush1.xpose.msra.mxu0 0.0
    %1331 = vmatprep.subr.mxu0 0.0
    %1332 = vmatpush1.xpose.msra.mxu0 0.0
    %1333 = vmatprep.subr.mxu0 0.0
    %1334 = vmatpush1.xpose.msra.mxu0 0.0
    %1335 = vmatprep.subr.mxu0 0.0
    %1336 = vmatpush1.xpose.msra.mxu0 0.0
    %1337 = vmatprep.subr.mxu0 0.0
    %1338 = vmatpush1.xpose.msra.mxu0 0.0
    %1339 = vmatprep.subr.mxu0 0.0
    %1340 = vmatpush1.xpose.msra.mxu0 0.0
    %1341 = vmatprep.subr.mxu0 0.0
    %1342 = vmatpush1.xpose.msra.mxu0 0.0
    %1343 = vmatprep.subr.mxu0 0.0
    %1344 = vmatpush1.xpose.msra.mxu0 0.0
    %1345 = vmatprep.subr.mxu0 0.0
    %1346 = vmatpush1.xpose.msra.mxu0 0.0
    %1347 = vmatprep.subr.mxu0 0.0
    %1348 = vmatpush1.xpose.msra.mxu0 0.0
    %1349 = vmatprep.subr.mxu0 0.0
    %1350 = vmatpush1.xpose.msra.mxu0 0.0
    %1351 = vmatprep.subr.mxu0 0.0
    %1352 = vmatpush1.xpose.msra.mxu0 0.0
    %1353 = vmatprep.subr.mxu0 0.0
    %1354 = vmatpush1.xpose.msra.mxu0 0.0
    %1355 = vmatprep.subr.mxu0 0.0
    %1356 = vmatpush1.xpose.msra.mxu0 0.0
    %1357 = vmatprep.subr.mxu0 0.0
    %1358 = vmatpush1.xpose.msra.mxu0 0.0
    %1359 = vmatprep.subr.mxu0 0.0
    %1360 = vmatpush1.xpose.msra.mxu0 0.0
    %1361 = vmatprep.subr.mxu0 0.0
    %1362 = vmatpush1.xpose.msra.mxu0 0.0
    %1363 = vmatprep.subr.mxu0 0.0
    %1364 = vmatpush1.xpose.msra.mxu0 0.0
    %1365 = vmatprep.subr.mxu0 0.0
    %1366 = vmatpush1.xpose.msra.mxu0 0.0
    %1367 = vmatprep.subr.mxu0 0.0
    %1368 = vmatpush1.xpose.msra.mxu0 0.0
    %1369 = vmatprep.subr.mxu0 0.0
    %1370 = vmatpush1.xpose.msra.mxu0 0.0
    %1371 = vmatprep.subr.mxu0 0.0
    %1372 = vmatpush1.xpose.msra.mxu0 0.0
    %1373 = vmatprep.subr.mxu0 0.0
    %1374 = vmatpush1.xpose.msra.mxu0 0.0
    %1375 = vmatprep.subr.mxu0 0.0
    %1376 = vmatpush1.xpose.msra.mxu0 0.0
    %1377 = vmatprep.subr.mxu0 0.0
    %1378 = vmatpush1.xpose.msra.mxu0 0.0
    %1379 = vmatprep.mubr.f32.mxu0 0.0
    %1380 = vmatmul.mubr.f32.gmra.mrb[0].mxu0 %v1301
    %v1381 = vpop.f32.mrb[0].mxu0
    %v1382 = vadd.f32 %v31, %v1381
    %v1383 = vpop.f32.mrb[0].mxu0
    %1384 = vmatprep.mubr.f32.mxu0 0.0
    %1385 = vmatmul.mubr.f32.gmra.mrb[0].mxu0 %v1304
    %v1386 = vpop.f32.mrb[0].mxu0
    %v1387 = vadd.f32 %v32, %v1386
    %v1388 = vpop.f32.mrb[0].mxu0
    %1389 = vdwg.mxu0
    %v1391 = vsel %vm69, %v1294, 0
    %v1394 = vsel %vm69, %v1295, 0
    %1396 = vmatprep.subr.mxu0 0.0
    %1397 = vmatpush1.xpose.msra.mxu0 %v1307
    %1398 = vmatprep.subr.mxu0 0.0
    %1399 = vmatpush1.xpose.msra.mxu0 %v1310
    %1400 = vmatprep.subr.mxu0 0.0
    %1401 = vmatpush1.xpose.msra.mxu0 %v1313
    %1402 = vmatprep.subr.mxu0 0.0
    %1403 = vmatpush1.xpose.msra.mxu0 0.0
    %1404 = vmatprep.subr.mxu0 0.0
    %1405 = vmatpush1.xpose.msra.mxu0 0.0
    %1406 = vmatprep.subr.mxu0 0.0
    %1407 = vmatpush1.xpose.msra.mxu0 0.0
    %1408 = vmatprep.subr.mxu0 0.0
    %1409 = vmatpush1.xpose.msra.mxu0 0.0
    %1410 = vmatprep.subr.mxu0 0.0
    %1411 = vmatpush1.xpose.msra.mxu0 0.0
    %1412 = vmatprep.subr.mxu0 0.0
    %1413 = vmatpush1.xpose.msra.mxu0 0.0
    %1414 = vmatprep.subr.mxu0 0.0
    %1415 = vmatpush1.xpose.msra.mxu0 0.0
    %1416 = vmatprep.subr.mxu0 0.0
    %1417 = vmatpush1.xpose.msra.mxu0 0.0
    %1418 = vmatprep.subr.mxu0 0.0
    %1419 = vmatpush1.xpose.msra.mxu0 0.0
    %1420 = vmatprep.subr.mxu0 0.0
    %1421 = vmatpush1.xpose.msra.mxu0 0.0
    %1422 = vmatprep.subr.mxu0 0.0
    %1423 = vmatpush1.xpose.msra.mxu0 0.0
    %1424 = vmatprep.subr.mxu0 0.0
    %1425 = vmatpush1.xpose.msra.mxu0 0.0
    %1426 = vmatprep.subr.mxu0 0.0
    %1427 = vmatpush1.xpose.msra.mxu0 0.0
    %1428 = vmatprep.subr.mxu0 0.0
    %1429 = vmatpush1.xpose.msra.mxu0 0.0
    %1430 = vmatprep.subr.mxu0 0.0
    %1431 = vmatpush1.xpose.msra.mxu0 0.0
    %1432 = vmatprep.subr.mxu0 0.0
    %1433 = vmatpush1.xpose.msra.mxu0 0.0
    %1434 = vmatprep.subr.mxu0 0.0
    %1435 = vmatpush1.xpose.msra.mxu0 0.0
    %1436 = vmatprep.subr.mxu0 0.0
    %1437 = vmatpush1.xpose.msra.mxu0 0.0
    %1438 = vmatprep.subr.mxu0 0.0
    %1439 = vmatpush1.xpose.msra.mxu0 0.0
    %1440 = vmatprep.subr.mxu0 0.0
    %1441 = vmatpush1.xpose.msra.mxu0 0.0
    %1442 = vmatprep.subr.mxu0 0.0
    %1443 = vmatpush1.xpose.msra.mxu0 0.0
    %1444 = vmatprep.subr.mxu0 0.0
    %1445 = vmatpush1.xpose.msra.mxu0 0.0
    %1446 = vmatprep.subr.mxu0 0.0
    %1447 = vmatpush1.xpose.msra.mxu0 0.0
    %1448 = vmatprep.subr.mxu0 0.0
    %1449 = vmatpush1.xpose.msra.mxu0 0.0
    %1450 = vmatprep.subr.mxu0 0.0
    %1451 = vmatpush1.xpose.msra.mxu0 0.0
    %1452 = vmatprep.subr.mxu0 0.0
    %1453 = vmatpush1.xpose.msra.mxu0 0.0
    %1454 = vmatprep.subr.mxu0 0.0
    %1455 = vmatpush1.xpose.msra.mxu0 0.0
    %1456 = vmatprep.subr.mxu0 0.0
    %1457 = vmatpush1.xpose.msra.mxu0 0.0
    %1458 = vmatprep.subr.mxu0 0.0
    %1459 = vmatpush1.xpose.msra.mxu0 0.0
    %1460 = vmatprep.mubr.f32.mxu0 0.0
    %1461 = vmatmul.mubr.f32.gmra.mrb[0].mxu0 %v1391
    %v1462 = vpop.f32.mrb[0].mxu0
    %v1463 = vadd.f32 %v31, %v1462
    %v1464 = vpop.f32.mrb[0].mxu0
    %1465 = vmatprep.mubr.f32.mxu0 0.0
    %1466 = vmatmul.mubr.f32.gmra.mrb[0].mxu0 %v1394
    %v1467 = vpop.f32.mrb[0].mxu0
    %v1468 = vadd.f32 %v32, %v1467
    %v1469 = vpop.f32.mrb[0].mxu0
    %1470 = vdwg.mxu0
    %v1472 = vsel %vm69, %v1296, 0
    %v1475 = vsel %vm69, %v1297, 0
    %1477 = vmatprep.subr.mxu0 0.0
    %1478 = vmatpush1.xpose.msra.mxu0 %v1307
    %1479 = vmatprep.subr.mxu0 0.0
    %1480 = vmatpush1.xpose.msra.mxu0 %v1310
    %1481 = vmatprep.subr.mxu0 0.0
    %1482 = vmatpush1.xpose.msra.mxu0 %v1313
    %1483 = vmatprep.subr.mxu0 0.0
    %1484 = vmatpush1.xpose.msra.mxu0 0.0
    %1485 = vmatprep.subr.mxu0 0.0
    %1486 = vmatpush1.xpose.msra.mxu0 0.0
    %1487 = vmatprep.subr.mxu0 0.0
    %1488 = vmatpush1.xpose.msra.mxu0 0.0
    %1489 = vmatprep.subr.mxu0 0.0
    %1490 = vmatpush1.xpose.msra.mxu0 0.0
    %1491 = vmatprep.subr.mxu0 0.0
    %1492 = vmatpush1.xpose.msra.mxu0 0.0
    %1493 = vmatprep.subr.mxu0 0.0
    %1494 = vmatpush1.xpose.msra.mxu0 0.0
    %1495 = vmatprep.subr.mxu0 0.0
    %1496 = vmatpush1.xpose.msra.mxu0 0.0
    %1497 = vmatprep.subr.mxu0 0.0
    %1498 = vmatpush1.xpose.msra.mxu0 0.0
    %1499 = vmatprep.subr.mxu0 0.0
    %1500 = vmatpush1.xpose.msra.mxu0 0.0
    %1501 = vmatprep.subr.mxu0 0.0
    %1502 = vmatpush1.xpose.msra.mxu0 0.0
    %1503 = vmatprep.subr.mxu0 0.0
    %1504 = vmatpush1.xpose.msra.mxu0 0.0
    %1505 = vmatprep.subr.mxu0 0.0
    %1506 = vmatpush1.xpose.msra.mxu0 0.0
    %1507 = vmatprep.subr.mxu0 0.0
    %1508 = vmatpush1.xpose.msra.mxu0 0.0
    %1509 = vmatprep.subr.mxu0 0.0
    %1510 = vmatpush1.xpose.msra.mxu0 0.0
    %1511 = vmatprep.subr.mxu0 0.0
    %1512 = vmatpush1.xpose.msra.mxu0 0.0
    %1513 = vmatprep.subr.mxu0 0.0
    %1514 = vmatpush1.xpose.msra.mxu0 0.0
    %1515 = vmatprep.subr.mxu0 0.0
    %1516 = vmatpush1.xpose.msra.mxu0 0.0
    %1517 = vmatprep.subr.mxu0 0.0
    %1518 = vmatpush1.xpose.msra.mxu0 0.0
    %1519 = vmatprep.subr.mxu0 0.0
    %1520 = vmatpush1.xpose.msra.mxu0 0.0
    %1521 = vmatprep.subr.mxu0 0.0
    %1522 = vmatpush1.xpose.msra.mxu0 0.0
    %1523 = vmatprep.subr.mxu0 0.0
    %1524 = vmatpush1.xpose.msra.mxu0 0.0
    %1525 = vmatprep.subr.mxu0 0.0
    %1526 = vmatpush1.xpose.msra.mxu0 0.0
    %1527 = vmatprep.subr.mxu0 0.0
    %1528 = vmatpush1.xpose.msra.mxu0 0.0
    %1529 = vmatprep.subr.mxu0 0.0
    %1530 = vmatpush1.xpose.msra.mxu0 0.0
    %1531 = vmatprep.subr.mxu0 0.0
    %1532 = vmatpush1.xpose.msra.mxu0 0.0
    %1533 = vmatprep.subr.mxu0 0.0
    %1534 = vmatpush1.xpose.msra.mxu0 0.0
    %1535 = vmatprep.subr.mxu0 0.0
    %1536 = vmatpush1.xpose.msra.mxu0 0.0
    %1537 = vmatprep.subr.mxu0 0.0
    %1538 = vmatpush1.xpose.msra.mxu0 0.0
    %1539 = vmatprep.subr.mxu0 0.0
    %1540 = vmatpush1.xpose.msra.mxu0 0.0
    %1541 = vmatprep.mubr.f32.mxu0 0.0
    %1542 = vmatmul.mubr.f32.gmra.mrb[0].mxu0 %v1472
    %v1543 = vpop.f32.mrb[0].mxu0
    %v1544 = vadd.f32 %v31, %v1543
    %v1545 = vpop.f32.mrb[0].mxu0
    %1546 = vmatprep.mubr.f32.mxu0 0.0
    %1547 = vmatmul.mubr.f32.gmra.mrb[0].mxu0 %v1475
    %v1548 = vpop.f32.mrb[0].mxu0
    %v1549 = vadd.f32 %v32, %v1548
    %v1550 = vpop.f32.mrb[0].mxu0
    %1551 = vdwg.mxu0
    %v1553 = vsel %vm69, %v1298, 0
    %v1556 = vsel %vm69, %v1299, 0
    %1558 = vmatprep.subr.mxu0 0.0
    %1559 = vmatpush1.xpose.msra.mxu0 %v1307
    %1560 = vmatprep.subr.mxu0 0.0
    %1561 = vmatpush1.xpose.msra.mxu0 %v1310
    %1562 = vmatprep.subr.mxu0 0.0
    %1563 = vmatpush1.xpose.msra.mxu0 %v1313
    %1564 = vmatprep.subr.mxu0 0.0
    %1565 = vmatpush1.xpose.msra.mxu0 0.0
    %1566 = vmatprep.subr.mxu0 0.0
    %1567 = vmatpush1.xpose.msra.mxu0 0.0
    %1568 = vmatprep.subr.mxu0 0.0
    %1569 = vmatpush1.xpose.msra.mxu0 0.0
    %1570 = vmatprep.subr.mxu0 0.0
    %1571 = vmatpush1.xpose.msra.mxu0 0.0
    %1572 = vmatprep.subr.mxu0 0.0
    %1573 = vmatpush1.xpose.msra.mxu0 0.0
    %1574 = vmatprep.subr.mxu0 0.0
    %1575 = vmatpush1.xpose.msra.mxu0 0.0
    %1576 = vmatprep.subr.mxu0 0.0
    %1577 = vmatpush1.xpose.msra.mxu0 0.0
    %1578 = vmatprep.subr.mxu0 0.0
    %1579 = vmatpush1.xpose.msra.mxu0 0.0
    %1580 = vmatprep.subr.mxu0 0.0
    %1581 = vmatpush1.xpose.msra.mxu0 0.0
    %1582 = vmatprep.subr.mxu0 0.0
    %1583 = vmatpush1.xpose.msra.mxu0 0.0
    %1584 = vmatprep.subr.mxu0 0.0
    %1585 = vmatpush1.xpose.msra.mxu0 0.0
    %1586 = vmatprep.subr.mxu0 0.0
    %1587 = vmatpush1.xpose.msra.mxu0 0.0
    %1588 = vmatprep.subr.mxu0 0.0
    %1589 = vmatpush1.xpose.msra.mxu0 0.0
    %1590 = vmatprep.subr.mxu0 0.0
    %1591 = vmatpush1.xpose.msra.mxu0 0.0
    %1592 = vmatprep.subr.mxu0 0.0
    %1593 = vmatpush1.xpose.msra.mxu0 0.0
    %1594 = vmatprep.subr.mxu0 0.0
    %1595 = vmatpush1.xpose.msra.mxu0 0.0
    %1596 = vmatprep.subr.mxu0 0.0
    %1597 = vmatpush1.xpose.msra.mxu0 0.0
    %1598 = vmatprep.subr.mxu0 0.0
    %1599 = vmatpush1.xpose.msra.mxu0 0.0
    %1600 = vmatprep.subr.mxu0 0.0
    %1601 = vmatpush1.xpose.msra.mxu0 0.0
    %1602 = vmatprep.subr.mxu0 0.0
    %1603 = vmatpush1.xpose.msra.mxu0 0.0
    %1604 = vmatprep.subr.mxu0 0.0
    %1605 = vmatpush1.xpose.msra.mxu0 0.0
    %1606 = vmatprep.subr.mxu0 0.0
    %1607 = vmatpush1.xpose.msra.mxu0 0.0
    %1608 = vmatprep.subr.mxu0 0.0
    %1609 = vmatpush1.xpose.msra.mxu0 0.0
    %1610 = vmatprep.subr.mxu0 0.0
    %1611 = vmatpush1.xpose.msra.mxu0 0.0
    %1612 = vmatprep.subr.mxu0 0.0
    %1613 = vmatpush1.xpose.msra.mxu0 0.0
    %1614 = vmatprep.subr.mxu0 0.0
    %1615 = vmatpush1.xpose.msra.mxu0 0.0
    %1616 = vmatprep.subr.mxu0 0.0
    %1617 = vmatpush1.xpose.msra.mxu0 0.0
    %1618 = vmatprep.subr.mxu0 0.0
    %1619 = vmatpush1.xpose.msra.mxu0 0.0
    %1620 = vmatprep.subr.mxu0 0.0
    %1621 = vmatpush1.xpose.msra.mxu0 0.0
    %1622 = vmatprep.mubr.f32.mxu0 0.0
    %1623 = vmatmul.mubr.f32.gmra.mrb[0].mxu0 %v1553
    %v1624 = vpop.f32.mrb[0].mxu0
    %v1625 = vadd.f32 %v31, %v1624
    %v1626 = vpop.f32.mrb[0].mxu0
    %1627 = vmatprep.mubr.f32.mxu0 0.0
    %1628 = vmatmul.mubr.f32.gmra.mrb[0].mxu0 %v1556
    %v1629 = vpop.f32.mrb[0].mxu0
    %v1630 = vadd.f32 %v32, %v1629
    %v1631 = vpop.f32.mrb[0].mxu0
    %1632 = vdwg.mxu0
    %vm1633 = vcmask 195584
    %v1634 = vsel %vm1633, %v1382, -inf
    %1635 = vmax.xlane.f32.xlu0 %v1634
    %v1636 = vpop.xlane.xlu0 %1635
    %v1637 = vsel %vm1633, %v1387, -inf
    %1638 = vmax.xlane.f32.xlu0 %v1637
    %v1639 = vpop.xlane.xlu0 %1638
    %v1640 = vsel %vm1633, %v1463, -inf
    %1641 = vmax.xlane.f32.xlu0 %v1640
    %v1642 = vpop.xlane.xlu0 %1641
    %v1643 = vsel %vm1633, %v1468, -inf
    %1644 = vmax.xlane.f32.xlu0 %v1643
    %v1645 = vpop.xlane.xlu0 %1644
    %v1646 = vsel %vm1633, %v1544, -inf
    %1647 = vmax.xlane.f32.xlu0 %v1646
    %v1648 = vpop.xlane.xlu0 %1647
    %v1649 = vsel %vm1633, %v1549, -inf
    %1650 = vmax.xlane.f32.xlu0 %v1649
    %v1651 = vpop.xlane.xlu0 %1650
    %v1652 = vsel %vm1633, %v1625, -inf
    %1653 = vmax.xlane.f32.xlu0 %v1652
    %v1654 = vpop.xlane.xlu0 %1653
    %v1655 = vsel %vm1633, %v1630, -inf
    %1656 = vmax.xlane.f32.xlu0 %v1655
    %v1657 = vpop.xlane.xlu0 %1656
    %v1658 = vsub.f32 %v1382, %v1636
    %v1659 = vsub.f32 %v1387, %v1639
    %v1660 = vsub.f32 %v1463, %v1642
    %v1661 = vsub.f32 %v1468, %v1645
    %v1662 = vsub.f32 %v1544, %v1648
    %v1663 = vsub.f32 %v1549, %v1651
    %v1664 = vsub.f32 %v1625, %v1654
    %v1665 = vsub.f32 %v1630, %v1657
    %v1666 = vmul.f32 %v1658, 1.442695
    %v1667 = vpow.pop %v1666
    %v1668 = vmul.f32 %v1659, 1.442695
    %v1669 = vpow.pop %v1668
    %v1670 = vmul.f32 %v1660, 1.442695
    %v1671 = vpow.pop %v1670
    %v1672 = vmul.f32 %v1661, 1.442695
    %v1673 = vpow.pop %v1672
    %v1674 = vmul.f32 %v1662, 1.442695
    %v1675 = vpow.pop %v1674
    %v1676 = vmul.f32 %v1663, 1.442695
    %v1677 = vpow.pop %v1676
    %v1678 = vmul.f32 %v1664, 1.442695
    %v1679 = vpow.pop %v1678
    %v1680 = vmul.f32 %v1665, 1.442695
    %v1681 = vpow.pop %v1680
    %v1682 = vsel %vm1633, %v1667, 0.0
    %1683 = vadd.xlane.f32.xlu0 %v1682
    %v1684 = vpop.xlane.xlu0 %1683
    %v1685 = vsel %vm1633, %v1669, 0.0
    %1686 = vadd.xlane.f32.xlu0 %v1685
    %v1687 = vpop.xlane.xlu0 %1686
    %v1688 = vsel %vm1633, %v1671, 0.0
    %1689 = vadd.xlane.f32.xlu0 %v1688
    %v1690 = vpop.xlane.xlu0 %1689
    %v1691 = vsel %vm1633, %v1673, 0.0
    %1692 = vadd.xlane.f32.xlu0 %v1691
    %v1693 = vpop.xlane.xlu0 %1692
    %v1694 = vsel %vm1633, %v1675, 0.0
    %1695 = vadd.xlane.f32.xlu0 %v1694
    %v1696 = vpop.xlane.xlu0 %1695
    %v1697 = vsel %vm1633, %v1677, 0.0
    %1698 = vadd.xlane.f32.xlu0 %v1697
    %v1699 = vpop.xlane.xlu0 %1698
    %v1700 = vsel %vm1633, %v1679, 0.0
    %1701 = vadd.xlane.f32.xlu0 %v1700
    %v1702 = vpop.xlane.xlu0 %1701
    %v1703 = vsel %vm1633, %v1681, 0.0
    %1704 = vadd.xlane.f32.xlu0 %v1703
    %v1705 = vpop.xlane.xlu0 %1704
    %v1706 = vrcp.pop %v1684
    %v1707 = vrcp.pop %v1687
    %v1708 = vrcp.pop %v1690
    %v1709 = vrcp.pop %v1693
    %v1710 = vrcp.pop %v1696
    %v1711 = vrcp.pop %v1699
    %v1712 = vrcp.pop %v1702
    %v1713 = vrcp.pop %v1705
    %v1714 = vmul.f32 %v1667, %v1706
    %v1715 = vmul.f32 %v1669, %v1707
    %v1716 = vmul.f32 %v1671, %v1708
    %v1717 = vmul.f32 %v1673, %v1709
    %v1718 = vmul.f32 %v1675, %v1710
    %v1719 = vmul.f32 %v1677, %v1711
    %v1720 = vmul.f32 %v1679, %v1712
    %v1721 = vmul.f32 %v1681, %v1713
    %1722 = vrot.lane.b32.xlu0 %v146, 96
    %v1723 = vpop.permute.xlu0 %1722
    %1724 = vrot.lane.b32.xlu0 %v151, 96
    %v1725 = vpop.permute.xlu0 %1724
    %1726 = vrot.lane.b32.xlu0 %v156, 96
    %v1727 = vpop.permute.xlu0 %1726
    %v1732 = vsel %vm1633, %v1714, 0
    %v1735 = vsel %vm1633, %v1715, 0
    %1737 = vmatprep.subr.mxu0 0.0
    %1738 = vmatpush1.msra.mxu0 %v1723
    %1739 = vmatprep.subr.mxu0 0.0
    %1740 = vmatpush1.msra.mxu0 %v1725
    %1741 = vmatprep.subr.mxu0 0.0
    %1742 = vmatpush1.msra.mxu0 %v1727
    %1743 = vmatprep.subr.mxu0 0.0
    %1744 = vmatpush1.msra.mxu0 0.0
    %1745 = vmatprep.subr.mxu0 0.0
    %1746 = vmatpush1.msra.mxu0 0.0
    %1747 = vmatprep.subr.mxu0 0.0
    %1748 = vmatpush1.msra.mxu0 0.0
    %1749 = vmatprep.subr.mxu0 0.0
    %1750 = vmatpush1.msra.mxu0 0.0
    %1751 = vmatprep.subr.mxu0 0.0
    %1752 = vmatpush1.msra.mxu0 0.0
    %1753 = vmatprep.subr.mxu0 0.0
    %1754 = vmatpush1.msra.mxu0 0.0
    %1755 = vmatprep.subr.mxu0 0.0
    %1756 = vmatpush1.msra.mxu0 0.0
    %1757 = vmatprep.subr.mxu0 0.0
    %1758 = vmatpush1.msra.mxu0 0.0
    %1759 = vmatprep.subr.mxu0 0.0
    %1760 = vmatpush1.msra.mxu0 0.0
    %1761 = vmatprep.subr.mxu0 0.0
    %1762 = vmatpush1.msra.mxu0 0.0
    %1763 = vmatprep.subr.mxu0 0.0
    %1764 = vmatpush1.msra.mxu0 0.0
    %1765 = vmatprep.subr.mxu0 0.0
    %1766 = vmatpush1.msra.mxu0 0.0
    %1767 = vmatprep.subr.mxu0 0.0
    %1768 = vmatpush1.msra.mxu0 0.0
    %1769 = vmatprep.subr.mxu0 0.0
    %1770 = vmatpush1.msra.mxu0 0.0
    %1771 = vmatprep.subr.mxu0 0.0
    %1772 = vmatpush1.msra.mxu0 0.0
    %1773 = vmatprep.subr.mxu0 0.0
    %1774 = vmatpush1.msra.mxu0 0.0
    %1775 = vmatprep.subr.mxu0 0.0
    %1776 = vmatpush1.msra.mxu0 0.0
    %1777 = vmatprep.subr.mxu0 0.0
    %1778 = vmatpush1.msra.mxu0 0.0
    %1779 = vmatprep.subr.mxu0 0.0
    %1780 = vmatpush1.msra.mxu0 0.0
    %1781 = vmatprep.subr.mxu0 0.0
    %1782 = vmatpush1.msra.mxu0 0.0
    %1783 = vmatprep.subr.mxu0 0.0
    %1784 = vmatpush1.msra.mxu0 0.0
    %1785 = vmatprep.subr.mxu0 0.0
    %1786 = vmatpush1.msra.mxu0 0.0
    %1787 = vmatprep.subr.mxu0 0.0
    %1788 = vmatpush1.msra.mxu0 0.0
    %1789 = vmatprep.subr.mxu0 0.0
    %1790 = vmatpush1.msra.mxu0 0.0
    %1791 = vmatprep.subr.mxu0 0.0
    %1792 = vmatpush1.msra.mxu0 0.0
    %1793 = vmatprep.subr.mxu0 0.0
    %1794 = vmatpush1.msra.mxu0 0.0
    %1795 = vmatprep.subr.mxu0 0.0
    %1796 = vmatpush1.msra.mxu0 0.0
    %1797 = vmatprep.subr.mxu0 0.0
    %1798 = vmatpush1.msra.mxu0 0.0
    %1799 = vmatprep.subr.mxu0 0.0
    %1800 = vmatpush1.msra.mxu0 0.0
    %1801 = vmatprep.mubr.f32.mxu0 0.0
    %1802 = vmatmul.mubr.f32.gmra.mrb[0].mxu0 %v1732
    %v1803 = vpop.f32.mrb[0].mxu0
    %v1804 = vadd.f32 0.0, %v1803
    %v1805 = vpop.f32.mrb[0].mxu0
    %1806 = vmatprep.mubr.f32.mxu0 0.0
    %1807 = vmatmul.mubr.f32.gmra.mrb[0].mxu0 %v1735
    %v1808 = vpop.f32.mrb[0].mxu0
    %v1809 = vadd.f32 0.0, %v1808
    %v1810 = vpop.f32.mrb[0].mxu0
    %1811 = vdwg.mxu0
    %v1813 = vsel %vm1633, %v1716, 0
    %v1816 = vsel %vm1633, %v1717, 0
    %1818 = vmatprep.subr.mxu0 0.0
    %1819 = vmatpush1.msra.mxu0 %v1723
    %1820 = vmatprep.subr.mxu0 0.0
    %1821 = vmatpush1.msra.mxu0 %v1725
    %1822 = vmatprep.subr.mxu0 0.0
    %1823 = vmatpush1.msra.mxu0 %v1727
    %1824 = vmatprep.subr.mxu0 0.0
    %1825 = vmatpush1.msra.mxu0 0.0
    %1826 = vmatprep.subr.mxu0 0.0
    %1827 = vmatpush1.msra.mxu0 0.0
    %1828 = vmatprep.subr.mxu0 0.0
    %1829 = vmatpush1.msra.mxu0 0.0
    %1830 = vmatprep.subr.mxu0 0.0
    %1831 = vmatpush1.msra.mxu0 0.0
    %1832 = vmatprep.subr.mxu0 0.0
    %1833 = vmatpush1.msra.mxu0 0.0
    %1834 = vmatprep.subr.mxu0 0.0
    %1835 = vmatpush1.msra.mxu0 0.0
    %1836 = vmatprep.subr.mxu0 0.0
    %1837 = vmatpush1.msra.mxu0 0.0
    %1838 = vmatprep.subr.mxu0 0.0
    %1839 = vmatpush1.msra.mxu0 0.0
    %1840 = vmatprep.subr.mxu0 0.0
    %1841 = vmatpush1.msra.mxu0 0.0
    %1842 = vmatprep.subr.mxu0 0.0
    %1843 = vmatpush1.msra.mxu0 0.0
    %1844 = vmatprep.subr.mxu0 0.0
    %1845 = vmatpush1.msra.mxu0 0.0
    %1846 = vmatprep.subr.mxu0 0.0
    %1847 = vmatpush1.msra.mxu0 0.0
    %1848 = vmatprep.subr.mxu0 0.0
    %1849 = vmatpush1.msra.mxu0 0.0
    %1850 = vmatprep.subr.mxu0 0.0
    %1851 = vmatpush1.msra.mxu0 0.0
    %1852 = vmatprep.subr.mxu0 0.0
    %1853 = vmatpush1.msra.mxu0 0.0
    %1854 = vmatprep.subr.mxu0 0.0
    %1855 = vmatpush1.msra.mxu0 0.0
    %1856 = vmatprep.subr.mxu0 0.0
    %1857 = vmatpush1.msra.mxu0 0.0
    %1858 = vmatprep.subr.mxu0 0.0
    %1859 = vmatpush1.msra.mxu0 0.0
    %1860 = vmatprep.subr.mxu0 0.0
    %1861 = vmatpush1.msra.mxu0 0.0
    %1862 = vmatprep.subr.mxu0 0.0
    %1863 = vmatpush1.msra.mxu0 0.0
    %1864 = vmatprep.subr.mxu0 0.0
    %1865 = vmatpush1.msra.mxu0 0.0
    %1866 = vmatprep.subr.mxu0 0.0
    %1867 = vmatpush1.msra.mxu0 0.0
    %1868 = vmatprep.subr.mxu0 0.0
    %1869 = vmatpush1.msra.mxu0 0.0
    %1870 = vmatprep.subr.mxu0 0.0
    %1871 = vmatpush1.msra.mxu0 0.0
    %1872 = vmatprep.subr.mxu0 0.0
    %1873 = vmatpush1.msra.mxu0 0.0
    %1874 = vmatprep.subr.mxu0 0.0
    %1875 = vmatpush1.msra.mxu0 0.0
    %1876 = vmatprep.subr.mxu0 0.0
    %1877 = vmatpush1.msra.mxu0 0.0
    %1878 = vmatprep.subr.mxu0 0.0
    %1879 = vmatpush1.msra.mxu0 0.0
    %1880 = vmatprep.subr.mxu0 0.0
    %1881 = vmatpush1.msra.mxu0 0.0
    %1882 = vmatprep.mubr.f32.mxu0 0.0
    %1883 = vmatmul.mubr.f32.gmra.mrb[0].mxu0 %v1813
    %v1884 = vpop.f32.mrb[0].mxu0
    %v1885 = vadd.f32 0.0, %v1884
    %v1886 = vpop.f32.mrb[0].mxu0
    %1887 = vmatprep.mubr.f32.mxu0 0.0
    %1888 = vmatmul.mubr.f32.gmra.mrb[0].mxu0 %v1816
    %v1889 = vpop.f32.mrb[0].mxu0
    %v1890 = vadd.f32 0.0, %v1889
    %v1891 = vpop.f32.mrb[0].mxu0
    %1892 = vdwg.mxu0
    %v1894 = vsel %vm1633, %v1718, 0
    %v1897 = vsel %vm1633, %v1719, 0
    %1899 = vmatprep.subr.mxu0 0.0
    %1900 = vmatpush1.msra.mxu0 %v1723
    %1901 = vmatprep.subr.mxu0 0.0
    %1902 = vmatpush1.msra.mxu0 %v1725
    %1903 = vmatprep.subr.mxu0 0.0
    %1904 = vmatpush1.msra.mxu0 %v1727
    %1905 = vmatprep.subr.mxu0 0.0
    %1906 = vmatpush1.msra.mxu0 0.0
    %1907 = vmatprep.subr.mxu0 0.0
    %1908 = vmatpush1.msra.mxu0 0.0
    %1909 = vmatprep.subr.mxu0 0.0
    %1910 = vmatpush1.msra.mxu0 0.0
    %1911 = vmatprep.subr.mxu0 0.0
    %1912 = vmatpush1.msra.mxu0 0.0
    %1913 = vmatprep.subr.mxu0 0.0
    %1914 = vmatpush1.msra.mxu0 0.0
    %1915 = vmatprep.subr.mxu0 0.0
    %1916 = vmatpush1.msra.mxu0 0.0
    %1917 = vmatprep.subr.mxu0 0.0
    %1918 = vmatpush1.msra.mxu0 0.0
    %1919 = vmatprep.subr.mxu0 0.0
    %1920 = vmatpush1.msra.mxu0 0.0
    %1921 = vmatprep.subr.mxu0 0.0
    %1922 = vmatpush1.msra.mxu0 0.0
    %1923 = vmatprep.subr.mxu0 0.0
    %1924 = vmatpush1.msra.mxu0 0.0
    %1925 = vmatprep.subr.mxu0 0.0
    %1926 = vmatpush1.msra.mxu0 0.0
    %1927 = vmatprep.subr.mxu0 0.0
    %1928 = vmatpush1.msra.mxu0 0.0
    %1929 = vmatprep.subr.mxu0 0.0
    %1930 = vmatpush1.msra.mxu0 0.0
    %1931 = vmatprep.subr.mxu0 0.0
    %1932 = vmatpush1.msra.mxu0 0.0
    %1933 = vmatprep.subr.mxu0 0.0
    %1934 = vmatpush1.msra.mxu0 0.0
    %1935 = vmatprep.subr.mxu0 0.0
    %1936 = vmatpush1.msra.mxu0 0.0
    %1937 = vmatprep.subr.mxu0 0.0
    %1938 = vmatpush1.msra.mxu0 0.0
    %1939 = vmatprep.subr.mxu0 0.0
    %1940 = vmatpush1.msra.mxu0 0.0
    %1941 = vmatprep.subr.mxu0 0.0
    %1942 = vmatpush1.msra.mxu0 0.0
    %1943 = vmatprep.subr.mxu0 0.0
    %1944 = vmatpush1.msra.mxu0 0.0
    %1945 = vmatprep.subr.mxu0 0.0
    %1946 = vmatpush1.msra.mxu0 0.0
    %1947 = vmatprep.subr.mxu0 0.0
    %1948 = vmatpush1.msra.mxu0 0.0
    %1949 = vmatprep.subr.mxu0 0.0
    %1950 = vmatpush1.msra.mxu0 0.0
    %1951 = vmatprep.subr.mxu0 0.0
    %1952 = vmatpush1.msra.mxu0 0.0
    %1953 = vmatprep.subr.mxu0 0.0
    %1954 = vmatpush1.msra.mxu0 0.0
    %1955 = vmatprep.subr.mxu0 0.0
    %1956 = vmatpush1.msra.mxu0 0.0
    %1957 = vmatprep.subr.mxu0 0.0
    %1958 = vmatpush1.msra.mxu0 0.0
    %1959 = vmatprep.subr.mxu0 0.0
    %1960 = vmatpush1.msra.mxu0 0.0
    %1961 = vmatprep.subr.mxu0 0.0
    %1962 = vmatpush1.msra.mxu0 0.0
    %1963 = vmatprep.mubr.f32.mxu0 0.0
    %1964 = vmatmul.mubr.f32.gmra.mrb[0].mxu0 %v1894
    %v1965 = vpop.f32.mrb[0].mxu0
    %v1966 = vadd.f32 0.0, %v1965
    %v1967 = vpop.f32.mrb[0].mxu0
    %1968 = vmatprep.mubr.f32.mxu0 0.0
    %1969 = vmatmul.mubr.f32.gmra.mrb[0].mxu0 %v1897
    %v1970 = vpop.f32.mrb[0].mxu0
    %v1971 = vadd.f32 0.0, %v1970
    %v1972 = vpop.f32.mrb[0].mxu0
    %1973 = vdwg.mxu0
    %v1975 = vsel %vm1633, %v1720, 0
    %v1978 = vsel %vm1633, %v1721, 0
    %1980 = vmatprep.subr.mxu0 0.0
    %1981 = vmatpush1.msra.mxu0 %v1723
    %1982 = vmatprep.subr.mxu0 0.0
    %1983 = vmatpush1.msra.mxu0 %v1725
    %1984 = vmatprep.subr.mxu0 0.0
    %1985 = vmatpush1.msra.mxu0 %v1727
    %1986 = vmatprep.subr.mxu0 0.0
    %1987 = vmatpush1.msra.mxu0 0.0
    %1988 = vmatprep.subr.mxu0 0.0
    %1989 = vmatpush1.msra.mxu0 0.0
    %1990 = vmatprep.subr.mxu0 0.0
    %1991 = vmatpush1.msra.mxu0 0.0
    %1992 = vmatprep.subr.mxu0 0.0
    %1993 = vmatpush1.msra.mxu0 0.0
    %1994 = vmatprep.subr.mxu0 0.0
    %1995 = vmatpush1.msra.mxu0 0.0
    %1996 = vmatprep.subr.mxu0 0.0
    %1997 = vmatpush1.msra.mxu0 0.0
    %1998 = vmatprep.subr.mxu0 0.0
    %1999 = vmatpush1.msra.mxu0 0.0
    %2000 = vmatprep.subr.mxu0 0.0
    %2001 = vmatpush1.msra.mxu0 0.0
    %2002 = vmatprep.subr.mxu0 0.0
    %2003 = vmatpush1.msra.mxu0 0.0
    %2004 = vmatprep.subr.mxu0 0.0
    %2005 = vmatpush1.msra.mxu0 0.0
    %2006 = vmatprep.subr.mxu0 0.0
    %2007 = vmatpush1.msra.mxu0 0.0
    %2008 = vmatprep.subr.mxu0 0.0
    %2009 = vmatpush1.msra.mxu0 0.0
    %2010 = vmatprep.subr.mxu0 0.0
    %2011 = vmatpush1.msra.mxu0 0.0
    %2012 = vmatprep.subr.mxu0 0.0
    %2013 = vmatpush1.msra.mxu0 0.0
    %2014 = vmatprep.subr.mxu0 0.0
    %2015 = vmatpush1.msra.mxu0 0.0
    %2016 = vmatprep.subr.mxu0 0.0
    %2017 = vmatpush1.msra.mxu0 0.0
    %2018 = vmatprep.subr.mxu0 0.0
    %2019 = vmatpush1.msra.mxu0 0.0
    %2020 = vmatprep.subr.mxu0 0.0
    %2021 = vmatpush1.msra.mxu0 0.0
    %2022 = vmatprep.subr.mxu0 0.0
    %2023 = vmatpush1.msra.mxu0 0.0
    %2024 = vmatprep.subr.mxu0 0.0
    %2025 = vmatpush1.msra.mxu0 0.0
    %2026 = vmatprep.subr.mxu0 0.0
    %2027 = vmatpush1.msra.mxu0 0.0
    %2028 = vmatprep.subr.mxu0 0.0
    %2029 = vmatpush1.msra.mxu0 0.0
    %2030 = vmatprep.subr.mxu0 0.0
    %2031 = vmatpush1.msra.mxu0 0.0
    %2032 = vmatprep.subr.mxu0 0.0
    %2033 = vmatpush1.msra.mxu0 0.0
    %2034 = vmatprep.subr.mxu0 0.0
    %2035 = vmatpush1.msra.mxu0 0.0
    %2036 = vmatprep.subr.mxu0 0.0
    %2037 = vmatpush1.msra.mxu0 0.0
    %2038 = vmatprep.subr.mxu0 0.0
    %2039 = vmatpush1.msra.mxu0 0.0
    %2040 = vmatprep.subr.mxu0 0.0
    %2041 = vmatpush1.msra.mxu0 0.0
    %2042 = vmatprep.subr.mxu0 0.0
    %2043 = vmatpush1.msra.mxu0 0.0
    %2044 = vmatprep.mubr.f32.mxu0 0.0
    %2045 = vmatmul.mubr.f32.gmra.mrb[0].mxu0 %v1975
    %v2046 = vpop.f32.mrb[0].mxu0
    %v2047 = vadd.f32 0.0, %v2046
    %v2048 = vpop.f32.mrb[0].mxu0
    %2049 = vmatprep.mubr.f32.mxu0 0.0
    %2050 = vmatmul.mubr.f32.gmra.mrb[0].mxu0 %v1978
    %v2051 = vpop.f32.mrb[0].mxu0
    %v2052 = vadd.f32 0.0, %v2051
    %v2053 = vpop.f32.mrb[0].mxu0
    %2054 = vdwg.mxu0
    %v2055 = vmul.f32 %v1804, %v53
    %v2056 = vmul.f32 %v1809, %v53
    %v2057 = vmul.f32 %v1885, %v54
    %v2058 = vmul.f32 %v1890, %v54
    %v2059 = vmul.f32 %v1966, %v55
    %v2060 = vmul.f32 %v1971, %v55
    %v2061 = vmul.f32 %v2047, %v56
    %v2062 = vmul.f32 %v2052, %v56
    %v2063 = vsel %vm69, %v2055, 0.0
    %v2064 = vsel %vm69, %v2057, 0.0
    %v2065 = vadd.f32 %v2063, %v2064
    %v2066 = vsel %vm69, %v2059, 0.0
    %v2067 = vadd.f32 %v2065, %v2066
    %v2068 = vsel %vm69, %v2061, 0.0
    %v2069 = vadd.f32 %v2067, %v2068
    %v2070 = vsel %vm69, %v2056, 0.0
    %v2071 = vsel %vm69, %v2058, 0.0
    %v2072 = vadd.f32 %v2070, %v2071
    %v2073 = vsel %vm69, %v2060, 0.0
    %v2074 = vadd.f32 %v2072, %v2073
    %v2075 = vsel %vm69, %v2062, 0.0
    %v2076 = vadd.f32 %v2074, %v2075
    %v2077 = vlaneseq
    %v2078 = vshrl.u32 %v2077, 7
    %v2079 = vsub.s32 4, %v2078
    %v2080 = vrot.slane %v33, %v2079
    %v2082 = vsel %vm69, %v2069, 0
    %v2085 = vsel %vm69, %v2076, 0
    %2087 = vmatprep.subr.mxu0 0.0
    %2088 = vmatpush1.msra.mxu0 %v1288
    %2089 = vmatprep.subr.mxu0 0.0
    %2090 = vmatpush1.msra.mxu0 %v1289
    %2091 = vmatprep.subr.mxu0 0.0
    %2092 = vmatpush1.msra.mxu0 %v1290
    %2093 = vmatprep.subr.mxu0 0.0
    %2094 = vmatpush1.msra.mxu0 %v1291
    %2095 = vmatprep.subr.mxu0 0.0
    %2096 = vmatpush1.msra.mxu0 0.0
    %2097 = vmatprep.subr.mxu0 0.0
    %2098 = vmatpush1.msra.mxu0 0.0
    %2099 = vmatprep.subr.mxu0 0.0
    %2100 = vmatpush1.msra.mxu0 0.0
    %2101 = vmatprep.subr.mxu0 0.0
    %2102 = vmatpush1.msra.mxu0 0.0
    %2103 = vmatprep.subr.mxu0 0.0
    %2104 = vmatpush1.msra.mxu0 0.0
    %2105 = vmatprep.subr.mxu0 0.0
    %2106 = vmatpush1.msra.mxu0 0.0
    %2107 = vmatprep.subr.mxu0 0.0
    %2108 = vmatpush1.msra.mxu0 0.0
    %2109 = vmatprep.subr.mxu0 0.0
    %2110 = vmatpush1.msra.mxu0 0.0
    %2111 = vmatprep.subr.mxu0 0.0
    %2112 = vmatpush1.msra.mxu0 0.0
    %2113 = vmatprep.subr.mxu0 0.0
    %2114 = vmatpush1.msra.mxu0 0.0
    %2115 = vmatprep.subr.mxu0 0.0
    %2116 = vmatpush1.msra.mxu0 0.0
    %2117 = vmatprep.subr.mxu0 0.0
    %2118 = vmatpush1.msra.mxu0 0.0
    %2119 = vmatprep.subr.mxu0 0.0
    %2120 = vmatpush1.msra.mxu0 0.0
    %2121 = vmatprep.subr.mxu0 0.0
    %2122 = vmatpush1.msra.mxu0 0.0
    %2123 = vmatprep.subr.mxu0 0.0
    %2124 = vmatpush1.msra.mxu0 0.0
    %2125 = vmatprep.subr.mxu0 0.0
    %2126 = vmatpush1.msra.mxu0 0.0
    %2127 = vmatprep.subr.mxu0 0.0
    %2128 = vmatpush1.msra.mxu0 0.0
    %2129 = vmatprep.subr.mxu0 0.0
    %2130 = vmatpush1.msra.mxu0 0.0
    %2131 = vmatprep.subr.mxu0 0.0
    %2132 = vmatpush1.msra.mxu0 0.0
    %2133 = vmatprep.subr.mxu0 0.0
    %2134 = vmatpush1.msra.mxu0 0.0
    %2135 = vmatprep.subr.mxu0 0.0
    %2136 = vmatpush1.msra.mxu0 0.0
    %2137 = vmatprep.subr.mxu0 0.0
    %2138 = vmatpush1.msra.mxu0 0.0
    %2139 = vmatprep.subr.mxu0 0.0
    %2140 = vmatpush1.msra.mxu0 0.0
    %2141 = vmatprep.subr.mxu0 0.0
    %2142 = vmatpush1.msra.mxu0 0.0
    %2143 = vmatprep.subr.mxu0 0.0
    %2144 = vmatpush1.msra.mxu0 0.0
    %2145 = vmatprep.subr.mxu0 0.0
    %2146 = vmatpush1.msra.mxu0 0.0
    %2147 = vmatprep.subr.mxu0 0.0
    %2148 = vmatpush1.msra.mxu0 0.0
    %2149 = vmatprep.subr.mxu0 0.0
    %2150 = vmatpush1.msra.mxu0 0.0
    %2151 = vmatprep.mubr.f32.mxu0 0.0
    %2152 = vmatmul.mubr.f32.gmra.mrb[0].mxu0 %v2082
    %v2153 = vpop.f32.mrb[0].mxu0
    %v2154 = vadd.f32 %v2080, %v2153
    %v2155 = vpop.f32.mrb[0].mxu0
    %2156 = vmatprep.mubr.f32.mxu0 0.0
    %2157 = vmatmul.mubr.f32.gmra.mrb[0].mxu0 %v2085
    %v2158 = vpop.f32.mrb[0].mxu0
    %v2159 = vadd.f32 %v2080, %v2158
    %v2160 = vpop.f32.mrb[0].mxu0
    %2161 = vdwg.mxu0
    %v2162 = vadd.f32 %v1159, %v2154
    %v2163 = vadd.f32 %v1160, %v2159
    %v2164 = vsel %vm69, %v2162, 0.0
    %2165 = vadd.xlane.f32.xlu0 %v2164
    %v2166 = vpop.xlane.xlu0 %2165
    %v2167 = vsel %vm69, %v2163, 0.0
    %2168 = vadd.xlane.f32.xlu0 %v2167
    %v2169 = vpop.xlane.xlu0 %2168
    %v2170 = vmul.f32 %v2166, %v165
    %v2171 = vmul.f32 %v2169, %v165
    %v2172 = vsub.f32 %v2162, %v2170
    %v2173 = vsub.f32 %v2163, %v2171
    %v2174 = vmul.f32 %v2172, %v2172
    %v2175 = vmul.f32 %v2173, %v2173
    %v2176 = vsel %vm69, %v2174, 0.0
    %2177 = vadd.xlane.f32.xlu0 %v2176
    %v2178 = vpop.xlane.xlu0 %2177
    %v2179 = vsel %vm69, %v2175, 0.0
    %2180 = vadd.xlane.f32.xlu0 %v2179
    %v2181 = vpop.xlane.xlu0 %2180
    %v2182 = vmul.f32 %v2178, %v165
    %v2183 = vmul.f32 %v2181, %v165
    %v2184 = vadd.f32 %v2182, 1e-05
    %v2185 = vadd.f32 %v2183, 1e-05
    %v2186 = vrsqrt.pop %v2184
    %v2187 = vrsqrt.pop %v2185
    %v2188 = vmul.f32 %v2172, %v2186
    %v2189 = vmul.f32 %v2173, %v2187
    %v2190 = vlaneseq
    %v2191 = vshrl.u32 %v2190, 7
    %v2192 = vsub.s32 3, %v2191
    %v2193 = vrot.slane %v34, %v2192
    %v2194 = vmul.f32 %v2188, %v2193
    %v2195 = vmul.f32 %v2189, %v2193
    %v2196 = vlaneseq
    %v2197 = vshrl.u32 %v2196, 7
    %v2198 = vsub.s32 4, %v2197
    %v2199 = vrot.slane %v34, %v2198
    %v2200 = vadd.f32 %v2194, %v2199
    %v2201 = vadd.f32 %v2195, %v2199
    %v2202 = vld [vmem:[%s4 + $0xa0] sm:$0xff]
    %v2203 = vld [vmem:[%s4 + $0xa8] sm:$0xff]
    %v2204 = vld [vmem:[%s4 + $0xb0] sm:$0xff]
    %v2205 = vld [vmem:[%s4 + $0xb8] sm:$0xff]
    %v2206 = vlaneseq
    %v2207 = vshrl.u32 %v2206, 7
    %v2208 = vsub.s32 5, %v2207
    %v2209 = vrot.slane %v33, %v2208
    %v2211 = vsel %vm69, %v2200, 0
    %v2214 = vsel %vm69, %v2201, 0
    %2216 = vmatprep.subr.mxu0 0.0
    %2217 = vmatpush1.msra.mxu0 %v2202
    %2218 = vmatprep.subr.mxu0 0.0
    %2219 = vmatpush1.msra.mxu0 %v2203
    %2220 = vmatprep.subr.mxu0 0.0
    %2221 = vmatpush1.msra.mxu0 %v2204
    %2222 = vmatprep.subr.mxu0 0.0
    %2223 = vmatpush1.msra.mxu0 %v2205
    %2224 = vmatprep.subr.mxu0 0.0
    %2225 = vmatpush1.msra.mxu0 0.0
    %2226 = vmatprep.subr.mxu0 0.0
    %2227 = vmatpush1.msra.mxu0 0.0
    %2228 = vmatprep.subr.mxu0 0.0
    %2229 = vmatpush1.msra.mxu0 0.0
    %2230 = vmatprep.subr.mxu0 0.0
    %2231 = vmatpush1.msra.mxu0 0.0
    %2232 = vmatprep.subr.mxu0 0.0
    %2233 = vmatpush1.msra.mxu0 0.0
    %2234 = vmatprep.subr.mxu0 0.0
    %2235 = vmatpush1.msra.mxu0 0.0
    %2236 = vmatprep.subr.mxu0 0.0
    %2237 = vmatpush1.msra.mxu0 0.0
    %2238 = vmatprep.subr.mxu0 0.0
    %2239 = vmatpush1.msra.mxu0 0.0
    %2240 = vmatprep.subr.mxu0 0.0
    %2241 = vmatpush1.msra.mxu0 0.0
    %2242 = vmatprep.subr.mxu0 0.0
    %2243 = vmatpush1.msra.mxu0 0.0
    %2244 = vmatprep.subr.mxu0 0.0
    %2245 = vmatpush1.msra.mxu0 0.0
    %2246 = vmatprep.subr.mxu0 0.0
    %2247 = vmatpush1.msra.mxu0 0.0
    %2248 = vmatprep.subr.mxu0 0.0
    %2249 = vmatpush1.msra.mxu0 0.0
    %2250 = vmatprep.subr.mxu0 0.0
    %2251 = vmatpush1.msra.mxu0 0.0
    %2252 = vmatprep.subr.mxu0 0.0
    %2253 = vmatpush1.msra.mxu0 0.0
    %2254 = vmatprep.subr.mxu0 0.0
    %2255 = vmatpush1.msra.mxu0 0.0
    %2256 = vmatprep.subr.mxu0 0.0
    %2257 = vmatpush1.msra.mxu0 0.0
    %2258 = vmatprep.subr.mxu0 0.0
    %2259 = vmatpush1.msra.mxu0 0.0
    %2260 = vmatprep.subr.mxu0 0.0
    %2261 = vmatpush1.msra.mxu0 0.0
    %2262 = vmatprep.subr.mxu0 0.0
    %2263 = vmatpush1.msra.mxu0 0.0
    %2264 = vmatprep.subr.mxu0 0.0
    %2265 = vmatpush1.msra.mxu0 0.0
    %2266 = vmatprep.subr.mxu0 0.0
    %2267 = vmatpush1.msra.mxu0 0.0
    %2268 = vmatprep.subr.mxu0 0.0
    %2269 = vmatpush1.msra.mxu0 0.0
    %2270 = vmatprep.subr.mxu0 0.0
    %2271 = vmatpush1.msra.mxu0 0.0
    %2272 = vmatprep.subr.mxu0 0.0
    %2273 = vmatpush1.msra.mxu0 0.0
    %2274 = vmatprep.subr.mxu0 0.0
    %2275 = vmatpush1.msra.mxu0 0.0
    %2276 = vmatprep.subr.mxu0 0.0
    %2277 = vmatpush1.msra.mxu0 0.0
    %2278 = vmatprep.subr.mxu0 0.0
    %2279 = vmatpush1.msra.mxu0 0.0
    %2280 = vmatprep.mubr.f32.mxu0 0.0
    %2281 = vmatmul.mubr.f32.gmra.mrb[0].mxu0 %v2211
    %v2282 = vpop.f32.mrb[0].mxu0
    %v2283 = vadd.f32 %v2209, %v2282
    %v2284 = vpop.f32.mrb[0].mxu0
    %2285 = vmatprep.mubr.f32.mxu0 0.0
    %2286 = vmatmul.mubr.f32.gmra.mrb[0].mxu0 %v2214
    %v2287 = vpop.f32.mrb[0].mxu0
    %v2288 = vadd.f32 %v2209, %v2287
    %v2289 = vpop.f32.mrb[0].mxu0
    %2290 = vdwg.mxu0
    %v2291 = vmax.f32 %v2283, 0.0
    %v2292 = vmax.f32 %v2288, 0.0
    %v2293 = vld [vmem:[%s4 + $0xc0] sm:$0xff]
    %v2294 = vld [vmem:[%s4 + $0xc8] sm:$0xff]
    %v2295 = vld [vmem:[%s4 + $0xd0] sm:$0xff]
    %v2296 = vld [vmem:[%s4 + $0xd8] sm:$0xff]
    %v2297 = vld [vmem:[%s4 + $0xe0] sm:$0xff]
    %v2298 = vld [vmem:[%s4 + $0xe8] sm:$0xff]
    %v2299 = vld [vmem:[%s4 + $0xf0] sm:$0xff]
    %v2300 = vld [vmem:[%s4 + $0xf8] sm:$0xff]
    %vm2301 = vcmask 523264
    %v2303 = vsel %vm2301, %v2291, 0
    %v2306 = vsel %vm2301, %v2292, 0
    %2308 = vmatprep.subr.mxu0 0.0
    %2309 = vmatpush1.msra.mxu0 %v2293
    %2310 = vmatprep.subr.mxu0 0.0
    %2311 = vmatpush1.msra.mxu0 %v2294
    %2312 = vmatprep.subr.mxu0 0.0
    %2313 = vmatpush1.msra.mxu0 %v2295
    %2314 = vmatprep.subr.mxu0 0.0
    %2315 = vmatpush1.msra.mxu0 %v2296
    %2316 = vmatprep.subr.mxu0 0.0
    %2317 = vmatpush1.msra.mxu0 %v2297
    %2318 = vmatprep.subr.mxu0 0.0
    %2319 = vmatpush1.msra.mxu0 %v2298
    %2320 = vmatprep.subr.mxu0 0.0
    %2321 = vmatpush1.msra.mxu0 %v2299
    %2322 = vmatprep.subr.mxu0 0.0
    %2323 = vmatpush1.msra.mxu0 %v2300
    %2324 = vmatprep.subr.mxu0 0.0
    %2325 = vmatpush1.msra.mxu0 0.0
    %2326 = vmatprep.subr.mxu0 0.0
    %2327 = vmatpush1.msra.mxu0 0.0
    %2328 = vmatprep.subr.mxu0 0.0
    %2329 = vmatpush1.msra.mxu0 0.0
    %2330 = vmatprep.subr.mxu0 0.0
    %2331 = vmatpush1.msra.mxu0 0.0
    %2332 = vmatprep.subr.mxu0 0.0
    %2333 = vmatpush1.msra.mxu0 0.0
    %2334 = vmatprep.subr.mxu0 0.0
    %2335 = vmatpush1.msra.mxu0 0.0
    %2336 = vmatprep.subr.mxu0 0.0
    %2337 = vmatpush1.msra.mxu0 0.0
    %2338 = vmatprep.subr.mxu0 0.0
    %2339 = vmatpush1.msra.mxu0 0.0
    %2340 = vmatprep.subr.mxu0 0.0
    %2341 = vmatpush1.msra.mxu0 0.0
    %2342 = vmatprep.subr.mxu0 0.0
    %2343 = vmatpush1.msra.mxu0 0.0
    %2344 = vmatprep.subr.mxu0 0.0
    %2345 = vmatpush1.msra.mxu0 0.0
    %2346 = vmatprep.subr.mxu0 0.0
    %2347 = vmatpush1.msra.mxu0 0.0
    %2348 = vmatprep.subr.mxu0 0.0
    %2349 = vmatpush1.msra.mxu0 0.0
    %2350 = vmatprep.subr.mxu0 0.0
    %2351 = vmatpush1.msra.mxu0 0.0
    %2352 = vmatprep.subr.mxu0 0.0
    %2353 = vmatpush1.msra.mxu0 0.0
    %2354 = vmatprep.subr.mxu0 0.0
    %2355 = vmatpush1.msra.mxu0 0.0
    %2356 = vmatprep.subr.mxu0 0.0
    %2357 = vmatpush1.msra.mxu0 0.0
    %2358 = vmatprep.subr.mxu0 0.0
    %2359 = vmatpush1.msra.mxu0 0.0
    %2360 = vmatprep.subr.mxu0 0.0
    %2361 = vmatpush1.msra.mxu0 0.0
    %2362 = vmatprep.subr.mxu0 0.0
    %2363 = vmatpush1.msra.mxu0 0.0
    %2364 = vmatprep.subr.mxu0 0.0
    %2365 = vmatpush1.msra.mxu0 0.0
    %2366 = vmatprep.subr.mxu0 0.0
    %2367 = vmatpush1.msra.mxu0 0.0
    %2368 = vmatprep.subr.mxu0 0.0
    %2369 = vmatpush1.msra.mxu0 0.0
    %2370 = vmatprep.subr.mxu0 0.0
    %2371 = vmatpush1.msra.mxu0 0.0
    %2372 = vmatprep.mubr.f32.mxu0 0.0
    %2373 = vmatmul.mubr.f32.gmra.mrb[0].mxu0 %v2303
    %v2374 = vpop.f32.mrb[0].mxu0
    %v2375 = vadd.f32 0.0, %v2374
    %v2376 = vpop.f32.mrb[0].mxu0
    %2377 = vmatprep.mubr.f32.mxu0 0.0
    %2378 = vmatmul.mubr.f32.gmra.mrb[0].mxu0 %v2306
    %v2379 = vpop.f32.mrb[0].mxu0
    %v2380 = vadd.f32 0.0, %v2379
    %v2381 = vpop.f32.mrb[0].mxu0
    %2382 = vdwg.mxu0
    %v2383 = vadd.f32 %v2162, %v2375
    %v2384 = vadd.f32 %v2163, %v2380
    %v2385 = vlaneseq
    %v2386 = vshrl.u32 %v2385, 7
    %v2387 = vsub.s32 6, %v2386
    %v2388 = vrot.slane %v33, %v2387
    %v2389 = vadd.f32 %v2383, %v2388
    %v2390 = vadd.f32 %v2384, %v2388
    %v2391 = vsel %vm69, %v2389, 0.0
    %2392 = vadd.xlane.f32.xlu0 %v2391
    %v2393 = vpop.xlane.xlu0 %2392
    %v2394 = vsel %vm69, %v2390, 0.0
    %2395 = vadd.xlane.f32.xlu0 %v2394
    %v2396 = vpop.xlane.xlu0 %2395
    %v2397 = vmul.f32 %v2393, %v165
    %v2398 = vmul.f32 %v2396, %v165
    %v2399 = vsub.f32 %v2389, %v2397
    %v2400 = vsub.f32 %v2390, %v2398
    %v2401 = vmul.f32 %v2399, %v2399
    %v2402 = vmul.f32 %v2400, %v2400
    %v2403 = vsel %vm69, %v2401, 0.0
    %2404 = vadd.xlane.f32.xlu0 %v2403
    %v2405 = vpop.xlane.xlu0 %2404
    %v2406 = vsel %vm69, %v2402, 0.0
    %2407 = vadd.xlane.f32.xlu0 %v2406
    %v2408 = vpop.xlane.xlu0 %2407
    %v2409 = vmul.f32 %v2405, %v165
    %v2410 = vmul.f32 %v2408, %v165
    %v2411 = vadd.f32 %v2409, 1e-05
    %v2412 = vadd.f32 %v2410, 1e-05
    %v2413 = vrsqrt.pop %v2411
    %v2414 = vrsqrt.pop %v2412
    %v2415 = vmul.f32 %v2399, %v2413
    %v2416 = vmul.f32 %v2400, %v2414
    %v2417 = vmul.f32 %v2415, %v189
    %v2418 = vmul.f32 %v2416, %v189
    %v2419 = vadd.f32 %v2417, %v195
    %v2420 = vadd.f32 %v2418, %v195
    %v2422 = vsel %vm69, %v2419, 0
    %v2425 = vsel %vm69, %v2420, 0
    %2427 = vmatprep.subr.mxu0 0.0
    %2428 = vmatpush1.msra.mxu0 %v198
    %2429 = vmatprep.subr.mxu0 0.0
    %2430 = vmatpush1.msra.mxu0 %v199
    %2431 = vmatprep.subr.mxu0 0.0
    %2432 = vmatpush1.msra.mxu0 %v200
    %2433 = vmatprep.subr.mxu0 0.0
    %2434 = vmatpush1.msra.mxu0 %v201
    %2435 = vmatprep.subr.mxu0 0.0
    %2436 = vmatpush1.msra.mxu0 0.0
    %2437 = vmatprep.subr.mxu0 0.0
    %2438 = vmatpush1.msra.mxu0 0.0
    %2439 = vmatprep.subr.mxu0 0.0
    %2440 = vmatpush1.msra.mxu0 0.0
    %2441 = vmatprep.subr.mxu0 0.0
    %2442 = vmatpush1.msra.mxu0 0.0
    %2443 = vmatprep.subr.mxu0 0.0
    %2444 = vmatpush1.msra.mxu0 0.0
    %2445 = vmatprep.subr.mxu0 0.0
    %2446 = vmatpush1.msra.mxu0 0.0
    %2447 = vmatprep.subr.mxu0 0.0
    %2448 = vmatpush1.msra.mxu0 0.0
    %2449 = vmatprep.subr.mxu0 0.0
    %2450 = vmatpush1.msra.mxu0 0.0
    %2451 = vmatprep.subr.mxu0 0.0
    %2452 = vmatpush1.msra.mxu0 0.0
    %2453 = vmatprep.subr.mxu0 0.0
    %2454 = vmatpush1.msra.mxu0 0.0
    %2455 = vmatprep.subr.mxu0 0.0
    %2456 = vmatpush1.msra.mxu0 0.0
    %2457 = vmatprep.subr.mxu0 0.0
    %2458 = vmatpush1.msra.mxu0 0.0
    %2459 = vmatprep.subr.mxu0 0.0
    %2460 = vmatpush1.msra.mxu0 0.0
    %2461 = vmatprep.subr.mxu0 0.0
    %2462 = vmatpush1.msra.mxu0 0.0
    %2463 = vmatprep.subr.mxu0 0.0
    %2464 = vmatpush1.msra.mxu0 0.0
    %2465 = vmatprep.subr.mxu0 0.0
    %2466 = vmatpush1.msra.mxu0 0.0
    %2467 = vmatprep.subr.mxu0 0.0
    %2468 = vmatpush1.msra.mxu0 0.0
    %2469 = vmatprep.subr.mxu0 0.0
    %2470 = vmatpush1.msra.mxu0 0.0
    %2471 = vmatprep.subr.mxu0 0.0
    %2472 = vmatpush1.msra.mxu0 0.0
    %2473 = vmatprep.subr.mxu0 0.0
    %2474 = vmatpush1.msra.mxu0 0.0
    %2475 = vmatprep.subr.mxu0 0.0
    %2476 = vmatpush1.msra.mxu0 0.0
    %2477 = vmatprep.subr.mxu0 0.0
    %2478 = vmatpush1.msra.mxu0 0.0
    %2479 = vmatprep.subr.mxu0 0.0
    %2480 = vmatpush1.msra.mxu0 0.0
    %2481 = vmatprep.subr.mxu0 0.0
    %2482 = vmatpush1.msra.mxu0 0.0
    %2483 = vmatprep.subr.mxu0 0.0
    %2484 = vmatpush1.msra.mxu0 0.0
    %2485 = vmatprep.subr.mxu0 0.0
    %2486 = vmatpush1.msra.mxu0 0.0
    %2487 = vmatprep.subr.mxu0 0.0
    %2488 = vmatpush1.msra.mxu0 0.0
    %2489 = vmatprep.subr.mxu0 0.0
    %2490 = vmatpush1.msra.mxu0 0.0
    %2491 = vmatprep.mubr.f32.mxu0 0.0
    %2492 = vmatmul.mubr.f32.gmra.mrb[0].mxu0 %v2422
    %v2493 = vpop.f32.mrb[0].mxu0
    %v2494 = vadd.f32 %v205, %v2493
    %v2495 = vpop.f32.mrb[0].mxu0
    %2496 = vmatprep.mubr.f32.mxu0 0.0
    %2497 = vmatmul.mubr.f32.gmra.mrb[0].mxu0 %v2425
    %v2498 = vpop.f32.mrb[0].mxu0
    %v2499 = vadd.f32 %v205, %v2498
    %v2500 = vpop.f32.mrb[0].mxu0
    %2501 = vdwg.mxu0
    %v2502 = vmul.f32 %v2494, %v57
    %v2503 = vmul.f32 %v2499, %v57
    %v2504 = vmul.f32 %v2494, %v58
    %v2505 = vmul.f32 %v2499, %v58
    %v2506 = vmul.f32 %v2494, %v59
    %v2507 = vmul.f32 %v2499, %v59
    %v2508 = vmul.f32 %v2494, %v60
    %v2509 = vmul.f32 %v2499, %v60
    %2512 = vrot.lane.b32.xlu0 %v2494, 96
    %v2513 = vpop.permute.xlu0 %2512
    %2514 = vrot.lane.b32.xlu0 %v2499, 96
    %v2515 = vpop.permute.xlu0 %2514
    %v2517 = vsel %vm69, %v2502, 0
    %v2520 = vsel %vm69, %v2503, 0
    %v2522 = vsel %vm69, %v2513, 0
    %v2524 = vsel %vm69, %v2515, 0
    %2526 = vmatprep.subr.mxu0 0.0
    %2527 = vmatpush1.xpose.msra.mxu0 %v2522
    %2528 = vmatprep.subr.mxu0 0.0
    %2529 = vmatpush1.xpose.msra.mxu0 %v2524
    %2530 = vmatprep.subr.mxu0 0.0
    %2531 = vmatpush1.xpose.msra.mxu0 0.0
    %2532 = vmatprep.subr.mxu0 0.0
    %2533 = vmatpush1.xpose.msra.mxu0 0.0
    %2534 = vmatprep.subr.mxu0 0.0
    %2535 = vmatpush1.xpose.msra.mxu0 0.0
    %2536 = vmatprep.subr.mxu0 0.0
    %2537 = vmatpush1.xpose.msra.mxu0 0.0
    %2538 = vmatprep.subr.mxu0 0.0
    %2539 = vmatpush1.xpose.msra.mxu0 0.0
    %2540 = vmatprep.subr.mxu0 0.0
    %2541 = vmatpush1.xpose.msra.mxu0 0.0
    %2542 = vmatprep.subr.mxu0 0.0
    %2543 = vmatpush1.xpose.msra.mxu0 0.0
    %2544 = vmatprep.subr.mxu0 0.0
    %2545 = vmatpush1.xpose.msra.mxu0 0.0
    %2546 = vmatprep.subr.mxu0 0.0
    %2547 = vmatpush1.xpose.msra.mxu0 0.0
    %2548 = vmatprep.subr.mxu0 0.0
    %2549 = vmatpush1.xpose.msra.mxu0 0.0
    %2550 = vmatprep.subr.mxu0 0.0
    %2551 = vmatpush1.xpose.msra.mxu0 0.0
    %2552 = vmatprep.subr.mxu0 0.0
    %2553 = vmatpush1.xpose.msra.mxu0 0.0
    %2554 = vmatprep.subr.mxu0 0.0
    %2555 = vmatpush1.xpose.msra.mxu0 0.0
    %2556 = vmatprep.subr.mxu0 0.0
    %2557 = vmatpush1.xpose.msra.mxu0 0.0
    %2558 = vmatprep.subr.mxu0 0.0
    %2559 = vmatpush1.xpose.msra.mxu0 0.0
    %2560 = vmatprep.subr.mxu0 0.0
    %2561 = vmatpush1.xpose.msra.mxu0 0.0
    %2562 = vmatprep.subr.mxu0 0.0
    %2563 = vmatpush1.xpose.msra.mxu0 0.0
    %2564 = vmatprep.subr.mxu0 0.0
    %2565 = vmatpush1.xpose.msra.mxu0 0.0
    %2566 = vmatprep.subr.mxu0 0.0
    %2567 = vmatpush1.xpose.msra.mxu0 0.0
    %2568 = vmatprep.subr.mxu0 0.0
    %2569 = vmatpush1.xpose.msra.mxu0 0.0
    %2570 = vmatprep.subr.mxu0 0.0
    %2571 = vmatpush1.xpose.msra.mxu0 0.0
    %2572 = vmatprep.subr.mxu0 0.0
    %2573 = vmatpush1.xpose.msra.mxu0 0.0
    %2574 = vmatprep.subr.mxu0 0.0
    %2575 = vmatpush1.xpose.msra.mxu0 0.0
    %2576 = vmatprep.subr.mxu0 0.0
    %2577 = vmatpush1.xpose.msra.mxu0 0.0
    %2578 = vmatprep.subr.mxu0 0.0
    %2579 = vmatpush1.xpose.msra.mxu0 0.0
    %2580 = vmatprep.subr.mxu0 0.0
    %2581 = vmatpush1.xpose.msra.mxu0 0.0
    %2582 = vmatprep.subr.mxu0 0.0
    %2583 = vmatpush1.xpose.msra.mxu0 0.0
    %2584 = vmatprep.subr.mxu0 0.0
    %2585 = vmatpush1.xpose.msra.mxu0 0.0
    %2586 = vmatprep.subr.mxu0 0.0
    %2587 = vmatpush1.xpose.msra.mxu0 0.0
    %2588 = vmatprep.subr.mxu0 0.0
    %2589 = vmatpush1.xpose.msra.mxu0 0.0
    %2590 = vmatprep.mubr.f32.mxu0 0.0
    %2591 = vmatmul.mubr.f32.gmra.mrb[0].mxu0 %v2517
    %v2592 = vpop.f32.mrb[0].mxu0
    %v2593 = vadd.f32 %v29, %v2592
    %v2594 = vpop.f32.mrb[0].mxu0
    %2595 = vmatprep.mubr.f32.mxu0 0.0
    %2596 = vmatmul.mubr.f32.gmra.mrb[0].mxu0 %v2520
    %v2597 = vpop.f32.mrb[0].mxu0
    %v2598 = vadd.f32 %v30, %v2597
    %v2599 = vpop.f32.mrb[0].mxu0
    %2600 = vdwg.mxu0
    %v2602 = vsel %vm69, %v2504, 0
    %v2605 = vsel %vm69, %v2505, 0
    %2607 = vmatprep.subr.mxu0 0.0
    %2608 = vmatpush1.xpose.msra.mxu0 %v2522
    %2609 = vmatprep.subr.mxu0 0.0
    %2610 = vmatpush1.xpose.msra.mxu0 %v2524
    %2611 = vmatprep.subr.mxu0 0.0
    %2612 = vmatpush1.xpose.msra.mxu0 0.0
    %2613 = vmatprep.subr.mxu0 0.0
    %2614 = vmatpush1.xpose.msra.mxu0 0.0
    %2615 = vmatprep.subr.mxu0 0.0
    %2616 = vmatpush1.xpose.msra.mxu0 0.0
    %2617 = vmatprep.subr.mxu0 0.0
    %2618 = vmatpush1.xpose.msra.mxu0 0.0
    %2619 = vmatprep.subr.mxu0 0.0
    %2620 = vmatpush1.xpose.msra.mxu0 0.0
    %2621 = vmatprep.subr.mxu0 0.0
    %2622 = vmatpush1.xpose.msra.mxu0 0.0
    %2623 = vmatprep.subr.mxu0 0.0
    %2624 = vmatpush1.xpose.msra.mxu0 0.0
    %2625 = vmatprep.subr.mxu0 0.0
    %2626 = vmatpush1.xpose.msra.mxu0 0.0
    %2627 = vmatprep.subr.mxu0 0.0
    %2628 = vmatpush1.xpose.msra.mxu0 0.0
    %2629 = vmatprep.subr.mxu0 0.0
    %2630 = vmatpush1.xpose.msra.mxu0 0.0
    %2631 = vmatprep.subr.mxu0 0.0
    %2632 = vmatpush1.xpose.msra.mxu0 0.0
    %2633 = vmatprep.subr.mxu0 0.0
    %2634 = vmatpush1.xpose.msra.mxu0 0.0
    %2635 = vmatprep.subr.mxu0 0.0
    %2636 = vmatpush1.xpose.msra.mxu0 0.0
    %2637 = vmatprep.subr.mxu0 0.0
    %2638 = vmatpush1.xpose.msra.mxu0 0.0
    %2639 = vmatprep.subr.mxu0 0.0
    %2640 = vmatpush1.xpose.msra.mxu0 0.0
    %2641 = vmatprep.subr.mxu0 0.0
    %2642 = vmatpush1.xpose.msra.mxu0 0.0
    %2643 = vmatprep.subr.mxu0 0.0
    %2644 = vmatpush1.xpose.msra.mxu0 0.0
    %2645 = vmatprep.subr.mxu0 0.0
    %2646 = vmatpush1.xpose.msra.mxu0 0.0
    %2647 = vmatprep.subr.mxu0 0.0
    %2648 = vmatpush1.xpose.msra.mxu0 0.0
    %2649 = vmatprep.subr.mxu0 0.0
    %2650 = vmatpush1.xpose.msra.mxu0 0.0
    %2651 = vmatprep.subr.mxu0 0.0
    %2652 = vmatpush1.xpose.msra.mxu0 0.0
    %2653 = vmatprep.subr.mxu0 0.0
    %2654 = vmatpush1.xpose.msra.mxu0 0.0
    %2655 = vmatprep.subr.mxu0 0.0
    %2656 = vmatpush1.xpose.msra.mxu0 0.0
    %2657 = vmatprep.subr.mxu0 0.0
    %2658 = vmatpush1.xpose.msra.mxu0 0.0
    %2659 = vmatprep.subr.mxu0 0.0
    %2660 = vmatpush1.xpose.msra.mxu0 0.0
    %2661 = vmatprep.subr.mxu0 0.0
    %2662 = vmatpush1.xpose.msra.mxu0 0.0
    %2663 = vmatprep.subr.mxu0 0.0
    %2664 = vmatpush1.xpose.msra.mxu0 0.0
    %2665 = vmatprep.subr.mxu0 0.0
    %2666 = vmatpush1.xpose.msra.mxu0 0.0
    %2667 = vmatprep.subr.mxu0 0.0
    %2668 = vmatpush1.xpose.msra.mxu0 0.0
    %2669 = vmatprep.subr.mxu0 0.0
    %2670 = vmatpush1.xpose.msra.mxu0 0.0
    %2671 = vmatprep.mubr.f32.mxu0 0.0
    %2672 = vmatmul.mubr.f32.gmra.mrb[0].mxu0 %v2602
    %v2673 = vpop.f32.mrb[0].mxu0
    %v2674 = vadd.f32 %v29, %v2673
    %v2675 = vpop.f32.mrb[0].mxu0
    %2676 = vmatprep.mubr.f32.mxu0 0.0
    %2677 = vmatmul.mubr.f32.gmra.mrb[0].mxu0 %v2605
    %v2678 = vpop.f32.mrb[0].mxu0
    %v2679 = vadd.f32 %v30, %v2678
    %v2680 = vpop.f32.mrb[0].mxu0
    %2681 = vdwg.mxu0
    %v2683 = vsel %vm69, %v2506, 0
    %v2686 = vsel %vm69, %v2507, 0
    %2688 = vmatprep.subr.mxu0 0.0
    %2689 = vmatpush1.xpose.msra.mxu0 %v2522
    %2690 = vmatprep.subr.mxu0 0.0
    %2691 = vmatpush1.xpose.msra.mxu0 %v2524
    %2692 = vmatprep.subr.mxu0 0.0
    %2693 = vmatpush1.xpose.msra.mxu0 0.0
    %2694 = vmatprep.subr.mxu0 0.0
    %2695 = vmatpush1.xpose.msra.mxu0 0.0
    %2696 = vmatprep.subr.mxu0 0.0
    %2697 = vmatpush1.xpose.msra.mxu0 0.0
    %2698 = vmatprep.subr.mxu0 0.0
    %2699 = vmatpush1.xpose.msra.mxu0 0.0
    %2700 = vmatprep.subr.mxu0 0.0
    %2701 = vmatpush1.xpose.msra.mxu0 0.0
    %2702 = vmatprep.subr.mxu0 0.0
    %2703 = vmatpush1.xpose.msra.mxu0 0.0
    %2704 = vmatprep.subr.mxu0 0.0
    %2705 = vmatpush1.xpose.msra.mxu0 0.0
    %2706 = vmatprep.subr.mxu0 0.0
    %2707 = vmatpush1.xpose.msra.mxu0 0.0
    %2708 = vmatprep.subr.mxu0 0.0
    %2709 = vmatpush1.xpose.msra.mxu0 0.0
    %2710 = vmatprep.subr.mxu0 0.0
    %2711 = vmatpush1.xpose.msra.mxu0 0.0
    %2712 = vmatprep.subr.mxu0 0.0
    %2713 = vmatpush1.xpose.msra.mxu0 0.0
    %2714 = vmatprep.subr.mxu0 0.0
    %2715 = vmatpush1.xpose.msra.mxu0 0.0
    %2716 = vmatprep.subr.mxu0 0.0
    %2717 = vmatpush1.xpose.msra.mxu0 0.0
    %2718 = vmatprep.subr.mxu0 0.0
    %2719 = vmatpush1.xpose.msra.mxu0 0.0
    %2720 = vmatprep.subr.mxu0 0.0
    %2721 = vmatpush1.xpose.msra.mxu0 0.0
    %2722 = vmatprep.subr.mxu0 0.0
    %2723 = vmatpush1.xpose.msra.mxu0 0.0
    %2724 = vmatprep.subr.mxu0 0.0
    %2725 = vmatpush1.xpose.msra.mxu0 0.0
    %2726 = vmatprep.subr.mxu0 0.0
    %2727 = vmatpush1.xpose.msra.mxu0 0.0
    %2728 = vmatprep.subr.mxu0 0.0
    %2729 = vmatpush1.xpose.msra.mxu0 0.0
    %2730 = vmatprep.subr.mxu0 0.0
    %2731 = vmatpush1.xpose.msra.mxu0 0.0
    %2732 = vmatprep.subr.mxu0 0.0
    %2733 = vmatpush1.xpose.msra.mxu0 0.0
    %2734 = vmatprep.subr.mxu0 0.0
    %2735 = vmatpush1.xpose.msra.mxu0 0.0
    %2736 = vmatprep.subr.mxu0 0.0
    %2737 = vmatpush1.xpose.msra.mxu0 0.0
    %2738 = vmatprep.subr.mxu0 0.0
    %2739 = vmatpush1.xpose.msra.mxu0 0.0
    %2740 = vmatprep.subr.mxu0 0.0
    %2741 = vmatpush1.xpose.msra.mxu0 0.0
    %2742 = vmatprep.subr.mxu0 0.0
    %2743 = vmatpush1.xpose.msra.mxu0 0.0
    %2744 = vmatprep.subr.mxu0 0.0
    %2745 = vmatpush1.xpose.msra.mxu0 0.0
    %2746 = vmatprep.subr.mxu0 0.0
    %2747 = vmatpush1.xpose.msra.mxu0 0.0
    %2748 = vmatprep.subr.mxu0 0.0
    %2749 = vmatpush1.xpose.msra.mxu0 0.0
    %2750 = vmatprep.subr.mxu0 0.0
    %2751 = vmatpush1.xpose.msra.mxu0 0.0
    %2752 = vmatprep.mubr.f32.mxu0 0.0
    %2753 = vmatmul.mubr.f32.gmra.mrb[0].mxu0 %v2683
    %v2754 = vpop.f32.mrb[0].mxu0
    %v2755 = vadd.f32 %v29, %v2754
    %v2756 = vpop.f32.mrb[0].mxu0
    %2757 = vmatprep.mubr.f32.mxu0 0.0
    %2758 = vmatmul.mubr.f32.gmra.mrb[0].mxu0 %v2686
    %v2759 = vpop.f32.mrb[0].mxu0
    %v2760 = vadd.f32 %v30, %v2759
    %v2761 = vpop.f32.mrb[0].mxu0
    %2762 = vdwg.mxu0
    %v2764 = vsel %vm69, %v2508, 0
    %v2767 = vsel %vm69, %v2509, 0
    %2769 = vmatprep.subr.mxu0 0.0
    %2770 = vmatpush1.xpose.msra.mxu0 %v2522
    %2771 = vmatprep.subr.mxu0 0.0
    %2772 = vmatpush1.xpose.msra.mxu0 %v2524
    %2773 = vmatprep.subr.mxu0 0.0
    %2774 = vmatpush1.xpose.msra.mxu0 0.0
    %2775 = vmatprep.subr.mxu0 0.0
    %2776 = vmatpush1.xpose.msra.mxu0 0.0
    %2777 = vmatprep.subr.mxu0 0.0
    %2778 = vmatpush1.xpose.msra.mxu0 0.0
    %2779 = vmatprep.subr.mxu0 0.0
    %2780 = vmatpush1.xpose.msra.mxu0 0.0
    %2781 = vmatprep.subr.mxu0 0.0
    %2782 = vmatpush1.xpose.msra.mxu0 0.0
    %2783 = vmatprep.subr.mxu0 0.0
    %2784 = vmatpush1.xpose.msra.mxu0 0.0
    %2785 = vmatprep.subr.mxu0 0.0
    %2786 = vmatpush1.xpose.msra.mxu0 0.0
    %2787 = vmatprep.subr.mxu0 0.0
    %2788 = vmatpush1.xpose.msra.mxu0 0.0
    %2789 = vmatprep.subr.mxu0 0.0
    %2790 = vmatpush1.xpose.msra.mxu0 0.0
    %2791 = vmatprep.subr.mxu0 0.0
    %2792 = vmatpush1.xpose.msra.mxu0 0.0
    %2793 = vmatprep.subr.mxu0 0.0
    %2794 = vmatpush1.xpose.msra.mxu0 0.0
    %2795 = vmatprep.subr.mxu0 0.0
    %2796 = vmatpush1.xpose.msra.mxu0 0.0
    %2797 = vmatprep.subr.mxu0 0.0
    %2798 = vmatpush1.xpose.msra.mxu0 0.0
    %2799 = vmatprep.subr.mxu0 0.0
    %2800 = vmatpush1.xpose.msra.mxu0 0.0
    %2801 = vmatprep.subr.mxu0 0.0
    %2802 = vmatpush1.xpose.msra.mxu0 0.0
    %2803 = vmatprep.subr.mxu0 0.0
    %2804 = vmatpush1.xpose.msra.mxu0 0.0
    %2805 = vmatprep.subr.mxu0 0.0
    %2806 = vmatpush1.xpose.msra.mxu0 0.0
    %2807 = vmatprep.subr.mxu0 0.0
    %2808 = vmatpush1.xpose.msra.mxu0 0.0
    %2809 = vmatprep.subr.mxu0 0.0
    %2810 = vmatpush1.xpose.msra.mxu0 0.0
    %2811 = vmatprep.subr.mxu0 0.0
    %2812 = vmatpush1.xpose.msra.mxu0 0.0
    %2813 = vmatprep.subr.mxu0 0.0
    %2814 = vmatpush1.xpose.msra.mxu0 0.0
    %2815 = vmatprep.subr.mxu0 0.0
    %2816 = vmatpush1.xpose.msra.mxu0 0.0
    %2817 = vmatprep.subr.mxu0 0.0
    %2818 = vmatpush1.xpose.msra.mxu0 0.0
    %2819 = vmatprep.subr.mxu0 0.0
    %2820 = vmatpush1.xpose.msra.mxu0 0.0
    %2821 = vmatprep.subr.mxu0 0.0
    %2822 = vmatpush1.xpose.msra.mxu0 0.0
    %2823 = vmatprep.subr.mxu0 0.0
    %2824 = vmatpush1.xpose.msra.mxu0 0.0
    %2825 = vmatprep.subr.mxu0 0.0
    %2826 = vmatpush1.xpose.msra.mxu0 0.0
    %2827 = vmatprep.subr.mxu0 0.0
    %2828 = vmatpush1.xpose.msra.mxu0 0.0
    %2829 = vmatprep.subr.mxu0 0.0
    %2830 = vmatpush1.xpose.msra.mxu0 0.0
    %2831 = vmatprep.subr.mxu0 0.0
    %2832 = vmatpush1.xpose.msra.mxu0 0.0
    %2833 = vmatprep.mubr.f32.mxu0 0.0
    %2834 = vmatmul.mubr.f32.gmra.mrb[0].mxu0 %v2764
    %v2835 = vpop.f32.mrb[0].mxu0
    %v2836 = vadd.f32 %v29, %v2835
    %v2837 = vpop.f32.mrb[0].mxu0
    %2838 = vmatprep.mubr.f32.mxu0 0.0
    %2839 = vmatmul.mubr.f32.gmra.mrb[0].mxu0 %v2767
    %v2840 = vpop.f32.mrb[0].mxu0
    %v2841 = vadd.f32 %v30, %v2840
    %v2842 = vpop.f32.mrb[0].mxu0
    %2843 = vdwg.mxu0
    %v2844 = vsel %vm633, %v2593, -inf
    %2845 = vmax.xlane.f32.xlu0 %v2844
    %v2846 = vpop.xlane.xlu0 %2845
    %v2847 = vsel %vm633, %v2598, -inf
    %2848 = vmax.xlane.f32.xlu0 %v2847
    %v2849 = vpop.xlane.xlu0 %2848
    %v2850 = vsel %vm633, %v2674, -inf
    %2851 = vmax.xlane.f32.xlu0 %v2850
    %v2852 = vpop.xlane.xlu0 %2851
    %v2853 = vsel %vm633, %v2679, -inf
    %2854 = vmax.xlane.f32.xlu0 %v2853
    %v2855 = vpop.xlane.xlu0 %2854
    %v2856 = vsel %vm633, %v2755, -inf
    %2857 = vmax.xlane.f32.xlu0 %v2856
    %v2858 = vpop.xlane.xlu0 %2857
    %v2859 = vsel %vm633, %v2760, -inf
    %2860 = vmax.xlane.f32.xlu0 %v2859
    %v2861 = vpop.xlane.xlu0 %2860
    %v2862 = vsel %vm633, %v2836, -inf
    %2863 = vmax.xlane.f32.xlu0 %v2862
    %v2864 = vpop.xlane.xlu0 %2863
    %v2865 = vsel %vm633, %v2841, -inf
    %2866 = vmax.xlane.f32.xlu0 %v2865
    %v2867 = vpop.xlane.xlu0 %2866
    %v2868 = vsub.f32 %v2593, %v2846
    %v2869 = vsub.f32 %v2598, %v2849
    %v2870 = vsub.f32 %v2674, %v2852
    %v2871 = vsub.f32 %v2679, %v2855
    %v2872 = vsub.f32 %v2755, %v2858
    %v2873 = vsub.f32 %v2760, %v2861
    %v2874 = vsub.f32 %v2836, %v2864
    %v2875 = vsub.f32 %v2841, %v2867
    %v2876 = vmul.f32 %v2868, 1.442695
    %v2877 = vpow.pop %v2876
    %v2878 = vmul.f32 %v2869, 1.442695
    %v2879 = vpow.pop %v2878
    %v2880 = vmul.f32 %v2870, 1.442695
    %v2881 = vpow.pop %v2880
    %v2882 = vmul.f32 %v2871, 1.442695
    %v2883 = vpow.pop %v2882
    %v2884 = vmul.f32 %v2872, 1.442695
    %v2885 = vpow.pop %v2884
    %v2886 = vmul.f32 %v2873, 1.442695
    %v2887 = vpow.pop %v2886
    %v2888 = vmul.f32 %v2874, 1.442695
    %v2889 = vpow.pop %v2888
    %v2890 = vmul.f32 %v2875, 1.442695
    %v2891 = vpow.pop %v2890
    %v2892 = vsel %vm633, %v2877, 0.0
    %2893 = vadd.xlane.f32.xlu0 %v2892
    %v2894 = vpop.xlane.xlu0 %2893
    %v2895 = vsel %vm633, %v2879, 0.0
    %2896 = vadd.xlane.f32.xlu0 %v2895
    %v2897 = vpop.xlane.xlu0 %2896
    %v2898 = vsel %vm633, %v2881, 0.0
    %2899 = vadd.xlane.f32.xlu0 %v2898
    %v2900 = vpop.xlane.xlu0 %2899
    %v2901 = vsel %vm633, %v2883, 0.0
    %2902 = vadd.xlane.f32.xlu0 %v2901
    %v2903 = vpop.xlane.xlu0 %2902
    %v2904 = vsel %vm633, %v2885, 0.0
    %2905 = vadd.xlane.f32.xlu0 %v2904
    %v2906 = vpop.xlane.xlu0 %2905
    %v2907 = vsel %vm633, %v2887, 0.0
    %2908 = vadd.xlane.f32.xlu0 %v2907
    %v2909 = vpop.xlane.xlu0 %2908
    %v2910 = vsel %vm633, %v2889, 0.0
    %2911 = vadd.xlane.f32.xlu0 %v2910
    %v2912 = vpop.xlane.xlu0 %2911
    %v2913 = vsel %vm633, %v2891, 0.0
    %2914 = vadd.xlane.f32.xlu0 %v2913
    %v2915 = vpop.xlane.xlu0 %2914
    %v2916 = vrcp.pop %v2894
    %v2917 = vrcp.pop %v2897
    %v2918 = vrcp.pop %v2900
    %v2919 = vrcp.pop %v2903
    %v2920 = vrcp.pop %v2906
    %v2921 = vrcp.pop %v2909
    %v2922 = vrcp.pop %v2912
    %v2923 = vrcp.pop %v2915
    %v2924 = vmul.f32 %v2877, %v2916
    %v2925 = vmul.f32 %v2879, %v2917
    %v2926 = vmul.f32 %v2881, %v2918
    %v2927 = vmul.f32 %v2883, %v2919
    %v2928 = vmul.f32 %v2885, %v2920
    %v2929 = vmul.f32 %v2887, %v2921
    %v2930 = vmul.f32 %v2889, %v2922
    %v2931 = vmul.f32 %v2891, %v2923
    %2932 = vrot.lane.b32.xlu0 %v2494, 64
    %v2933 = vpop.permute.xlu0 %2932
    %2934 = vrot.lane.b32.xlu0 %v2499, 64
    %v2935 = vpop.permute.xlu0 %2934
    %v2939 = vsel %vm633, %v2924, 0
    %v2942 = vsel %vm633, %v2925, 0
    %2944 = vmatprep.subr.mxu0 0.0
    %2945 = vmatpush1.msra.mxu0 %v2933
    %2946 = vmatprep.subr.mxu0 0.0
    %2947 = vmatpush1.msra.mxu0 %v2935
    %2948 = vmatprep.subr.mxu0 0.0
    %2949 = vmatpush1.msra.mxu0 0.0
    %2950 = vmatprep.subr.mxu0 0.0
    %2951 = vmatpush1.msra.mxu0 0.0
    %2952 = vmatprep.subr.mxu0 0.0
    %2953 = vmatpush1.msra.mxu0 0.0
    %2954 = vmatprep.subr.mxu0 0.0
    %2955 = vmatpush1.msra.mxu0 0.0
    %2956 = vmatprep.subr.mxu0 0.0
    %2957 = vmatpush1.msra.mxu0 0.0
    %2958 = vmatprep.subr.mxu0 0.0
    %2959 = vmatpush1.msra.mxu0 0.0
    %2960 = vmatprep.subr.mxu0 0.0
    %2961 = vmatpush1.msra.mxu0 0.0
    %2962 = vmatprep.subr.mxu0 0.0
    %2963 = vmatpush1.msra.mxu0 0.0
    %2964 = vmatprep.subr.mxu0 0.0
    %2965 = vmatpush1.msra.mxu0 0.0
    %2966 = vmatprep.subr.mxu0 0.0
    %2967 = vmatpush1.msra.mxu0 0.0
    %2968 = vmatprep.subr.mxu0 0.0
    %2969 = vmatpush1.msra.mxu0 0.0
    %2970 = vmatprep.subr.mxu0 0.0
    %2971 = vmatpush1.msra.mxu0 0.0
    %2972 = vmatprep.subr.mxu0 0.0
    %2973 = vmatpush1.msra.mxu0 0.0
    %2974 = vmatprep.subr.mxu0 0.0
    %2975 = vmatpush1.msra.mxu0 0.0
    %2976 = vmatprep.subr.mxu0 0.0
    %2977 = vmatpush1.msra.mxu0 0.0
    %2978 = vmatprep.subr.mxu0 0.0
    %2979 = vmatpush1.msra.mxu0 0.0
    %2980 = vmatprep.subr.mxu0 0.0
    %2981 = vmatpush1.msra.mxu0 0.0
    %2982 = vmatprep.subr.mxu0 0.0
    %2983 = vmatpush1.msra.mxu0 0.0
    %2984 = vmatprep.subr.mxu0 0.0
    %2985 = vmatpush1.msra.mxu0 0.0
    %2986 = vmatprep.subr.mxu0 0.0
    %2987 = vmatpush1.msra.mxu0 0.0
    %2988 = vmatprep.subr.mxu0 0.0
    %2989 = vmatpush1.msra.mxu0 0.0
    %2990 = vmatprep.subr.mxu0 0.0
    %2991 = vmatpush1.msra.mxu0 0.0
    %2992 = vmatprep.subr.mxu0 0.0
    %2993 = vmatpush1.msra.mxu0 0.0
    %2994 = vmatprep.subr.mxu0 0.0
    %2995 = vmatpush1.msra.mxu0 0.0
    %2996 = vmatprep.subr.mxu0 0.0
    %2997 = vmatpush1.msra.mxu0 0.0
    %2998 = vmatprep.subr.mxu0 0.0
    %2999 = vmatpush1.msra.mxu0 0.0
    %3000 = vmatprep.subr.mxu0 0.0
    %3001 = vmatpush1.msra.mxu0 0.0
    %3002 = vmatprep.subr.mxu0 0.0
    %3003 = vmatpush1.msra.mxu0 0.0
    %3004 = vmatprep.subr.mxu0 0.0
    %3005 = vmatpush1.msra.mxu0 0.0
    %3006 = vmatprep.subr.mxu0 0.0
    %3007 = vmatpush1.msra.mxu0 0.0
    %3008 = vmatprep.mubr.f32.mxu0 0.0
    %3009 = vmatmul.mubr.f32.gmra.mrb[0].mxu0 %v2939
    %v3010 = vpop.f32.mrb[0].mxu0
    %v3011 = vadd.f32 0.0, %v3010
    %v3012 = vpop.f32.mrb[0].mxu0
    %3013 = vmatprep.mubr.f32.mxu0 0.0
    %3014 = vmatmul.mubr.f32.gmra.mrb[0].mxu0 %v2942
    %v3015 = vpop.f32.mrb[0].mxu0
    %v3016 = vadd.f32 0.0, %v3015
    %v3017 = vpop.f32.mrb[0].mxu0
    %3018 = vdwg.mxu0
    %v3020 = vsel %vm633, %v2926, 0
    %v3023 = vsel %vm633, %v2927, 0
    %3025 = vmatprep.subr.mxu0 0.0
    %3026 = vmatpush1.msra.mxu0 %v2933
    %3027 = vmatprep.subr.mxu0 0.0
    %3028 = vmatpush1.msra.mxu0 %v2935
    %3029 = vmatprep.subr.mxu0 0.0
    %3030 = vmatpush1.msra.mxu0 0.0
    %3031 = vmatprep.subr.mxu0 0.0
    %3032 = vmatpush1.msra.mxu0 0.0
    %3033 = vmatprep.subr.mxu0 0.0
    %3034 = vmatpush1.msra.mxu0 0.0
    %3035 = vmatprep.subr.mxu0 0.0
    %3036 = vmatpush1.msra.mxu0 0.0
    %3037 = vmatprep.subr.mxu0 0.0
    %3038 = vmatpush1.msra.mxu0 0.0
    %3039 = vmatprep.subr.mxu0 0.0
    %3040 = vmatpush1.msra.mxu0 0.0
    %3041 = vmatprep.subr.mxu0 0.0
    %3042 = vmatpush1.msra.mxu0 0.0
    %3043 = vmatprep.subr.mxu0 0.0
    %3044 = vmatpush1.msra.mxu0 0.0
    %3045 = vmatprep.subr.mxu0 0.0
    %3046 = vmatpush1.msra.mxu0 0.0
    %3047 = vmatprep.subr.mxu0 0.0
    %3048 = vmatpush1.msra.mxu0 0.0
    %3049 = vmatprep.subr.mxu0 0.0
    %3050 = vmatpush1.msra.mxu0 0.0
    %3051 = vmatprep.subr.mxu0 0.0
    %3052 = vmatpush1.msra.mxu0 0.0
    %3053 = vmatprep.subr.mxu0 0.0
    %3054 = vmatpush1.msra.mxu0 0.0
    %3055 = vmatprep.subr.mxu0 0.0
    %3056 = vmatpush1.msra.mxu0 0.0
    %3057 = vmatprep.subr.mxu0 0.0
    %3058 = vmatpush1.msra.mxu0 0.0
    %3059 = vmatprep.subr.mxu0 0.0
    %3060 = vmatpush1.msra.mxu0 0.0
    %3061 = vmatprep.subr.mxu0 0.0
    %3062 = vmatpush1.msra.mxu0 0.0
    %3063 = vmatprep.subr.mxu0 0.0
    %3064 = vmatpush1.msra.mxu0 0.0
    %3065 = vmatprep.subr.mxu0 0.0
    %3066 = vmatpush1.msra.mxu0 0.0
    %3067 = vmatprep.subr.mxu0 0.0
    %3068 = vmatpush1.msra.mxu0 0.0
    %3069 = vmatprep.subr.mxu0 0.0
    %3070 = vmatpush1.msra.mxu0 0.0
    %3071 = vmatprep.subr.mxu0 0.0
    %3072 = vmatpush1.msra.mxu0 0.0
    %3073 = vmatprep.subr.mxu0 0.0
    %3074 = vmatpush1.msra.mxu0 0.0
    %3075 = vmatprep.subr.mxu0 0.0
    %3076 = vmatpush1.msra.mxu0 0.0
    %3077 = vmatprep.subr.mxu0 0.0
    %3078 = vmatpush1.msra.mxu0 0.0
    %3079 = vmatprep.subr.mxu0 0.0
    %3080 = vmatpush1.msra.mxu0 0.0
    %3081 = vmatprep.subr.mxu0 0.0
    %3082 = vmatpush1.msra.mxu0 0.0
    %3083 = vmatprep.subr.mxu0 0.0
    %3084 = vmatpush1.msra.mxu0 0.0
    %3085 = vmatprep.subr.mxu0 0.0
    %3086 = vmatpush1.msra.mxu0 0.0
    %3087 = vmatprep.subr.mxu0 0.0
    %3088 = vmatpush1.msra.mxu0 0.0
    %3089 = vmatprep.mubr.f32.mxu0 0.0
    %3090 = vmatmul.mubr.f32.gmra.mrb[0].mxu0 %v3020
    %v3091 = vpop.f32.mrb[0].mxu0
    %v3092 = vadd.f32 0.0, %v3091
    %v3093 = vpop.f32.mrb[0].mxu0
    %3094 = vmatprep.mubr.f32.mxu0 0.0
    %3095 = vmatmul.mubr.f32.gmra.mrb[0].mxu0 %v3023
    %v3096 = vpop.f32.mrb[0].mxu0
    %v3097 = vadd.f32 0.0, %v3096
    %v3098 = vpop.f32.mrb[0].mxu0
    %3099 = vdwg.mxu0
    %v3101 = vsel %vm633, %v2928, 0
    %v3104 = vsel %vm633, %v2929, 0
    %3106 = vmatprep.subr.mxu0 0.0
    %3107 = vmatpush1.msra.mxu0 %v2933
    %3108 = vmatprep.subr.mxu0 0.0
    %3109 = vmatpush1.msra.mxu0 %v2935
    %3110 = vmatprep.subr.mxu0 0.0
    %3111 = vmatpush1.msra.mxu0 0.0
    %3112 = vmatprep.subr.mxu0 0.0
    %3113 = vmatpush1.msra.mxu0 0.0
    %3114 = vmatprep.subr.mxu0 0.0
    %3115 = vmatpush1.msra.mxu0 0.0
    %3116 = vmatprep.subr.mxu0 0.0
    %3117 = vmatpush1.msra.mxu0 0.0
    %3118 = vmatprep.subr.mxu0 0.0
    %3119 = vmatpush1.msra.mxu0 0.0
    %3120 = vmatprep.subr.mxu0 0.0
    %3121 = vmatpush1.msra.mxu0 0.0
    %3122 = vmatprep.subr.mxu0 0.0
    %3123 = vmatpush1.msra.mxu0 0.0
    %3124 = vmatprep.subr.mxu0 0.0
    %3125 = vmatpush1.msra.mxu0 0.0
    %3126 = vmatprep.subr.mxu0 0.0
    %3127 = vmatpush1.msra.mxu0 0.0
    %3128 = vmatprep.subr.mxu0 0.0
    %3129 = vmatpush1.msra.mxu0 0.0
    %3130 = vmatprep.subr.mxu0 0.0
    %3131 = vmatpush1.msra.mxu0 0.0
    %3132 = vmatprep.subr.mxu0 0.0
    %3133 = vmatpush1.msra.mxu0 0.0
    %3134 = vmatprep.subr.mxu0 0.0
    %3135 = vmatpush1.msra.mxu0 0.0
    %3136 = vmatprep.subr.mxu0 0.0
    %3137 = vmatpush1.msra.mxu0 0.0
    %3138 = vmatprep.subr.mxu0 0.0
    %3139 = vmatpush1.msra.mxu0 0.0
    %3140 = vmatprep.subr.mxu0 0.0
    %3141 = vmatpush1.msra.mxu0 0.0
    %3142 = vmatprep.subr.mxu0 0.0
    %3143 = vmatpush1.msra.mxu0 0.0
    %3144 = vmatprep.subr.mxu0 0.0
    %3145 = vmatpush1.msra.mxu0 0.0
    %3146 = vmatprep.subr.mxu0 0.0
    %3147 = vmatpush1.msra.mxu0 0.0
    %3148 = vmatprep.subr.mxu0 0.0
    %3149 = vmatpush1.msra.mxu0 0.0
    %3150 = vmatprep.subr.mxu0 0.0
    %3151 = vmatpush1.msra.mxu0 0.0
    %3152 = vmatprep.subr.mxu0 0.0
    %3153 = vmatpush1.msra.mxu0 0.0
    %3154 = vmatprep.subr.mxu0 0.0
    %3155 = vmatpush1.msra.mxu0 0.0
    %3156 = vmatprep.subr.mxu0 0.0
    %3157 = vmatpush1.msra.mxu0 0.0
    %3158 = vmatprep.subr.mxu0 0.0
    %3159 = vmatpush1.msra.mxu0 0.0
    %3160 = vmatprep.subr.mxu0 0.0
    %3161 = vmatpush1.msra.mxu0 0.0
    %3162 = vmatprep.subr.mxu0 0.0
    %3163 = vmatpush1.msra.mxu0 0.0
    %3164 = vmatprep.subr.mxu0 0.0
    %3165 = vmatpush1.msra.mxu0 0.0
    %3166 = vmatprep.subr.mxu0 0.0
    %3167 = vmatpush1.msra.mxu0 0.0
    %3168 = vmatprep.subr.mxu0 0.0
    %3169 = vmatpush1.msra.mxu0 0.0
    %3170 = vmatprep.mubr.f32.mxu0 0.0
    %3171 = vmatmul.mubr.f32.gmra.mrb[0].mxu0 %v3101
    %v3172 = vpop.f32.mrb[0].mxu0
    %v3173 = vadd.f32 0.0, %v3172
    %v3174 = vpop.f32.mrb[0].mxu0
    %3175 = vmatprep.mubr.f32.mxu0 0.0
    %3176 = vmatmul.mubr.f32.gmra.mrb[0].mxu0 %v3104
    %v3177 = vpop.f32.mrb[0].mxu0
    %v3178 = vadd.f32 0.0, %v3177
    %v3179 = vpop.f32.mrb[0].mxu0
    %3180 = vdwg.mxu0
    %v3182 = vsel %vm633, %v2930, 0
    %v3185 = vsel %vm633, %v2931, 0
    %3187 = vmatprep.subr.mxu0 0.0
    %3188 = vmatpush1.msra.mxu0 %v2933
    %3189 = vmatprep.subr.mxu0 0.0
    %3190 = vmatpush1.msra.mxu0 %v2935
    %3191 = vmatprep.subr.mxu0 0.0
    %3192 = vmatpush1.msra.mxu0 0.0
    %3193 = vmatprep.subr.mxu0 0.0
    %3194 = vmatpush1.msra.mxu0 0.0
    %3195 = vmatprep.subr.mxu0 0.0
    %3196 = vmatpush1.msra.mxu0 0.0
    %3197 = vmatprep.subr.mxu0 0.0
    %3198 = vmatpush1.msra.mxu0 0.0
    %3199 = vmatprep.subr.mxu0 0.0
    %3200 = vmatpush1.msra.mxu0 0.0
    %3201 = vmatprep.subr.mxu0 0.0
    %3202 = vmatpush1.msra.mxu0 0.0
    %3203 = vmatprep.subr.mxu0 0.0
    %3204 = vmatpush1.msra.mxu0 0.0
    %3205 = vmatprep.subr.mxu0 0.0
    %3206 = vmatpush1.msra.mxu0 0.0
    %3207 = vmatprep.subr.mxu0 0.0
    %3208 = vmatpush1.msra.mxu0 0.0
    %3209 = vmatprep.subr.mxu0 0.0
    %3210 = vmatpush1.msra.mxu0 0.0
    %3211 = vmatprep.subr.mxu0 0.0
    %3212 = vmatpush1.msra.mxu0 0.0
    %3213 = vmatprep.subr.mxu0 0.0
    %3214 = vmatpush1.msra.mxu0 0.0
    %3215 = vmatprep.subr.mxu0 0.0
    %3216 = vmatpush1.msra.mxu0 0.0
    %3217 = vmatprep.subr.mxu0 0.0
    %3218 = vmatpush1.msra.mxu0 0.0
    %3219 = vmatprep.subr.mxu0 0.0
    %3220 = vmatpush1.msra.mxu0 0.0
    %3221 = vmatprep.subr.mxu0 0.0
    %3222 = vmatpush1.msra.mxu0 0.0
    %3223 = vmatprep.subr.mxu0 0.0
    %3224 = vmatpush1.msra.mxu0 0.0
    %3225 = vmatprep.subr.mxu0 0.0
    %3226 = vmatpush1.msra.mxu0 0.0
    %3227 = vmatprep.subr.mxu0 0.0
    %3228 = vmatpush1.msra.mxu0 0.0
    %3229 = vmatprep.subr.mxu0 0.0
    %3230 = vmatpush1.msra.mxu0 0.0
    %3231 = vmatprep.subr.mxu0 0.0
    %3232 = vmatpush1.msra.mxu0 0.0
    %3233 = vmatprep.subr.mxu0 0.0
    %3234 = vmatpush1.msra.mxu0 0.0
    %3235 = vmatprep.subr.mxu0 0.0
    %3236 = vmatpush1.msra.mxu0 0.0
    %3237 = vmatprep.subr.mxu0 0.0
    %3238 = vmatpush1.msra.mxu0 0.0
    %3239 = vmatprep.subr.mxu0 0.0
    %3240 = vmatpush1.msra.mxu0 0.0
    %3241 = vmatprep.subr.mxu0 0.0
    %3242 = vmatpush1.msra.mxu0 0.0
    %3243 = vmatprep.subr.mxu0 0.0
    %3244 = vmatpush1.msra.mxu0 0.0
    %3245 = vmatprep.subr.mxu0 0.0
    %3246 = vmatpush1.msra.mxu0 0.0
    %3247 = vmatprep.subr.mxu0 0.0
    %3248 = vmatpush1.msra.mxu0 0.0
    %3249 = vmatprep.subr.mxu0 0.0
    %3250 = vmatpush1.msra.mxu0 0.0
    %3251 = vmatprep.mubr.f32.mxu0 0.0
    %3252 = vmatmul.mubr.f32.gmra.mrb[0].mxu0 %v3182
    %v3253 = vpop.f32.mrb[0].mxu0
    %v3254 = vadd.f32 0.0, %v3253
    %v3255 = vpop.f32.mrb[0].mxu0
    %3256 = vmatprep.mubr.f32.mxu0 0.0
    %3257 = vmatmul.mubr.f32.gmra.mrb[0].mxu0 %v3185
    %v3258 = vpop.f32.mrb[0].mxu0
    %v3259 = vadd.f32 0.0, %v3258
    %v3260 = vpop.f32.mrb[0].mxu0
    %3261 = vdwg.mxu0
    %v3262 = vmul.f32 %v3011, %v53
    %v3263 = vmul.f32 %v3016, %v53
    %v3264 = vmul.f32 %v3092, %v54
    %v3265 = vmul.f32 %v3097, %v54
    %v3266 = vmul.f32 %v3173, %v55
    %v3267 = vmul.f32 %v3178, %v55
    %v3268 = vmul.f32 %v3254, %v56
    %v3269 = vmul.f32 %v3259, %v56
    %v3270 = vsel %vm69, %v3262, 0.0
    %v3271 = vsel %vm69, %v3264, 0.0
    %v3272 = vadd.f32 %v3270, %v3271
    %v3273 = vsel %vm69, %v3266, 0.0
    %v3274 = vadd.f32 %v3272, %v3273
    %v3275 = vsel %vm69, %v3268, 0.0
    %v3276 = vadd.f32 %v3274, %v3275
    %v3277 = vsel %vm69, %v3263, 0.0
    %v3278 = vsel %vm69, %v3265, 0.0
    %v3279 = vadd.f32 %v3277, %v3278
    %v3280 = vsel %vm69, %v3267, 0.0
    %v3281 = vadd.f32 %v3279, %v3280
    %v3282 = vsel %vm69, %v3269, 0.0
    %v3283 = vadd.f32 %v3281, %v3282
    %v3285 = vsel %vm69, %v3276, 0
    %v3288 = vsel %vm69, %v3283, 0
    %3290 = vmatprep.subr.mxu0 0.0
    %3291 = vmatpush1.msra.mxu0 %v287
    %3292 = vmatprep.subr.mxu0 0.0
    %3293 = vmatpush1.msra.mxu0 %v288
    %3294 = vmatprep.subr.mxu0 0.0
    %3295 = vmatpush1.msra.mxu0 %v289
    %3296 = vmatprep.subr.mxu0 0.0
    %3297 = vmatpush1.msra.mxu0 %v290
    %3298 = vmatprep.subr.mxu0 0.0
    %3299 = vmatpush1.msra.mxu0 0.0
    %3300 = vmatprep.subr.mxu0 0.0
    %3301 = vmatpush1.msra.mxu0 0.0
    %3302 = vmatprep.subr.mxu0 0.0
    %3303 = vmatpush1.msra.mxu0 0.0
    %3304 = vmatprep.subr.mxu0 0.0
    %3305 = vmatpush1.msra.mxu0 0.0
    %3306 = vmatprep.subr.mxu0 0.0
    %3307 = vmatpush1.msra.mxu0 0.0
    %3308 = vmatprep.subr.mxu0 0.0
    %3309 = vmatpush1.msra.mxu0 0.0
    %3310 = vmatprep.subr.mxu0 0.0
    %3311 = vmatpush1.msra.mxu0 0.0
    %3312 = vmatprep.subr.mxu0 0.0
    %3313 = vmatpush1.msra.mxu0 0.0
    %3314 = vmatprep.subr.mxu0 0.0
    %3315 = vmatpush1.msra.mxu0 0.0
    %3316 = vmatprep.subr.mxu0 0.0
    %3317 = vmatpush1.msra.mxu0 0.0
    %3318 = vmatprep.subr.mxu0 0.0
    %3319 = vmatpush1.msra.mxu0 0.0
    %3320 = vmatprep.subr.mxu0 0.0
    %3321 = vmatpush1.msra.mxu0 0.0
    %3322 = vmatprep.subr.mxu0 0.0
    %3323 = vmatpush1.msra.mxu0 0.0
    %3324 = vmatprep.subr.mxu0 0.0
    %3325 = vmatpush1.msra.mxu0 0.0
    %3326 = vmatprep.subr.mxu0 0.0
    %3327 = vmatpush1.msra.mxu0 0.0
    %3328 = vmatprep.subr.mxu0 0.0
    %3329 = vmatpush1.msra.mxu0 0.0
    %3330 = vmatprep.subr.mxu0 0.0
    %3331 = vmatpush1.msra.mxu0 0.0
    %3332 = vmatprep.subr.mxu0 0.0
    %3333 = vmatpush1.msra.mxu0 0.0
    %3334 = vmatprep.subr.mxu0 0.0
    %3335 = vmatpush1.msra.mxu0 0.0
    %3336 = vmatprep.subr.mxu0 0.0
    %3337 = vmatpush1.msra.mxu0 0.0
    %3338 = vmatprep.subr.mxu0 0.0
    %3339 = vmatpush1.msra.mxu0 0.0
    %3340 = vmatprep.subr.mxu0 0.0
    %3341 = vmatpush1.msra.mxu0 0.0
    %3342 = vmatprep.subr.mxu0 0.0
    %3343 = vmatpush1.msra.mxu0 0.0
    %3344 = vmatprep.subr.mxu0 0.0
    %3345 = vmatpush1.msra.mxu0 0.0
    %3346 = vmatprep.subr.mxu0 0.0
    %3347 = vmatpush1.msra.mxu0 0.0
    %3348 = vmatprep.subr.mxu0 0.0
    %3349 = vmatpush1.msra.mxu0 0.0
    %3350 = vmatprep.subr.mxu0 0.0
    %3351 = vmatpush1.msra.mxu0 0.0
    %3352 = vmatprep.subr.mxu0 0.0
    %3353 = vmatpush1.msra.mxu0 0.0
    %3354 = vmatprep.mubr.f32.mxu0 0.0
    %3355 = vmatmul.mubr.f32.gmra.mrb[0].mxu0 %v3285
    %v3356 = vpop.f32.mrb[0].mxu0
    %v3357 = vadd.f32 %v1077, %v3356
    %v3358 = vpop.f32.mrb[0].mxu0
    %3359 = vmatprep.mubr.f32.mxu0 0.0
    %3360 = vmatmul.mubr.f32.gmra.mrb[0].mxu0 %v3288
    %v3361 = vpop.f32.mrb[0].mxu0
    %v3362 = vadd.f32 %v1077, %v3361
    %v3363 = vpop.f32.mrb[0].mxu0
    %3364 = vdwg.mxu0
    %v3365 = vadd.f32 %v2389, %v3357
    %v3366 = vadd.f32 %v2390, %v3362
    %v3367 = vsel %vm69, %v3365, 0.0
    %3368 = vadd.xlane.f32.xlu0 %v3367
    %v3369 = vpop.xlane.xlu0 %3368
    %v3370 = vsel %vm69, %v3366, 0.0
    %3371 = vadd.xlane.f32.xlu0 %v3370
    %v3372 = vpop.xlane.xlu0 %3371
    %v3373 = vmul.f32 %v3369, %v165
    %v3374 = vmul.f32 %v3372, %v165
    %v3375 = vsub.f32 %v3365, %v3373
    %v3376 = vsub.f32 %v3366, %v3374
    %v3377 = vmul.f32 %v3375, %v3375
    %v3378 = vmul.f32 %v3376, %v3376
    %v3379 = vsel %vm69, %v3377, 0.0
    %3380 = vadd.xlane.f32.xlu0 %v3379
    %v3381 = vpop.xlane.xlu0 %3380
    %v3382 = vsel %vm69, %v3378, 0.0
    %3383 = vadd.xlane.f32.xlu0 %v3382
    %v3384 = vpop.xlane.xlu0 %3383
    %v3385 = vmul.f32 %v3381, %v165
    %v3386 = vmul.f32 %v3384, %v165
    %v3387 = vadd.f32 %v3385, 1e-05
    %v3388 = vadd.f32 %v3386, 1e-05
    %v3389 = vrsqrt.pop %v3387
    %v3390 = vrsqrt.pop %v3388
    %v3391 = vmul.f32 %v3375, %v3389
    %v3392 = vmul.f32 %v3376, %v3390
    %v3393 = vmul.f32 %v3391, %v1190
    %v3394 = vmul.f32 %v3392, %v1190
    %v3395 = vadd.f32 %v3393, %v1196
    %v3396 = vadd.f32 %v3394, %v1196
    %v3398 = vsel %vm69, %v3395, 0
    %v3401 = vsel %vm69, %v3396, 0
    %3403 = vmatprep.subr.mxu0 0.0
    %3404 = vmatpush1.msra.mxu0 %v1199
    %3405 = vmatprep.subr.mxu0 0.0
    %3406 = vmatpush1.msra.mxu0 %v1200
    %3407 = vmatprep.subr.mxu0 0.0
    %3408 = vmatpush1.msra.mxu0 %v1201
    %3409 = vmatprep.subr.mxu0 0.0
    %3410 = vmatpush1.msra.mxu0 %v1202
    %3411 = vmatprep.subr.mxu0 0.0
    %3412 = vmatpush1.msra.mxu0 0.0
    %3413 = vmatprep.subr.mxu0 0.0
    %3414 = vmatpush1.msra.mxu0 0.0
    %3415 = vmatprep.subr.mxu0 0.0
    %3416 = vmatpush1.msra.mxu0 0.0
    %3417 = vmatprep.subr.mxu0 0.0
    %3418 = vmatpush1.msra.mxu0 0.0
    %3419 = vmatprep.subr.mxu0 0.0
    %3420 = vmatpush1.msra.mxu0 0.0
    %3421 = vmatprep.subr.mxu0 0.0
    %3422 = vmatpush1.msra.mxu0 0.0
    %3423 = vmatprep.subr.mxu0 0.0
    %3424 = vmatpush1.msra.mxu0 0.0
    %3425 = vmatprep.subr.mxu0 0.0
    %3426 = vmatpush1.msra.mxu0 0.0
    %3427 = vmatprep.subr.mxu0 0.0
    %3428 = vmatpush1.msra.mxu0 0.0
    %3429 = vmatprep.subr.mxu0 0.0
    %3430 = vmatpush1.msra.mxu0 0.0
    %3431 = vmatprep.subr.mxu0 0.0
    %3432 = vmatpush1.msra.mxu0 0.0
    %3433 = vmatprep.subr.mxu0 0.0
    %3434 = vmatpush1.msra.mxu0 0.0
    %3435 = vmatprep.subr.mxu0 0.0
    %3436 = vmatpush1.msra.mxu0 0.0
    %3437 = vmatprep.subr.mxu0 0.0
    %3438 = vmatpush1.msra.mxu0 0.0
    %3439 = vmatprep.subr.mxu0 0.0
    %3440 = vmatpush1.msra.mxu0 0.0
    %3441 = vmatprep.subr.mxu0 0.0
    %3442 = vmatpush1.msra.mxu0 0.0
    %3443 = vmatprep.subr.mxu0 0.0
    %3444 = vmatpush1.msra.mxu0 0.0
    %3445 = vmatprep.subr.mxu0 0.0
    %3446 = vmatpush1.msra.mxu0 0.0
    %3447 = vmatprep.subr.mxu0 0.0
    %3448 = vmatpush1.msra.mxu0 0.0
    %3449 = vmatprep.subr.mxu0 0.0
    %3450 = vmatpush1.msra.mxu0 0.0
    %3451 = vmatprep.subr.mxu0 0.0
    %3452 = vmatpush1.msra.mxu0 0.0
    %3453 = vmatprep.subr.mxu0 0.0
    %3454 = vmatpush1.msra.mxu0 0.0
    %3455 = vmatprep.subr.mxu0 0.0
    %3456 = vmatpush1.msra.mxu0 0.0
    %3457 = vmatprep.subr.mxu0 0.0
    %3458 = vmatpush1.msra.mxu0 0.0
    %3459 = vmatprep.subr.mxu0 0.0
    %3460 = vmatpush1.msra.mxu0 0.0
    %3461 = vmatprep.subr.mxu0 0.0
    %3462 = vmatpush1.msra.mxu0 0.0
    %3463 = vmatprep.subr.mxu0 0.0
    %3464 = vmatpush1.msra.mxu0 0.0
    %3465 = vmatprep.subr.mxu0 0.0
    %3466 = vmatpush1.msra.mxu0 0.0
    %3467 = vmatprep.mubr.f32.mxu0 0.0
    %3468 = vmatmul.mubr.f32.gmra.mrb[0].mxu0 %v3398
    %v3469 = vpop.f32.mrb[0].mxu0
    %v3470 = vadd.f32 %v1206, %v3469
    %v3471 = vpop.f32.mrb[0].mxu0
    %3472 = vmatprep.mubr.f32.mxu0 0.0
    %3473 = vmatmul.mubr.f32.gmra.mrb[0].mxu0 %v3401
    %v3474 = vpop.f32.mrb[0].mxu0
    %v3475 = vadd.f32 %v1206, %v3474
    %v3476 = vpop.f32.mrb[0].mxu0
    %3477 = vdwg.mxu0
    %v3478 = vmul.f32 %v3470, %v57
    %v3479 = vmul.f32 %v3475, %v57
    %v3480 = vmul.f32 %v3470, %v58
    %v3481 = vmul.f32 %v3475, %v58
    %v3482 = vmul.f32 %v3470, %v59
    %v3483 = vmul.f32 %v3475, %v59
    %v3484 = vmul.f32 %v3470, %v60
    %v3485 = vmul.f32 %v3475, %v60
    %v3487 = vsel %vm69, %v3478, 0
    %v3490 = vsel %vm69, %v3479, 0
    %3492 = vmatprep.subr.mxu0 0.0
    %3493 = vmatpush1.xpose.msra.mxu0 %v1307
    %3494 = vmatprep.subr.mxu0 0.0
    %3495 = vmatpush1.xpose.msra.mxu0 %v1310
    %3496 = vmatprep.subr.mxu0 0.0
    %3497 = vmatpush1.xpose.msra.mxu0 %v1313
    %3498 = vmatprep.subr.mxu0 0.0
    %3499 = vmatpush1.xpose.msra.mxu0 0.0
    %3500 = vmatprep.subr.mxu0 0.0
    %3501 = vmatpush1.xpose.msra.mxu0 0.0
    %3502 = vmatprep.subr.mxu0 0.0
    %3503 = vmatpush1.xpose.msra.mxu0 0.0
    %3504 = vmatprep.subr.mxu0 0.0
    %3505 = vmatpush1.xpose.msra.mxu0 0.0
    %3506 = vmatprep.subr.mxu0 0.0
    %3507 = vmatpush1.xpose.msra.mxu0 0.0
    %3508 = vmatprep.subr.mxu0 0.0
    %3509 = vmatpush1.xpose.msra.mxu0 0.0
    %3510 = vmatprep.subr.mxu0 0.0
    %3511 = vmatpush1.xpose.msra.mxu0 0.0
    %3512 = vmatprep.subr.mxu0 0.0
    %3513 = vmatpush1.xpose.msra.mxu0 0.0
    %3514 = vmatprep.subr.mxu0 0.0
    %3515 = vmatpush1.xpose.msra.mxu0 0.0
    %3516 = vmatprep.subr.mxu0 0.0
    %3517 = vmatpush1.xpose.msra.mxu0 0.0
    %3518 = vmatprep.subr.mxu0 0.0
    %3519 = vmatpush1.xpose.msra.mxu0 0.0
    %3520 = vmatprep.subr.mxu0 0.0
    %3521 = vmatpush1.xpose.msra.mxu0 0.0
    %3522 = vmatprep.subr.mxu0 0.0
    %3523 = vmatpush1.xpose.msra.mxu0 0.0
    %3524 = vmatprep.subr.mxu0 0.0
    %3525 = vmatpush1.xpose.msra.mxu0 0.0
    %3526 = vmatprep.subr.mxu0 0.0
    %3527 = vmatpush1.xpose.msra.mxu0 0.0
    %3528 = vmatprep.subr.mxu0 0.0
    %3529 = vmatpush1.xpose.msra.mxu0 0.0
    %3530 = vmatprep.subr.mxu0 0.0
    %3531 = vmatpush1.xpose.msra.mxu0 0.0
    %3532 = vmatprep.subr.mxu0 0.0
    %3533 = vmatpush1.xpose.msra.mxu0 0.0
    %3534 = vmatprep.subr.mxu0 0.0
    %3535 = vmatpush1.xpose.msra.mxu0 0.0
    %3536 = vmatprep.subr.mxu0 0.0
    %3537 = vmatpush1.xpose.msra.mxu0 0.0
    %3538 = vmatprep.subr.mxu0 0.0
    %3539 = vmatpush1.xpose.msra.mxu0 0.0
    %3540 = vmatprep.subr.mxu0 0.0
    %3541 = vmatpush1.xpose.msra.mxu0 0.0
    %3542 = vmatprep.subr.mxu0 0.0
    %3543 = vmatpush1.xpose.msra.mxu0 0.0
    %3544 = vmatprep.subr.mxu0 0.0
    %3545 = vmatpush1.xpose.msra.mxu0 0.0
    %3546 = vmatprep.subr.mxu0 0.0
    %3547 = vmatpush1.xpose.msra.mxu0 0.0
    %3548 = vmatprep.subr.mxu0 0.0
    %3549 = vmatpush1.xpose.msra.mxu0 0.0
    %3550 = vmatprep.subr.mxu0 0.0
    %3551 = vmatpush1.xpose.msra.mxu0 0.0
    %3552 = vmatprep.subr.mxu0 0.0
    %3553 = vmatpush1.xpose.msra.mxu0 0.0
    %3554 = vmatprep.subr.mxu0 0.0
    %3555 = vmatpush1.xpose.msra.mxu0 0.0
    %3556 = vmatprep.mubr.f32.mxu0 0.0
    %3557 = vmatmul.mubr.f32.gmra.mrb[0].mxu0 %v3487
    %v3558 = vpop.f32.mrb[0].mxu0
    %v3559 = vadd.f32 %v31, %v3558
    %v3560 = vpop.f32.mrb[0].mxu0
    %3561 = vmatprep.mubr.f32.mxu0 0.0
    %3562 = vmatmul.mubr.f32.gmra.mrb[0].mxu0 %v3490
    %v3563 = vpop.f32.mrb[0].mxu0
    %v3564 = vadd.f32 %v32, %v3563
    %v3565 = vpop.f32.mrb[0].mxu0
    %3566 = vdwg.mxu0
    %v3568 = vsel %vm69, %v3480, 0
    %v3571 = vsel %vm69, %v3481, 0
    %3573 = vmatprep.subr.mxu0 0.0
    %3574 = vmatpush1.xpose.msra.mxu0 %v1307
    %3575 = vmatprep.subr.mxu0 0.0
    %3576 = vmatpush1.xpose.msra.mxu0 %v1310
    %3577 = vmatprep.subr.mxu0 0.0
    %3578 = vmatpush1.xpose.msra.mxu0 %v1313
    %3579 = vmatprep.subr.mxu0 0.0
    %3580 = vmatpush1.xpose.msra.mxu0 0.0
    %3581 = vmatprep.subr.mxu0 0.0
    %3582 = vmatpush1.xpose.msra.mxu0 0.0
    %3583 = vmatprep.subr.mxu0 0.0
    %3584 = vmatpush1.xpose.msra.mxu0 0.0
    %3585 = vmatprep.subr.mxu0 0.0
    %3586 = vmatpush1.xpose.msra.mxu0 0.0
    %3587 = vmatprep.subr.mxu0 0.0
    %3588 = vmatpush1.xpose.msra.mxu0 0.0
    %3589 = vmatprep.subr.mxu0 0.0
    %3590 = vmatpush1.xpose.msra.mxu0 0.0
    %3591 = vmatprep.subr.mxu0 0.0
    %3592 = vmatpush1.xpose.msra.mxu0 0.0
    %3593 = vmatprep.subr.mxu0 0.0
    %3594 = vmatpush1.xpose.msra.mxu0 0.0
    %3595 = vmatprep.subr.mxu0 0.0
    %3596 = vmatpush1.xpose.msra.mxu0 0.0
    %3597 = vmatprep.subr.mxu0 0.0
    %3598 = vmatpush1.xpose.msra.mxu0 0.0
    %3599 = vmatprep.subr.mxu0 0.0
    %3600 = vmatpush1.xpose.msra.mxu0 0.0
    %3601 = vmatprep.subr.mxu0 0.0
    %3602 = vmatpush1.xpose.msra.mxu0 0.0
    %3603 = vmatprep.subr.mxu0 0.0
    %3604 = vmatpush1.xpose.msra.mxu0 0.0
    %3605 = vmatprep.subr.mxu0 0.0
    %3606 = vmatpush1.xpose.msra.mxu0 0.0
    %3607 = vmatprep.subr.mxu0 0.0
    %3608 = vmatpush1.xpose.msra.mxu0 0.0
    %3609 = vmatprep.subr.mxu0 0.0
    %3610 = vmatpush1.xpose.msra.mxu0 0.0
    %3611 = vmatprep.subr.mxu0 0.0
    %3612 = vmatpush1.xpose.msra.mxu0 0.0
    %3613 = vmatprep.subr.mxu0 0.0
    %3614 = vmatpush1.xpose.msra.mxu0 0.0
    %3615 = vmatprep.subr.mxu0 0.0
    %3616 = vmatpush1.xpose.msra.mxu0 0.0
    %3617 = vmatprep.subr.mxu0 0.0
    %3618 = vmatpush1.xpose.msra.mxu0 0.0
    %3619 = vmatprep.subr.mxu0 0.0
    %3620 = vmatpush1.xpose.msra.mxu0 0.0
    %3621 = vmatprep.subr.mxu0 0.0
    %3622 = vmatpush1.xpose.msra.mxu0 0.0
    %3623 = vmatprep.subr.mxu0 0.0
    %3624 = vmatpush1.xpose.msra.mxu0 0.0
    %3625 = vmatprep.subr.mxu0 0.0
    %3626 = vmatpush1.xpose.msra.mxu0 0.0
    %3627 = vmatprep.subr.mxu0 0.0
    %3628 = vmatpush1.xpose.msra.mxu0 0.0
    %3629 = vmatprep.subr.mxu0 0.0
    %3630 = vmatpush1.xpose.msra.mxu0 0.0
    %3631 = vmatprep.subr.mxu0 0.0
    %3632 = vmatpush1.xpose.msra.mxu0 0.0
    %3633 = vmatprep.subr.mxu0 0.0
    %3634 = vmatpush1.xpose.msra.mxu0 0.0
    %3635 = vmatprep.subr.mxu0 0.0
    %3636 = vmatpush1.xpose.msra.mxu0 0.0
    %3637 = vmatprep.mubr.f32.mxu0 0.0
    %3638 = vmatmul.mubr.f32.gmra.mrb[0].mxu0 %v3568
    %v3639 = vpop.f32.mrb[0].mxu0
    %v3640 = vadd.f32 %v31, %v3639
    %v3641 = vpop.f32.mrb[0].mxu0
    %3642 = vmatprep.mubr.f32.mxu0 0.0
    %3643 = vmatmul.mubr.f32.gmra.mrb[0].mxu0 %v3571
    %v3644 = vpop.f32.mrb[0].mxu0
    %v3645 = vadd.f32 %v32, %v3644
    %v3646 = vpop.f32.mrb[0].mxu0
    %3647 = vdwg.mxu0
    %v3649 = vsel %vm69, %v3482, 0
    %v3652 = vsel %vm69, %v3483, 0
    %3654 = vmatprep.subr.mxu0 0.0
    %3655 = vmatpush1.xpose.msra.mxu0 %v1307
    %3656 = vmatprep.subr.mxu0 0.0
    %3657 = vmatpush1.xpose.msra.mxu0 %v1310
    %3658 = vmatprep.subr.mxu0 0.0
    %3659 = vmatpush1.xpose.msra.mxu0 %v1313
    %3660 = vmatprep.subr.mxu0 0.0
    %3661 = vmatpush1.xpose.msra.mxu0 0.0
    %3662 = vmatprep.subr.mxu0 0.0
    %3663 = vmatpush1.xpose.msra.mxu0 0.0
    %3664 = vmatprep.subr.mxu0 0.0
    %3665 = vmatpush1.xpose.msra.mxu0 0.0
    %3666 = vmatprep.subr.mxu0 0.0
    %3667 = vmatpush1.xpose.msra.mxu0 0.0
    %3668 = vmatprep.subr.mxu0 0.0
    %3669 = vmatpush1.xpose.msra.mxu0 0.0
    %3670 = vmatprep.subr.mxu0 0.0
    %3671 = vmatpush1.xpose.msra.mxu0 0.0
    %3672 = vmatprep.subr.mxu0 0.0
    %3673 = vmatpush1.xpose.msra.mxu0 0.0
    %3674 = vmatprep.subr.mxu0 0.0
    %3675 = vmatpush1.xpose.msra.mxu0 0.0
    %3676 = vmatprep.subr.mxu0 0.0
    %3677 = vmatpush1.xpose.msra.mxu0 0.0
    %3678 = vmatprep.subr.mxu0 0.0
    %3679 = vmatpush1.xpose.msra.mxu0 0.0
    %3680 = vmatprep.subr.mxu0 0.0
    %3681 = vmatpush1.xpose.msra.mxu0 0.0
    %3682 = vmatprep.subr.mxu0 0.0
    %3683 = vmatpush1.xpose.msra.mxu0 0.0
    %3684 = vmatprep.subr.mxu0 0.0
    %3685 = vmatpush1.xpose.msra.mxu0 0.0
    %3686 = vmatprep.subr.mxu0 0.0
    %3687 = vmatpush1.xpose.msra.mxu0 0.0
    %3688 = vmatprep.subr.mxu0 0.0
    %3689 = vmatpush1.xpose.msra.mxu0 0.0
    %3690 = vmatprep.subr.mxu0 0.0
    %3691 = vmatpush1.xpose.msra.mxu0 0.0
    %3692 = vmatprep.subr.mxu0 0.0
    %3693 = vmatpush1.xpose.msra.mxu0 0.0
    %3694 = vmatprep.subr.mxu0 0.0
    %3695 = vmatpush1.xpose.msra.mxu0 0.0
    %3696 = vmatprep.subr.mxu0 0.0
    %3697 = vmatpush1.xpose.msra.mxu0 0.0
    %3698 = vmatprep.subr.mxu0 0.0
    %3699 = vmatpush1.xpose.msra.mxu0 0.0
    %3700 = vmatprep.subr.mxu0 0.0
    %3701 = vmatpush1.xpose.msra.mxu0 0.0
    %3702 = vmatprep.subr.mxu0 0.0
    %3703 = vmatpush1.xpose.msra.mxu0 0.0
    %3704 = vmatprep.subr.mxu0 0.0
    %3705 = vmatpush1.xpose.msra.mxu0 0.0
    %3706 = vmatprep.subr.mxu0 0.0
    %3707 = vmatpush1.xpose.msra.mxu0 0.0
    %3708 = vmatprep.subr.mxu0 0.0
    %3709 = vmatpush1.xpose.msra.mxu0 0.0
    %3710 = vmatprep.subr.mxu0 0.0
    %3711 = vmatpush1.xpose.msra.mxu0 0.0
    %3712 = vmatprep.subr.mxu0 0.0
    %3713 = vmatpush1.xpose.msra.mxu0 0.0
    %3714 = vmatprep.subr.mxu0 0.0
    %3715 = vmatpush1.xpose.msra.mxu0 0.0
    %3716 = vmatprep.subr.mxu0 0.0
    %3717 = vmatpush1.xpose.msra.mxu0 0.0
    %3718 = vmatprep.mubr.f32.mxu0 0.0
    %3719 = vmatmul.mubr.f32.gmra.mrb[0].mxu0 %v3649
    %v3720 = vpop.f32.mrb[0].mxu0
    %v3721 = vadd.f32 %v31, %v3720
    %v3722 = vpop.f32.mrb[0].mxu0
    %3723 = vmatprep.mubr.f32.mxu0 0.0
    %3724 = vmatmul.mubr.f32.gmra.mrb[0].mxu0 %v3652
    %v3725 = vpop.f32.mrb[0].mxu0
    %v3726 = vadd.f32 %v32, %v3725
    %v3727 = vpop.f32.mrb[0].mxu0
    %3728 = vdwg.mxu0
    %v3730 = vsel %vm69, %v3484, 0
    %v3733 = vsel %vm69, %v3485, 0
    %3735 = vmatprep.subr.mxu0 0.0
    %3736 = vmatpush1.xpose.msra.mxu0 %v1307
    %3737 = vmatprep.subr.mxu0 0.0
    %3738 = vmatpush1.xpose.msra.mxu0 %v1310
    %3739 = vmatprep.subr.mxu0 0.0
    %3740 = vmatpush1.xpose.msra.mxu0 %v1313
    %3741 = vmatprep.subr.mxu0 0.0
    %3742 = vmatpush1.xpose.msra.mxu0 0.0
    %3743 = vmatprep.subr.mxu0 0.0
    %3744 = vmatpush1.xpose.msra.mxu0 0.0
    %3745 = vmatprep.subr.mxu0 0.0
    %3746 = vmatpush1.xpose.msra.mxu0 0.0
    %3747 = vmatprep.subr.mxu0 0.0
    %3748 = vmatpush1.xpose.msra.mxu0 0.0
    %3749 = vmatprep.subr.mxu0 0.0
    %3750 = vmatpush1.xpose.msra.mxu0 0.0
    %3751 = vmatprep.subr.mxu0 0.0
    %3752 = vmatpush1.xpose.msra.mxu0 0.0
    %3753 = vmatprep.subr.mxu0 0.0
    %3754 = vmatpush1.xpose.msra.mxu0 0.0
    %3755 = vmatprep.subr.mxu0 0.0
    %3756 = vmatpush1.xpose.msra.mxu0 0.0
    %3757 = vmatprep.subr.mxu0 0.0
    %3758 = vmatpush1.xpose.msra.mxu0 0.0
    %3759 = vmatprep.subr.mxu0 0.0
    %3760 = vmatpush1.xpose.msra.mxu0 0.0
    %3761 = vmatprep.subr.mxu0 0.0
    %3762 = vmatpush1.xpose.msra.mxu0 0.0
    %3763 = vmatprep.subr.mxu0 0.0
    %3764 = vmatpush1.xpose.msra.mxu0 0.0
    %3765 = vmatprep.subr.mxu0 0.0
    %3766 = vmatpush1.xpose.msra.mxu0 0.0
    %3767 = vmatprep.subr.mxu0 0.0
    %3768 = vmatpush1.xpose.msra.mxu0 0.0
    %3769 = vmatprep.subr.mxu0 0.0
    %3770 = vmatpush1.xpose.msra.mxu0 0.0
    %3771 = vmatprep.subr.mxu0 0.0
    %3772 = vmatpush1.xpose.msra.mxu0 0.0
    %3773 = vmatprep.subr.mxu0 0.0
    %3774 = vmatpush1.xpose.msra.mxu0 0.0
    %3775 = vmatprep.subr.mxu0 0.0
    %3776 = vmatpush1.xpose.msra.mxu0 0.0
    %3777 = vmatprep.subr.mxu0 0.0
    %3778 = vmatpush1.xpose.msra.mxu0 0.0
    %3779 = vmatprep.subr.mxu0 0.0
    %3780 = vmatpush1.xpose.msra.mxu0 0.0
    %3781 = vmatprep.subr.mxu0 0.0
    %3782 = vmatpush1.xpose.msra.mxu0 0.0
    %3783 = vmatprep.subr.mxu0 0.0
    %3784 = vmatpush1.xpose.msra.mxu0 0.0
    %3785 = vmatprep.subr.mxu0 0.0
    %3786 = vmatpush1.xpose.msra.mxu0 0.0
    %3787 = vmatprep.subr.mxu0 0.0
    %3788 = vmatpush1.xpose.msra.mxu0 0.0
    %3789 = vmatprep.subr.mxu0 0.0
    %3790 = vmatpush1.xpose.msra.mxu0 0.0
    %3791 = vmatprep.subr.mxu0 0.0
    %3792 = vmatpush1.xpose.msra.mxu0 0.0
    %3793 = vmatprep.subr.mxu0 0.0
    %3794 = vmatpush1.xpose.msra.mxu0 0.0
    %3795 = vmatprep.subr.mxu0 0.0
    %3796 = vmatpush1.xpose.msra.mxu0 0.0
    %3797 = vmatprep.subr.mxu0 0.0
    %3798 = vmatpush1.xpose.msra.mxu0 0.0
    %3799 = vmatprep.mubr.f32.mxu0 0.0
    %3800 = vmatmul.mubr.f32.gmra.mrb[0].mxu0 %v3730
    %v3801 = vpop.f32.mrb[0].mxu0
    %v3802 = vadd.f32 %v31, %v3801
    %v3803 = vpop.f32.mrb[0].mxu0
    %3804 = vmatprep.mubr.f32.mxu0 0.0
    %3805 = vmatmul.mubr.f32.gmra.mrb[0].mxu0 %v3733
    %v3806 = vpop.f32.mrb[0].mxu0
    %v3807 = vadd.f32 %v32, %v3806
    %v3808 = vpop.f32.mrb[0].mxu0
    %3809 = vdwg.mxu0
    %v3810 = vsel %vm1633, %v3559, -inf
    %3811 = vmax.xlane.f32.xlu0 %v3810
    %v3812 = vpop.xlane.xlu0 %3811
    %v3813 = vsel %vm1633, %v3564, -inf
    %3814 = vmax.xlane.f32.xlu0 %v3813
    %v3815 = vpop.xlane.xlu0 %3814
    %v3816 = vsel %vm1633, %v3640, -inf
    %3817 = vmax.xlane.f32.xlu0 %v3816
    %v3818 = vpop.xlane.xlu0 %3817
    %v3819 = vsel %vm1633, %v3645, -inf
    %3820 = vmax.xlane.f32.xlu0 %v3819
    %v3821 = vpop.xlane.xlu0 %3820
    %v3822 = vsel %vm1633, %v3721, -inf
    %3823 = vmax.xlane.f32.xlu0 %v3822
    %v3824 = vpop.xlane.xlu0 %3823
    %v3825 = vsel %vm1633, %v3726, -inf
    %3826 = vmax.xlane.f32.xlu0 %v3825
    %v3827 = vpop.xlane.xlu0 %3826
    %v3828 = vsel %vm1633, %v3802, -inf
    %3829 = vmax.xlane.f32.xlu0 %v3828
    %v3830 = vpop.xlane.xlu0 %3829
    %v3831 = vsel %vm1633, %v3807, -inf
    %3832 = vmax.xlane.f32.xlu0 %v3831
    %v3833 = vpop.xlane.xlu0 %3832
    %v3834 = vsub.f32 %v3559, %v3812
    %v3835 = vsub.f32 %v3564, %v3815
    %v3836 = vsub.f32 %v3640, %v3818
    %v3837 = vsub.f32 %v3645, %v3821
    %v3838 = vsub.f32 %v3721, %v3824
    %v3839 = vsub.f32 %v3726, %v3827
    %v3840 = vsub.f32 %v3802, %v3830
    %v3841 = vsub.f32 %v3807, %v3833
    %v3842 = vmul.f32 %v3834, 1.442695
    %v3843 = vpow.pop %v3842
    %v3844 = vmul.f32 %v3835, 1.442695
    %v3845 = vpow.pop %v3844
    %v3846 = vmul.f32 %v3836, 1.442695
    %v3847 = vpow.pop %v3846
    %v3848 = vmul.f32 %v3837, 1.442695
    %v3849 = vpow.pop %v3848
    %v3850 = vmul.f32 %v3838, 1.442695
    %v3851 = vpow.pop %v3850
    %v3852 = vmul.f32 %v3839, 1.442695
    %v3853 = vpow.pop %v3852
    %v3854 = vmul.f32 %v3840, 1.442695
    %v3855 = vpow.pop %v3854
    %v3856 = vmul.f32 %v3841, 1.442695
    %v3857 = vpow.pop %v3856
    %v3858 = vsel %vm1633, %v3843, 0.0
    %3859 = vadd.xlane.f32.xlu0 %v3858
    %v3860 = vpop.xlane.xlu0 %3859
    %v3861 = vsel %vm1633, %v3845, 0.0
    %3862 = vadd.xlane.f32.xlu0 %v3861
    %v3863 = vpop.xlane.xlu0 %3862
    %v3864 = vsel %vm1633, %v3847, 0.0
    %3865 = vadd.xlane.f32.xlu0 %v3864
    %v3866 = vpop.xlane.xlu0 %3865
    %v3867 = vsel %vm1633, %v3849, 0.0
    %3868 = vadd.xlane.f32.xlu0 %v3867
    %v3869 = vpop.xlane.xlu0 %3868
    %v3870 = vsel %vm1633, %v3851, 0.0
    %3871 = vadd.xlane.f32.xlu0 %v3870
    %v3872 = vpop.xlane.xlu0 %3871
    %v3873 = vsel %vm1633, %v3853, 0.0
    %3874 = vadd.xlane.f32.xlu0 %v3873
    %v3875 = vpop.xlane.xlu0 %3874
    %v3876 = vsel %vm1633, %v3855, 0.0
    %3877 = vadd.xlane.f32.xlu0 %v3876
    %v3878 = vpop.xlane.xlu0 %3877
    %v3879 = vsel %vm1633, %v3857, 0.0
    %3880 = vadd.xlane.f32.xlu0 %v3879
    %v3881 = vpop.xlane.xlu0 %3880
    %v3882 = vrcp.pop %v3860
    %v3883 = vrcp.pop %v3863
    %v3884 = vrcp.pop %v3866
    %v3885 = vrcp.pop %v3869
    %v3886 = vrcp.pop %v3872
    %v3887 = vrcp.pop %v3875
    %v3888 = vrcp.pop %v3878
    %v3889 = vrcp.pop %v3881
    %v3890 = vmul.f32 %v3843, %v3882
    %v3891 = vmul.f32 %v3845, %v3883
    %v3892 = vmul.f32 %v3847, %v3884
    %v3893 = vmul.f32 %v3849, %v3885
    %v3894 = vmul.f32 %v3851, %v3886
    %v3895 = vmul.f32 %v3853, %v3887
    %v3896 = vmul.f32 %v3855, %v3888
    %v3897 = vmul.f32 %v3857, %v3889
    %v3899 = vsel %vm1633, %v3890, 0
    %v3902 = vsel %vm1633, %v3891, 0
    %3904 = vmatprep.subr.mxu0 0.0
    %3905 = vmatpush1.msra.mxu0 %v1723
    %3906 = vmatprep.subr.mxu0 0.0
    %3907 = vmatpush1.msra.mxu0 %v1725
    %3908 = vmatprep.subr.mxu0 0.0
    %3909 = vmatpush1.msra.mxu0 %v1727
    %3910 = vmatprep.subr.mxu0 0.0
    %3911 = vmatpush1.msra.mxu0 0.0
    %3912 = vmatprep.subr.mxu0 0.0
    %3913 = vmatpush1.msra.mxu0 0.0
    %3914 = vmatprep.subr.mxu0 0.0
    %3915 = vmatpush1.msra.mxu0 0.0
    %3916 = vmatprep.subr.mxu0 0.0
    %3917 = vmatpush1.msra.mxu0 0.0
    %3918 = vmatprep.subr.mxu0 0.0
    %3919 = vmatpush1.msra.mxu0 0.0
    %3920 = vmatprep.subr.mxu0 0.0
    %3921 = vmatpush1.msra.mxu0 0.0
    %3922 = vmatprep.subr.mxu0 0.0
    %3923 = vmatpush1.msra.mxu0 0.0
    %3924 = vmatprep.subr.mxu0 0.0
    %3925 = vmatpush1.msra.mxu0 0.0
    %3926 = vmatprep.subr.mxu0 0.0
    %3927 = vmatpush1.msra.mxu0 0.0
    %3928 = vmatprep.subr.mxu0 0.0
    %3929 = vmatpush1.msra.mxu0 0.0
    %3930 = vmatprep.subr.mxu0 0.0
    %3931 = vmatpush1.msra.mxu0 0.0
    %3932 = vmatprep.subr.mxu0 0.0
    %3933 = vmatpush1.msra.mxu0 0.0
    %3934 = vmatprep.subr.mxu0 0.0
    %3935 = vmatpush1.msra.mxu0 0.0
    %3936 = vmatprep.subr.mxu0 0.0
    %3937 = vmatpush1.msra.mxu0 0.0
    %3938 = vmatprep.subr.mxu0 0.0
    %3939 = vmatpush1.msra.mxu0 0.0
    %3940 = vmatprep.subr.mxu0 0.0
    %3941 = vmatpush1.msra.mxu0 0.0
    %3942 = vmatprep.subr.mxu0 0.0
    %3943 = vmatpush1.msra.mxu0 0.0
    %3944 = vmatprep.subr.mxu0 0.0
    %3945 = vmatpush1.msra.mxu0 0.0
    %3946 = vmatprep.subr.mxu0 0.0
    %3947 = vmatpush1.msra.mxu0 0.0
    %3948 = vmatprep.subr.mxu0 0.0
    %3949 = vmatpush1.msra.mxu0 0.0
    %3950 = vmatprep.subr.mxu0 0.0
    %3951 = vmatpush1.msra.mxu0 0.0
    %3952 = vmatprep.subr.mxu0 0.0
    %3953 = vmatpush1.msra.mxu0 0.0
    %3954 = vmatprep.subr.mxu0 0.0
    %3955 = vmatpush1.msra.mxu0 0.0
    %3956 = vmatprep.subr.mxu0 0.0
    %3957 = vmatpush1.msra.mxu0 0.0
    %3958 = vmatprep.subr.mxu0 0.0
    %3959 = vmatpush1.msra.mxu0 0.0
    %3960 = vmatprep.subr.mxu0 0.0
    %3961 = vmatpush1.msra.mxu0 0.0
    %3962 = vmatprep.subr.mxu0 0.0
    %3963 = vmatpush1.msra.mxu0 0.0
    %3964 = vmatprep.subr.mxu0 0.0
    %3965 = vmatpush1.msra.mxu0 0.0
    %3966 = vmatprep.subr.mxu0 0.0
    %3967 = vmatpush1.msra.mxu0 0.0
    %3968 = vmatprep.mubr.f32.mxu0 0.0
    %3969 = vmatmul.mubr.f32.gmra.mrb[0].mxu0 %v3899
    %v3970 = vpop.f32.mrb[0].mxu0
    %v3971 = vadd.f32 0.0, %v3970
    %v3972 = vpop.f32.mrb[0].mxu0
    %3973 = vmatprep.mubr.f32.mxu0 0.0
    %3974 = vmatmul.mubr.f32.gmra.mrb[0].mxu0 %v3902
    %v3975 = vpop.f32.mrb[0].mxu0
    %v3976 = vadd.f32 0.0, %v3975
    %v3977 = vpop.f32.mrb[0].mxu0
    %3978 = vdwg.mxu0
    %v3980 = vsel %vm1633, %v3892, 0
    %v3983 = vsel %vm1633, %v3893, 0
    %3985 = vmatprep.subr.mxu0 0.0
    %3986 = vmatpush1.msra.mxu0 %v1723
    %3987 = vmatprep.subr.mxu0 0.0
    %3988 = vmatpush1.msra.mxu0 %v1725
    %3989 = vmatprep.subr.mxu0 0.0
    %3990 = vmatpush1.msra.mxu0 %v1727
    %3991 = vmatprep.subr.mxu0 0.0
    %3992 = vmatpush1.msra.mxu0 0.0
    %3993 = vmatprep.subr.mxu0 0.0
    %3994 = vmatpush1.msra.mxu0 0.0
    %3995 = vmatprep.subr.mxu0 0.0
    %3996 = vmatpush1.msra.mxu0 0.0
    %3997 = vmatprep.subr.mxu0 0.0
    %3998 = vmatpush1.msra.mxu0 0.0
    %3999 = vmatprep.subr.mxu0 0.0
    %4000 = vmatpush1.msra.mxu0 0.0
    %4001 = vmatprep.subr.mxu0 0.0
    %4002 = vmatpush1.msra.mxu0 0.0
    %4003 = vmatprep.subr.mxu0 0.0
    %4004 = vmatpush1.msra.mxu0 0.0
    %4005 = vmatprep.subr.mxu0 0.0
    %4006 = vmatpush1.msra.mxu0 0.0
    %4007 = vmatprep.subr.mxu0 0.0
    %4008 = vmatpush1.msra.mxu0 0.0
    %4009 = vmatprep.subr.mxu0 0.0
    %4010 = vmatpush1.msra.mxu0 0.0
    %4011 = vmatprep.subr.mxu0 0.0
    %4012 = vmatpush1.msra.mxu0 0.0
    %4013 = vmatprep.subr.mxu0 0.0
    %4014 = vmatpush1.msra.mxu0 0.0
    %4015 = vmatprep.subr.mxu0 0.0
    %4016 = vmatpush1.msra.mxu0 0.0
    %4017 = vmatprep.subr.mxu0 0.0
    %4018 = vmatpush1.msra.mxu0 0.0
    %4019 = vmatprep.subr.mxu0 0.0
    %4020 = vmatpush1.msra.mxu0 0.0
    %4021 = vmatprep.subr.mxu0 0.0
    %4022 = vmatpush1.msra.mxu0 0.0
    %4023 = vmatprep.subr.mxu0 0.0
    %4024 = vmatpush1.msra.mxu0 0.0
    %4025 = vmatprep.subr.mxu0 0.0
    %4026 = vmatpush1.msra.mxu0 0.0
    %4027 = vmatprep.subr.mxu0 0.0
    %4028 = vmatpush1.msra.mxu0 0.0
    %4029 = vmatprep.subr.mxu0 0.0
    %4030 = vmatpush1.msra.mxu0 0.0
    %4031 = vmatprep.subr.mxu0 0.0
    %4032 = vmatpush1.msra.mxu0 0.0
    %4033 = vmatprep.subr.mxu0 0.0
    %4034 = vmatpush1.msra.mxu0 0.0
    %4035 = vmatprep.subr.mxu0 0.0
    %4036 = vmatpush1.msra.mxu0 0.0
    %4037 = vmatprep.subr.mxu0 0.0
    %4038 = vmatpush1.msra.mxu0 0.0
    %4039 = vmatprep.subr.mxu0 0.0
    %4040 = vmatpush1.msra.mxu0 0.0
    %4041 = vmatprep.subr.mxu0 0.0
    %4042 = vmatpush1.msra.mxu0 0.0
    %4043 = vmatprep.subr.mxu0 0.0
    %4044 = vmatpush1.msra.mxu0 0.0
    %4045 = vmatprep.subr.mxu0 0.0
    %4046 = vmatpush1.msra.mxu0 0.0
    %4047 = vmatprep.subr.mxu0 0.0
    %4048 = vmatpush1.msra.mxu0 0.0
    %4049 = vmatprep.mubr.f32.mxu0 0.0
    %4050 = vmatmul.mubr.f32.gmra.mrb[0].mxu0 %v3980
    %v4051 = vpop.f32.mrb[0].mxu0
    %v4052 = vadd.f32 0.0, %v4051
    %v4053 = vpop.f32.mrb[0].mxu0
    %4054 = vmatprep.mubr.f32.mxu0 0.0
    %4055 = vmatmul.mubr.f32.gmra.mrb[0].mxu0 %v3983
    %v4056 = vpop.f32.mrb[0].mxu0
    %v4057 = vadd.f32 0.0, %v4056
    %v4058 = vpop.f32.mrb[0].mxu0
    %4059 = vdwg.mxu0
    %v4061 = vsel %vm1633, %v3894, 0
    %v4064 = vsel %vm1633, %v3895, 0
    %4066 = vmatprep.subr.mxu0 0.0
    %4067 = vmatpush1.msra.mxu0 %v1723
    %4068 = vmatprep.subr.mxu0 0.0
    %4069 = vmatpush1.msra.mxu0 %v1725
    %4070 = vmatprep.subr.mxu0 0.0
    %4071 = vmatpush1.msra.mxu0 %v1727
    %4072 = vmatprep.subr.mxu0 0.0
    %4073 = vmatpush1.msra.mxu0 0.0
    %4074 = vmatprep.subr.mxu0 0.0
    %4075 = vmatpush1.msra.mxu0 0.0
    %4076 = vmatprep.subr.mxu0 0.0
    %4077 = vmatpush1.msra.mxu0 0.0
    %4078 = vmatprep.subr.mxu0 0.0
    %4079 = vmatpush1.msra.mxu0 0.0
    %4080 = vmatprep.subr.mxu0 0.0
    %4081 = vmatpush1.msra.mxu0 0.0
    %4082 = vmatprep.subr.mxu0 0.0
    %4083 = vmatpush1.msra.mxu0 0.0
    %4084 = vmatprep.subr.mxu0 0.0
    %4085 = vmatpush1.msra.mxu0 0.0
    %4086 = vmatprep.subr.mxu0 0.0
    %4087 = vmatpush1.msra.mxu0 0.0
    %4088 = vmatprep.subr.mxu0 0.0
    %4089 = vmatpush1.msra.mxu0 0.0
    %4090 = vmatprep.subr.mxu0 0.0
    %4091 = vmatpush1.msra.mxu0 0.0
    %4092 = vmatprep.subr.mxu0 0.0
    %4093 = vmatpush1.msra.mxu0 0.0
    %4094 = vmatprep.subr.mxu0 0.0
    %4095 = vmatpush1.msra.mxu0 0.0
    %4096 = vmatprep.subr.mxu0 0.0
    %4097 = vmatpush1.msra.mxu0 0.0
    %4098 = vmatprep.subr.mxu0 0.0
    %4099 = vmatpush1.msra.mxu0 0.0
    %4100 = vmatprep.subr.mxu0 0.0
    %4101 = vmatpush1.msra.mxu0 0.0
    %4102 = vmatprep.subr.mxu0 0.0
    %4103 = vmatpush1.msra.mxu0 0.0
    %4104 = vmatprep.subr.mxu0 0.0
    %4105 = vmatpush1.msra.mxu0 0.0
    %4106 = vmatprep.subr.mxu0 0.0
    %4107 = vmatpush1.msra.mxu0 0.0
    %4108 = vmatprep.subr.mxu0 0.0
    %4109 = vmatpush1.msra.mxu0 0.0
    %4110 = vmatprep.subr.mxu0 0.0
    %4111 = vmatpush1.msra.mxu0 0.0
    %4112 = vmatprep.subr.mxu0 0.0
    %4113 = vmatpush1.msra.mxu0 0.0
    %4114 = vmatprep.subr.mxu0 0.0
    %4115 = vmatpush1.msra.mxu0 0.0
    %4116 = vmatprep.subr.mxu0 0.0
    %4117 = vmatpush1.msra.mxu0 0.0
    %4118 = vmatprep.subr.mxu0 0.0
    %4119 = vmatpush1.msra.mxu0 0.0
    %4120 = vmatprep.subr.mxu0 0.0
    %4121 = vmatpush1.msra.mxu0 0.0
    %4122 = vmatprep.subr.mxu0 0.0
    %4123 = vmatpush1.msra.mxu0 0.0
    %4124 = vmatprep.subr.mxu0 0.0
    %4125 = vmatpush1.msra.mxu0 0.0
    %4126 = vmatprep.subr.mxu0 0.0
    %4127 = vmatpush1.msra.mxu0 0.0
    %4128 = vmatprep.subr.mxu0 0.0
    %4129 = vmatpush1.msra.mxu0 0.0
    %4130 = vmatprep.mubr.f32.mxu0 0.0
    %4131 = vmatmul.mubr.f32.gmra.mrb[0].mxu0 %v4061
    %v4132 = vpop.f32.mrb[0].mxu0
    %v4133 = vadd.f32 0.0, %v4132
    %v4134 = vpop.f32.mrb[0].mxu0
    %4135 = vmatprep.mubr.f32.mxu0 0.0
    %4136 = vmatmul.mubr.f32.gmra.mrb[0].mxu0 %v4064
    %v4137 = vpop.f32.mrb[0].mxu0
    %v4138 = vadd.f32 0.0, %v4137
    %v4139 = vpop.f32.mrb[0].mxu0
    %4140 = vdwg.mxu0
    %v4142 = vsel %vm1633, %v3896, 0
    %v4145 = vsel %vm1633, %v3897, 0
    %4147 = vmatprep.subr.mxu0 0.0
    %4148 = vmatpush1.msra.mxu0 %v1723
    %4149 = vmatprep.subr.mxu0 0.0
    %4150 = vmatpush1.msra.mxu0 %v1725
    %4151 = vmatprep.subr.mxu0 0.0
    %4152 = vmatpush1.msra.mxu0 %v1727
    %4153 = vmatprep.subr.mxu0 0.0
    %4154 = vmatpush1.msra.mxu0 0.0
    %4155 = vmatprep.subr.mxu0 0.0
    %4156 = vmatpush1.msra.mxu0 0.0
    %4157 = vmatprep.subr.mxu0 0.0
    %4158 = vmatpush1.msra.mxu0 0.0
    %4159 = vmatprep.subr.mxu0 0.0
    %4160 = vmatpush1.msra.mxu0 0.0
    %4161 = vmatprep.subr.mxu0 0.0
    %4162 = vmatpush1.msra.mxu0 0.0
    %4163 = vmatprep.subr.mxu0 0.0
    %4164 = vmatpush1.msra.mxu0 0.0
    %4165 = vmatprep.subr.mxu0 0.0
    %4166 = vmatpush1.msra.mxu0 0.0
    %4167 = vmatprep.subr.mxu0 0.0
    %4168 = vmatpush1.msra.mxu0 0.0
    %4169 = vmatprep.subr.mxu0 0.0
    %4170 = vmatpush1.msra.mxu0 0.0
    %4171 = vmatprep.subr.mxu0 0.0
    %4172 = vmatpush1.msra.mxu0 0.0
    %4173 = vmatprep.subr.mxu0 0.0
    %4174 = vmatpush1.msra.mxu0 0.0
    %4175 = vmatprep.subr.mxu0 0.0
    %4176 = vmatpush1.msra.mxu0 0.0
    %4177 = vmatprep.subr.mxu0 0.0
    %4178 = vmatpush1.msra.mxu0 0.0
    %4179 = vmatprep.subr.mxu0 0.0
    %4180 = vmatpush1.msra.mxu0 0.0
    %4181 = vmatprep.subr.mxu0 0.0
    %4182 = vmatpush1.msra.mxu0 0.0
    %4183 = vmatprep.subr.mxu0 0.0
    %4184 = vmatpush1.msra.mxu0 0.0
    %4185 = vmatprep.subr.mxu0 0.0
    %4186 = vmatpush1.msra.mxu0 0.0
    %4187 = vmatprep.subr.mxu0 0.0
    %4188 = vmatpush1.msra.mxu0 0.0
    %4189 = vmatprep.subr.mxu0 0.0
    %4190 = vmatpush1.msra.mxu0 0.0
    %4191 = vmatprep.subr.mxu0 0.0
    %4192 = vmatpush1.msra.mxu0 0.0
    %4193 = vmatprep.subr.mxu0 0.0
    %4194 = vmatpush1.msra.mxu0 0.0
    %4195 = vmatprep.subr.mxu0 0.0
    %4196 = vmatpush1.msra.mxu0 0.0
    %4197 = vmatprep.subr.mxu0 0.0
    %4198 = vmatpush1.msra.mxu0 0.0
    %4199 = vmatprep.subr.mxu0 0.0
    %4200 = vmatpush1.msra.mxu0 0.0
    %4201 = vmatprep.subr.mxu0 0.0
    %4202 = vmatpush1.msra.mxu0 0.0
    %4203 = vmatprep.subr.mxu0 0.0
    %4204 = vmatpush1.msra.mxu0 0.0
    %4205 = vmatprep.subr.mxu0 0.0
    %4206 = vmatpush1.msra.mxu0 0.0
    %4207 = vmatprep.subr.mxu0 0.0
    %4208 = vmatpush1.msra.mxu0 0.0
    %4209 = vmatprep.subr.mxu0 0.0
    %4210 = vmatpush1.msra.mxu0 0.0
    %4211 = vmatprep.mubr.f32.mxu0 0.0
    %4212 = vmatmul.mubr.f32.gmra.mrb[0].mxu0 %v4142
    %v4213 = vpop.f32.mrb[0].mxu0
    %v4214 = vadd.f32 0.0, %v4213
    %v4215 = vpop.f32.mrb[0].mxu0
    %4216 = vmatprep.mubr.f32.mxu0 0.0
    %4217 = vmatmul.mubr.f32.gmra.mrb[0].mxu0 %v4145
    %v4218 = vpop.f32.mrb[0].mxu0
    %v4219 = vadd.f32 0.0, %v4218
    %v4220 = vpop.f32.mrb[0].mxu0
    %4221 = vdwg.mxu0
    %v4222 = vmul.f32 %v3971, %v53
    %v4223 = vmul.f32 %v3976, %v53
    %v4224 = vmul.f32 %v4052, %v54
    %v4225 = vmul.f32 %v4057, %v54
    %v4226 = vmul.f32 %v4133, %v55
    %v4227 = vmul.f32 %v4138, %v55
    %v4228 = vmul.f32 %v4214, %v56
    %v4229 = vmul.f32 %v4219, %v56
    %v4230 = vsel %vm69, %v4222, 0.0
    %v4231 = vsel %vm69, %v4224, 0.0
    %v4232 = vadd.f32 %v4230, %v4231
    %v4233 = vsel %vm69, %v4226, 0.0
    %v4234 = vadd.f32 %v4232, %v4233
    %v4235 = vsel %vm69, %v4228, 0.0
    %v4236 = vadd.f32 %v4234, %v4235
    %v4237 = vsel %vm69, %v4223, 0.0
    %v4238 = vsel %vm69, %v4225, 0.0
    %v4239 = vadd.f32 %v4237, %v4238
    %v4240 = vsel %vm69, %v4227, 0.0
    %v4241 = vadd.f32 %v4239, %v4240
    %v4242 = vsel %vm69, %v4229, 0.0
    %v4243 = vadd.f32 %v4241, %v4242
    %v4245 = vsel %vm69, %v4236, 0
    %v4248 = vsel %vm69, %v4243, 0
    %4250 = vmatprep.subr.mxu0 0.0
    %4251 = vmatpush1.msra.mxu0 %v1288
    %4252 = vmatprep.subr.mxu0 0.0
    %4253 = vmatpush1.msra.mxu0 %v1289
    %4254 = vmatprep.subr.mxu0 0.0
    %4255 = vmatpush1.msra.mxu0 %v1290
    %4256 = vmatprep.subr.mxu0 0.0
    %4257 = vmatpush1.msra.mxu0 %v1291
    %4258 = vmatprep.subr.mxu0 0.0
    %4259 = vmatpush1.msra.mxu0 0.0
    %4260 = vmatprep.subr.mxu0 0.0
    %4261 = vmatpush1.msra.mxu0 0.0
    %4262 = vmatprep.subr.mxu0 0.0
    %4263 = vmatpush1.msra.mxu0 0.0
    %4264 = vmatprep.subr.mxu0 0.0
    %4265 = vmatpush1.msra.mxu0 0.0
    %4266 = vmatprep.subr.mxu0 0.0
    %4267 = vmatpush1.msra.mxu0 0.0
    %4268 = vmatprep.subr.mxu0 0.0
    %4269 = vmatpush1.msra.mxu0 0.0
    %4270 = vmatprep.subr.mxu0 0.0
    %4271 = vmatpush1.msra.mxu0 0.0
    %4272 = vmatprep.subr.mxu0 0.0
    %4273 = vmatpush1.msra.mxu0 0.0
    %4274 = vmatprep.subr.mxu0 0.0
    %4275 = vmatpush1.msra.mxu0 0.0
    %4276 = vmatprep.subr.mxu0 0.0
    %4277 = vmatpush1.msra.mxu0 0.0
    %4278 = vmatprep.subr.mxu0 0.0
    %4279 = vmatpush1.msra.mxu0 0.0
    %4280 = vmatprep.subr.mxu0 0.0
    %4281 = vmatpush1.msra.mxu0 0.0
    %4282 = vmatprep.subr.mxu0 0.0
    %4283 = vmatpush1.msra.mxu0 0.0
    %4284 = vmatprep.subr.mxu0 0.0
    %4285 = vmatpush1.msra.mxu0 0.0
    %4286 = vmatprep.subr.mxu0 0.0
    %4287 = vmatpush1.msra.mxu0 0.0
    %4288 = vmatprep.subr.mxu0 0.0
    %4289 = vmatpush1.msra.mxu0 0.0
    %4290 = vmatprep.subr.mxu0 0.0
    %4291 = vmatpush1.msra.mxu0 0.0
    %4292 = vmatprep.subr.mxu0 0.0
    %4293 = vmatpush1.msra.mxu0 0.0
    %4294 = vmatprep.subr.mxu0 0.0
    %4295 = vmatpush1.msra.mxu0 0.0
    %4296 = vmatprep.subr.mxu0 0.0
    %4297 = vmatpush1.msra.mxu0 0.0
    %4298 = vmatprep.subr.mxu0 0.0
    %4299 = vmatpush1.msra.mxu0 0.0
    %4300 = vmatprep.subr.mxu0 0.0
    %4301 = vmatpush1.msra.mxu0 0.0
    %4302 = vmatprep.subr.mxu0 0.0
    %4303 = vmatpush1.msra.mxu0 0.0
    %4304 = vmatprep.subr.mxu0 0.0
    %4305 = vmatpush1.msra.mxu0 0.0
    %4306 = vmatprep.subr.mxu0 0.0
    %4307 = vmatpush1.msra.mxu0 0.0
    %4308 = vmatprep.subr.mxu0 0.0
    %4309 = vmatpush1.msra.mxu0 0.0
    %4310 = vmatprep.subr.mxu0 0.0
    %4311 = vmatpush1.msra.mxu0 0.0
    %4312 = vmatprep.subr.mxu0 0.0
    %4313 = vmatpush1.msra.mxu0 0.0
    %4314 = vmatprep.mubr.f32.mxu0 0.0
    %4315 = vmatmul.mubr.f32.gmra.mrb[0].mxu0 %v4245
    %v4316 = vpop.f32.mrb[0].mxu0
    %v4317 = vadd.f32 %v2080, %v4316
    %v4318 = vpop.f32.mrb[0].mxu0
    %4319 = vmatprep.mubr.f32.mxu0 0.0
    %4320 = vmatmul.mubr.f32.gmra.mrb[0].mxu0 %v4248
    %v4321 = vpop.f32.mrb[0].mxu0
    %v4322 = vadd.f32 %v2080, %v4321
    %v4323 = vpop.f32.mrb[0].mxu0
    %4324 = vdwg.mxu0
    %v4325 = vadd.f32 %v3365, %v4317
    %v4326 = vadd.f32 %v3366, %v4322
    %v4327 = vsel %vm69, %v4325, 0.0
    %4328 = vadd.xlane.f32.xlu0 %v4327
    %v4329 = vpop.xlane.xlu0 %4328
    %v4330 = vsel %vm69, %v4326, 0.0
    %4331 = vadd.xlane.f32.xlu0 %v4330
    %v4332 = vpop.xlane.xlu0 %4331
    %v4333 = vmul.f32 %v4329, %v165
    %v4334 = vmul.f32 %v4332, %v165
    %v4335 = vsub.f32 %v4325, %v4333
    %v4336 = vsub.f32 %v4326, %v4334
    %v4337 = vmul.f32 %v4335, %v4335
    %v4338 = vmul.f32 %v4336, %v4336
    %v4339 = vsel %vm69, %v4337, 0.0
    %4340 = vadd.xlane.f32.xlu0 %v4339
    %v4341 = vpop.xlane.xlu0 %4340
    %v4342 = vsel %vm69, %v4338, 0.0
    %4343 = vadd.xlane.f32.xlu0 %v4342
    %v4344 = vpop.xlane.xlu0 %4343
    %v4345 = vmul.f32 %v4341, %v165
    %v4346 = vmul.f32 %v4344, %v165
    %v4347 = vadd.f32 %v4345, 1e-05
    %v4348 = vadd.f32 %v4346, 1e-05
    %v4349 = vrsqrt.pop %v4347
    %v4350 = vrsqrt.pop %v4348
    %v4351 = vmul.f32 %v4335, %v4349
    %v4352 = vmul.f32 %v4336, %v4350
    %v4353 = vmul.f32 %v4351, %v2193
    %v4354 = vmul.f32 %v4352, %v2193
    %v4355 = vadd.f32 %v4353, %v2199
    %v4356 = vadd.f32 %v4354, %v2199
    %v4358 = vsel %vm69, %v4355, 0
    %v4361 = vsel %vm69, %v4356, 0
    %4363 = vmatprep.subr.mxu0 0.0
    %4364 = vmatpush1.msra.mxu0 %v2202
    %4365 = vmatprep.subr.mxu0 0.0
    %4366 = vmatpush1.msra.mxu0 %v2203
    %4367 = vmatprep.subr.mxu0 0.0
    %4368 = vmatpush1.msra.mxu0 %v2204
    %4369 = vmatprep.subr.mxu0 0.0
    %4370 = vmatpush1.msra.mxu0 %v2205
    %4371 = vmatprep.subr.mxu0 0.0
    %4372 = vmatpush1.msra.mxu0 0.0
    %4373 = vmatprep.subr.mxu0 0.0
    %4374 = vmatpush1.msra.mxu0 0.0
    %4375 = vmatprep.subr.mxu0 0.0
    %4376 = vmatpush1.msra.mxu0 0.0
    %4377 = vmatprep.subr.mxu0 0.0
    %4378 = vmatpush1.msra.mxu0 0.0
    %4379 = vmatprep.subr.mxu0 0.0
    %4380 = vmatpush1.msra.mxu0 0.0
    %4381 = vmatprep.subr.mxu0 0.0
    %4382 = vmatpush1.msra.mxu0 0.0
    %4383 = vmatprep.subr.mxu0 0.0
    %4384 = vmatpush1.msra.mxu0 0.0
    %4385 = vmatprep.subr.mxu0 0.0
    %4386 = vmatpush1.msra.mxu0 0.0
    %4387 = vmatprep.subr.mxu0 0.0
    %4388 = vmatpush1.msra.mxu0 0.0
    %4389 = vmatprep.subr.mxu0 0.0
    %4390 = vmatpush1.msra.mxu0 0.0
    %4391 = vmatprep.subr.mxu0 0.0
    %4392 = vmatpush1.msra.mxu0 0.0
    %4393 = vmatprep.subr.mxu0 0.0
    %4394 = vmatpush1.msra.mxu0 0.0
    %4395 = vmatprep.subr.mxu0 0.0
    %4396 = vmatpush1.msra.mxu0 0.0
    %4397 = vmatprep.subr.mxu0 0.0
    %4398 = vmatpush1.msra.mxu0 0.0
    %4399 = vmatprep.subr.mxu0 0.0
    %4400 = vmatpush1.msra.mxu0 0.0
    %4401 = vmatprep.subr.mxu0 0.0
    %4402 = vmatpush1.msra.mxu0 0.0
    %4403 = vmatprep.subr.mxu0 0.0
    %4404 = vmatpush1.msra.mxu0 0.0
    %4405 = vmatprep.subr.mxu0 0.0
    %4406 = vmatpush1.msra.mxu0 0.0
    %4407 = vmatprep.subr.mxu0 0.0
    %4408 = vmatpush1.msra.mxu0 0.0
    %4409 = vmatprep.subr.mxu0 0.0
    %4410 = vmatpush1.msra.mxu0 0.0
    %4411 = vmatprep.subr.mxu0 0.0
    %4412 = vmatpush1.msra.mxu0 0.0
    %4413 = vmatprep.subr.mxu0 0.0
    %4414 = vmatpush1.msra.mxu0 0.0
    %4415 = vmatprep.subr.mxu0 0.0
    %4416 = vmatpush1.msra.mxu0 0.0
    %4417 = vmatprep.subr.mxu0 0.0
    %4418 = vmatpush1.msra.mxu0 0.0
    %4419 = vmatprep.subr.mxu0 0.0
    %4420 = vmatpush1.msra.mxu0 0.0
    %4421 = vmatprep.subr.mxu0 0.0
    %4422 = vmatpush1.msra.mxu0 0.0
    %4423 = vmatprep.subr.mxu0 0.0
    %4424 = vmatpush1.msra.mxu0 0.0
    %4425 = vmatprep.subr.mxu0 0.0
    %4426 = vmatpush1.msra.mxu0 0.0
    %4427 = vmatprep.mubr.f32.mxu0 0.0
    %4428 = vmatmul.mubr.f32.gmra.mrb[0].mxu0 %v4358
    %v4429 = vpop.f32.mrb[0].mxu0
    %v4430 = vadd.f32 %v2209, %v4429
    %v4431 = vpop.f32.mrb[0].mxu0
    %4432 = vmatprep.mubr.f32.mxu0 0.0
    %4433 = vmatmul.mubr.f32.gmra.mrb[0].mxu0 %v4361
    %v4434 = vpop.f32.mrb[0].mxu0
    %v4435 = vadd.f32 %v2209, %v4434
    %v4436 = vpop.f32.mrb[0].mxu0
    %4437 = vdwg.mxu0
    %v4438 = vmax.f32 %v4430, 0.0
    %v4439 = vmax.f32 %v4435, 0.0
    %v4441 = vsel %vm2301, %v4438, 0
    %v4444 = vsel %vm2301, %v4439, 0
    %4446 = vmatprep.subr.mxu0 0.0
    %4447 = vmatpush1.msra.mxu0 %v2293
    %4448 = vmatprep.subr.mxu0 0.0
    %4449 = vmatpush1.msra.mxu0 %v2294
    %4450 = vmatprep.subr.mxu0 0.0
    %4451 = vmatpush1.msra.mxu0 %v2295
    %4452 = vmatprep.subr.mxu0 0.0
    %4453 = vmatpush1.msra.mxu0 %v2296
    %4454 = vmatprep.subr.mxu0 0.0
    %4455 = vmatpush1.msra.mxu0 %v2297
    %4456 = vmatprep.subr.mxu0 0.0
    %4457 = vmatpush1.msra.mxu0 %v2298
    %4458 = vmatprep.subr.mxu0 0.0
    %4459 = vmatpush1.msra.mxu0 %v2299
    %4460 = vmatprep.subr.mxu0 0.0
    %4461 = vmatpush1.msra.mxu0 %v2300
    %4462 = vmatprep.subr.mxu0 0.0
    %4463 = vmatpush1.msra.mxu0 0.0
    %4464 = vmatprep.subr.mxu0 0.0
    %4465 = vmatpush1.msra.mxu0 0.0
    %4466 = vmatprep.subr.mxu0 0.0
    %4467 = vmatpush1.msra.mxu0 0.0
    %4468 = vmatprep.subr.mxu0 0.0
    %4469 = vmatpush1.msra.mxu0 0.0
    %4470 = vmatprep.subr.mxu0 0.0
    %4471 = vmatpush1.msra.mxu0 0.0
    %4472 = vmatprep.subr.mxu0 0.0
    %4473 = vmatpush1.msra.mxu0 0.0
    %4474 = vmatprep.subr.mxu0 0.0
    %4475 = vmatpush1.msra.mxu0 0.0
    %4476 = vmatprep.subr.mxu0 0.0
    %4477 = vmatpush1.msra.mxu0 0.0
    %4478 = vmatprep.subr.mxu0 0.0
    %4479 = vmatpush1.msra.mxu0 0.0
    %4480 = vmatprep.subr.mxu0 0.0
    %4481 = vmatpush1.msra.mxu0 0.0
    %4482 = vmatprep.subr.mxu0 0.0
    %4483 = vmatpush1.msra.mxu0 0.0
    %4484 = vmatprep.subr.mxu0 0.0
    %4485 = vmatpush1.msra.mxu0 0.0
    %4486 = vmatprep.subr.mxu0 0.0
    %4487 = vmatpush1.msra.mxu0 0.0
    %4488 = vmatprep.subr.mxu0 0.0
    %4489 = vmatpush1.msra.mxu0 0.0
    %4490 = vmatprep.subr.mxu0 0.0
    %4491 = vmatpush1.msra.mxu0 0.0
    %4492 = vmatprep.subr.mxu0 0.0
    %4493 = vmatpush1.msra.mxu0 0.0
    %4494 = vmatprep.subr.mxu0 0.0
    %4495 = vmatpush1.msra.mxu0 0.0
    %4496 = vmatprep.subr.mxu0 0.0
    %4497 = vmatpush1.msra.mxu0 0.0
    %4498 = vmatprep.subr.mxu0 0.0
    %4499 = vmatpush1.msra.mxu0 0.0
    %4500 = vmatprep.subr.mxu0 0.0
    %4501 = vmatpush1.msra.mxu0 0.0
    %4502 = vmatprep.subr.mxu0 0.0
    %4503 = vmatpush1.msra.mxu0 0.0
    %4504 = vmatprep.subr.mxu0 0.0
    %4505 = vmatpush1.msra.mxu0 0.0
    %4506 = vmatprep.subr.mxu0 0.0
    %4507 = vmatpush1.msra.mxu0 0.0
    %4508 = vmatprep.subr.mxu0 0.0
    %4509 = vmatpush1.msra.mxu0 0.0
    %4510 = vmatprep.mubr.f32.mxu0 0.0
    %4511 = vmatmul.mubr.f32.gmra.mrb[0].mxu0 %v4441
    %v4512 = vpop.f32.mrb[0].mxu0
    %v4513 = vadd.f32 0.0, %v4512
    %v4514 = vpop.f32.mrb[0].mxu0
    %4515 = vmatprep.mubr.f32.mxu0 0.0
    %4516 = vmatmul.mubr.f32.gmra.mrb[0].mxu0 %v4444
    %v4517 = vpop.f32.mrb[0].mxu0
    %v4518 = vadd.f32 0.0, %v4517
    %v4519 = vpop.f32.mrb[0].mxu0
    %4520 = vdwg.mxu0
    %v4521 = vadd.f32 %v4325, %v4513
    %v4522 = vadd.f32 %v4326, %v4518
    %v4523 = vadd.f32 %v4521, %v2388
    %v4524 = vadd.f32 %v4522, %v2388
    %v4525 = vsel %vm69, %v4523, 0.0
    %4526 = vadd.xlane.f32.xlu0 %v4525
    %v4527 = vpop.xlane.xlu0 %4526
    %v4528 = vsel %vm69, %v4524, 0.0
    %4529 = vadd.xlane.f32.xlu0 %v4528
    %v4530 = vpop.xlane.xlu0 %4529
    %v4531 = vmul.f32 %v4527, %v165
    %v4532 = vmul.f32 %v4530, %v165
    %v4533 = vsub.f32 %v4523, %v4531
    %v4534 = vsub.f32 %v4524, %v4532
    %v4535 = vmul.f32 %v4533, %v4533
    %v4536 = vmul.f32 %v4534, %v4534
    %v4537 = vsel %vm69, %v4535, 0.0
    %4538 = vadd.xlane.f32.xlu0 %v4537
    %v4539 = vpop.xlane.xlu0 %4538
    %v4540 = vsel %vm69, %v4536, 0.0
    %4541 = vadd.xlane.f32.xlu0 %v4540
    %v4542 = vpop.xlane.xlu0 %4541
    %v4543 = vmul.f32 %v4539, %v165
    %v4544 = vmul.f32 %v4542, %v165
    %v4545 = vadd.f32 %v4543, 1e-05
    %v4546 = vadd.f32 %v4544, 1e-05
    %v4547 = vrsqrt.pop %v4545
    %v4548 = vrsqrt.pop %v4546
    %v4549 = vmul.f32 %v4533, %v4547
    %v4550 = vmul.f32 %v4534, %v4548
    %v4551 = vlaneseq
    %v4552 = vshrl.u32 %v4551, 7
    %v4553 = vsub.s32 5, %v4552
    %v4554 = vrot.slane %v34, %v4553
    %v4555 = vmul.f32 %v4549, %v4554
    %v4556 = vmul.f32 %v4550, %v4554
    %v4557 = vlaneseq
    %v4558 = vshrl.u32 %v4557, 7
    %v4559 = vsub.s32 6, %v4558
    %v4560 = vrot.slane %v34, %v4559
    %v4561 = vadd.f32 %v4555, %v4560
    %v4562 = vadd.f32 %v4556, %v4560
    %4563 = vst.msk [vmem:[#allocation2] sm:$0xff] %vm69, %v4561
    %4564 = vst.msk [vmem:[#allocation2 + $0x8] sm:$0xff] %vm69, %v4562
    // Predicated region
    $region26: #{decoder_forward.1} parent=1 // pred_check
      _
    $region27: #{decoder_forward.1} parent=1 // pred_check_branch
      %4566 = sbr.rel (0) target = $region29
    $region28: #{decoder_forward.1} parent=1 // pred_region
      %s4568 = ssub.s32 256, 256
      %4569 = vsyncadd [#allocation3], %s4568
      %s4570 = sshll.u32 [#allocation2], 4
      %s4571 = int_to_ptr.vmem [resolvable:$true] %s4570
      %4576 = dma.vmem_to_hbm [thread:$0]  %s4571, 256, %s6, [#allocation3], 128, 128, 8
    $region29: #{decoder_forward.1} parent=1 // pred_fallthru
      _
    // Predicated region
    $region30: #{decoder_forward.1} parent=1 // pred_check
      _
    $region31: #{decoder_forward.1} parent=1 // pred_check_branch
      %4578 = sbr.rel (0) target = $region33
    $region32: #{decoder_forward.1} parent=1 // pred_region
      %4579 = dma.done [#allocation3], 256
    $region33: #{decoder_forward.1} parent=1 // pred_fallthru
      _
    %4580 = vsyncpa [#allocation3], 1

</llo_original>
